<compile_context>
chip_gen: v6e
topology: v6e:2x2x1
jax: 0.10.0
libtpu: 0.0.40
codegen_flags: <defaults>
</compile_context>

<pallas_src>
import math

import jax
import jax.numpy as jnp
from jax.experimental import pallas as pl
from jax.experimental.pallas import tpu as pltpu  # noqa: F401  (TPU backend)

# ---------------- model hyper-parameters (small, consistent with the module) --
B = 2            # batch
C_IMG = 3        # input channels
H_IMG = W_IMG = 16
PATCH = 8
NP = (H_IMG // PATCH) * (W_IMG // PATCH)     # 4 patches
P = PATCH * PATCH * C_IMG                    # 192 patch dim
D = 32                                       # latent_size
L = 2                                        # num_encoders
NH = 4                                       # attention heads
HD = D // NH                                 # 8 head dim
FF = 4 * D                                   # 128 MLP hidden
NC = 10                                      # num_classes
N = NP + 1                                   # 5 tokens (cls + patches)
NPAD = 8                                     # tokens padded to one sublane group
TOK = B * NPAD                               # 16 stacked rows
OUTPAD = 128                                 # lane-dense logits width


def _mxu_dtype():
    """bf16 matmul operands on v6e / v7x; f32 elsewhere (always-correct default)."""
    try:
        kind = jax.devices()[0].device_kind.lower()
    except Exception:
        return jnp.float32
    return jnp.bfloat16 if ("v6" in kind or "v7" in kind) else jnp.float32


# ---------------- in-kernel helpers ------------------------------------------
def _ln_stats(x, eps=1e-5):
    """LayerNorm without the affine part (gamma/beta are folded into weights)."""
    mu = jnp.mean(x, axis=-1, keepdims=True)
    var = jnp.mean((x - mu) ** 2, axis=-1, keepdims=True)
    return (x - mu) * jax.lax.rsqrt(var + eps)


def _softmax(s):
    m = jnp.max(s, axis=-1, keepdims=True)
    e = jnp.exp(s - m)
    return e * pl.reciprocal(jnp.sum(e, axis=-1, keepdims=True), approx=True)


def _nt_dot(a, b):
    """a @ b.T  (NT matmul, native on the MXU)."""
    return jax.lax.dot_general(a, b, (((1,), (1,)), ((), ())),
                               preferred_element_type=jnp.float32)


# ---------------- the Pallas kernel (whole model, single invocation) ----------
def _make_vit_kernel(cdt):
    f32 = jnp.float32
    scale = 1.0 / math.sqrt(HD)

    def matmul_bias(act, slab, rows):
        """(act @ slab[:rows]) + slab[rows]  with f32 accumulation."""
        return (jnp.dot(act.astype(cdt), slab[:rows, :],
                        preferred_element_type=f32)
                + slab[rows:rows + 1, :].astype(f32))

    def vit_kernel(patches_ref, emb_ref, projw_ref, qkv_ref, wo_ref,
                   mlp1_ref, mlp2_ref, head1_ref, head2_ref, out_ref):
        # additive mask: padded key columns (>= N) -> -1e30 before softmax
        col = jax.lax.broadcasted_iota(jnp.int32, (NPAD, NPAD), 1)
        kmask = jnp.where(col < N, 0.0, -1e30).astype(f32)

        # ---- InputEmbedding: one patch-projection matmul for the whole batch --
        # emb16 already holds cls+pos / pos+proj_bias / zeros per stacked row.
        x = jnp.dot(patches_ref[...], projw_ref[...],
                    preferred_element_type=f32) + emb_ref[...]        # [TOK, D]

        # ---- Encoder stack -----------------------------------------------------
        for l in range(L):
            # pre-attention LN (affine folded into the fused qkv slab)
            xh = _ln_stats(x)
            qkv = matmul_bias(xh, qkv_ref[l], D)                      # [TOK, 3D]

            # per-(batch, head) attention on 8-aligned sublane/lane slices
            outs = []
            for b in range(B):
                r = b * NPAD
                heads = []
                for h in range(NH):
                    c = h * HD
                    q = qkv[r:r + NPAD, c:c + HD]
                    k = qkv[r:r + NPAD, D + c:D + c + HD]
                    v = qkv[r:r + NPAD, 2 * D + c:2 * D + c + HD]
                    s = _nt_dot(q, k) * scale + kmask                 # [8, 8]
                    p = _softmax(s)
                    heads.append(jnp.dot(p, v, preferred_element_type=f32))
                outs.append(jnp.concatenate(heads, axis=1))           # [NPAD, D]
            o = jnp.concatenate(outs, axis=0)                         # [TOK, D]

            # single output projection + residual 1
            x = x + matmul_bias(o, wo_ref[l], D)

            # MLP block (shared LN params folded into the w1 slab) + residual 2
            xh2 = _ln_stats(x)
            ff = matmul_bias(xh2, mlp1_ref[l], D)                     # [TOK, FF]
            ff = jax.nn.gelu(ff, approximate=True)
            x = x + matmul_bias(ff, mlp2_ref[l], FF)

        # ---- MLP head (run on all rows -> fully lane/sublane-dense store) -----
        xh3 = _ln_stats(x)
        c1 = matmul_bias(xh3, head1_ref[...], D)                      # [TOK, D]
        out_ref[...] = matmul_bias(c1, head2_ref[...], D)             # [TOK, 128]

    return vit_kernel


# ---------------- wrapper glue -------------------------------------------------
def patchify(x):
    """NCHW -> [B, num_patches, patch*patch*C]  (matches einops rearrange)."""
    b, c, h, w = x.shape
    hh, ww = h // PATCH, w // PATCH
    x = x.reshape(b, c, hh, PATCH, ww, PATCH)
    x = x.transpose(0, 2, 4, 3, 5, 1)          # b, hh, ww, p1, p2, c
    return x.reshape(b, hh * ww, PATCH * PATCH * c)


def _pack_patches(x_img, cdt):
    """Stacked, sublane-aligned patch matrix: rows b*8+1..b*8+4 hold the patches
    of batch element b, every other row is zero."""
    patches = patchify(x_img).astype(jnp.float32)                     # [B, NP, P]
    p16 = jnp.zeros((B, NPAD, P), jnp.float32)
    p16 = p16.at[:, 1:1 + NP, :].set(patches)
    return p16.reshape(TOK, P).astype(cdt)


def _pack_params(params, cdt):
    """One-time host-side repacking: LN-affine folding + bias-row slabs."""
    (proj_w, proj_b, cls, pos, ln_g, ln_b, wqkv, bqkv, wo, bo,
     w1, b1, w2, b2, hln_g, hln_b, hw1, hb1, hw2, hb2) = params
    f32 = jnp.float32

    # per-row additive embedding for the stacked token matrix:
    #   row b*8+0     : cls_b + pos_b
    #   rows b*8+1..4 : pos_b + patch-projection bias
    #   rows b*8+5..7 : 0 (padding)
    emb16 = jnp.zeros((B, NPAD, D), f32)
    emb16 = emb16.at[:, 0, :].set((cls + pos).reshape(B, D))
    emb16 = emb16.at[:, 1:1 + NP, :].set(
        jnp.broadcast_to(pos + proj_b.reshape(1, 1, D), (B, NP, D)))
    emb16 = emb16.reshape(TOK, D).astype(f32)

    proj_w_c = proj_w.astype(cdt)                                     # [P, D]

    # fused qkv slab with the pre-attention LN affine folded in:
    #   W' = diag(g) W ; b' = beta @ W + b          -> [L, D+1, 3D]
    g_col = jnp.transpose(ln_g, (0, 2, 1))                            # [L, D, 1]
    qkv_w = g_col * wqkv
    qkv_b = jnp.einsum('lod,ldk->lok', ln_b, wqkv) + bqkv
    qkv_wb = jnp.concatenate([qkv_w, qkv_b], axis=1).astype(cdt)

    # attention output projection slab: [L, D+1, D]
    wo_wb = jnp.concatenate([wo, bo], axis=1).astype(cdt)

    # MLP w1 slab with the (shared) LN affine folded in: [L, D+1, FF]
    w1_w = g_col * w1
    w1_b = jnp.einsum('lod,ldk->lok', ln_b, w1) + b1
    mlp1_wb = jnp.concatenate([w1_w, w1_b], axis=1).astype(cdt)

    # MLP w2 slab: [L, FF+1, D]
    mlp2_wb = jnp.concatenate([w2, b2], axis=1).astype(cdt)

    # classification head: LN folded into the first linear; second linear
    # zero-padded to a lane-dense 128-wide output.
    h1_w = hln_g.reshape(D, 1) * hw1
    h1_b = hln_b @ hw1 + hb1
    head1_wb = jnp.concatenate([h1_w, h1_b], axis=0).astype(cdt)      # [D+1, D]

    hw2_pad = jnp.pad(hw2, ((0, 0), (0, OUTPAD - NC)))
    hb2_pad = jnp.pad(hb2, ((0, 0), (0, OUTPAD - NC)))
    head2_wb = jnp.concatenate([hw2_pad, hb2_pad], axis=0).astype(cdt)  # [D+1, 128]

    return emb16, proj_w_c, qkv_wb, wo_wb, mlp1_wb, mlp2_wb, head1_wb, head2_wb


def vit_forward(x_img, params):
    cdt = _mxu_dtype()
    patches16 = _pack_patches(x_img, cdt)
    packed = _pack_params(params, cdt)

    # Single kernel invocation (no grid): each input is one DMA into VMEM, no
    # double buffering, no per-step overhead.  Footprint << VMEM on every TPU
    # generation, so splitting the B=2 batch across cores (v7x) would only
    # duplicate the weight-slab DMA prologue.
    out = pl.pallas_call(
        _make_vit_kernel(cdt),
        out_shape=jax.ShapeDtypeStruct((TOK, OUTPAD), jnp.float32),
    )(patches16, *packed)

    # rows {0, 8} hold the cls-token logits; lanes [:NC] are the real classes.
    return out.reshape(B, NPAD, OUTPAD)[:, 0, :NC]


# ---------------- pure-JAX reference (sanity check) ---------------------------
def vit_reference(x_img, params):
    (proj_w, proj_b, cls, pos, ln_g, ln_b, wqkv, bqkv, wo, bo,
     w1, b1, w2, b2, hln_g, hln_b, hw1, hb1, hw2, hb2) = params

    def ln(x, g, b, eps=1e-5):
        mu = jnp.mean(x, axis=-1, keepdims=True)
        var = jnp.mean((x - mu) ** 2, axis=-1, keepdims=True)
        return (x - mu) / jnp.sqrt(var + eps) * g + b

    patches = patchify(x_img)
    proj = patches @ proj_w + proj_b
    x = jnp.concatenate([cls, proj], axis=1) + pos                 # [B, N, D]
    for l in range(L):
        h = ln(x, ln_g[l], ln_b[l])
        qkv = h @ wqkv[l] + bqkv[l]
        q, k, v = jnp.split(qkv, 3, axis=-1)

        def heads(t):
            return t.reshape(B, N, NH, HD).transpose(0, 2, 1, 3)
        qh, kh, vh = heads(q), heads(k), heads(v)
        s = jnp.einsum('bhnd,bhmd->bhnm', qh, kh) / math.sqrt(HD)
        p = jax.nn.softmax(s, axis=-1)
        o = jnp.einsum('bhnm,bhmd->bhnd', p, vh).transpose(0, 2, 1, 3).reshape(B, N, D)
        x = x + (o @ wo[l] + bo[l])
        h2 = ln(x, ln_g[l], ln_b[l])
        ff = jax.nn.gelu(h2 @ w1[l] + b1[l], approximate=True)
        x = x + (ff @ w2[l] + b2[l])
    c = x[:, 0]
    c = ln(c, hln_g, hln_b)
    c = c @ hw1 + hb1
    return c @ hw2 + hb2


# ---------------- main --------------------------------------------------------
if __name__ == "__main__":
    key = jax.random.PRNGKey(0)
    keys = iter(jax.random.split(key, 40))

    def rnd(shape, scale=0.05):
        return (scale * jax.random.normal(next(keys), shape)).astype(jnp.float32)

    params = (
        rnd((P, D)), rnd((1, D)),                       # patch projection
        rnd((B, 1, D)), rnd((B, 1, D)),                 # cls token, pos embed
        jnp.ones((L, 1, D), jnp.float32),               # encoder LN gamma
        jnp.zeros((L, 1, D), jnp.float32),              # encoder LN beta
        rnd((L, D, 3 * D)), rnd((L, 1, 3 * D)),         # qkv
        rnd((L, D, D)), rnd((L, 1, D)),                 # attention out proj
        rnd((L, D, FF)), rnd((L, 1, FF)),               # mlp w1
        rnd((L, FF, D)), rnd((L, 1, D)),                # mlp w2
        jnp.ones((1, D), jnp.float32),                  # head LN gamma
        jnp.zeros((1, D), jnp.float32),                 # head LN beta
        rnd((D, D)), rnd((1, D)),                       # head linear 1
        rnd((D, NC)), rnd((1, NC)),                     # head linear 2
    )

    x_img = jax.random.normal(next(keys), (B, C_IMG, H_IMG, W_IMG), jnp.float32)

    out = vit_forward(x_img, params)
    out = jax.block_until_ready(out)

    ref = vit_reference(x_img, params)
    assert out.shape == (B, NC), out.shape
    assert bool(jnp.all(jnp.isfinite(out)))
    assert bool(jnp.allclose(out, ref, atol=2e-2, rtol=2e-2)), (out, ref)

    print("KERNEL_OK")
</pallas_src>

<mosaic_0001>
module attributes {stable_mosaic.version = 11 : i64} {
  func.func @vit_kernel(%arg0: memref<16x192xf32, #tpu.memory_space<vmem>>, %arg1: memref<16x32xf32, #tpu.memory_space<vmem>>, %arg2: memref<192x32xf32, #tpu.memory_space<vmem>>, %arg3: memref<2x33x96xf32, #tpu.memory_space<vmem>>, %arg4: memref<2x33x32xf32, #tpu.memory_space<vmem>>, %arg5: memref<2x33x128xf32, #tpu.memory_space<vmem>>, %arg6: memref<2x129x32xf32, #tpu.memory_space<vmem>>, %arg7: memref<33x32xf32, #tpu.memory_space<vmem>>, %arg8: memref<33x128xf32, #tpu.memory_space<vmem>>, %arg9: memref<16x128xf32, #tpu.memory_space<vmem>>) attributes {dimension_semantics = [], scalar_prefetch = 0 : i64, scratch_operands = 0 : i64, tpu.core_type = #tpu.core_type<tc>} {
    %0 = tpu.iota {dimensions = array<i32: 1>} : vector<8x8xi32>
    %c5_i32 = arith.constant 5 : i32
    %1 = vector.broadcast %c5_i32 : i32 to vector<8x8xi32>
    %2 = arith.cmpi slt, %0, %1 : vector<8x8xi32>
    %cst = arith.constant 0.000000e+00 : f32
    %cst_0 = arith.constant -1.000000e+30 : f32
    %3 = vector.broadcast %cst : f32 to vector<8x8xf32>
    %4 = vector.broadcast %cst_0 : f32 to vector<8x8xf32>
    %5 = arith.select %2, %3, %4 : vector<8x8xi1>, vector<8x8xf32>
    %c0 = arith.constant 0 : index
    %c0_1 = arith.constant 0 : index
    %6 = vector.load %arg0[%c0, %c0_1] : memref<16x192xf32, #tpu.memory_space<vmem>>, vector<16x192xf32>
    %c0_2 = arith.constant 0 : index
    %c0_3 = arith.constant 0 : index
    %7 = vector.load %arg2[%c0_2, %c0_3] : memref<192x32xf32, #tpu.memory_space<vmem>>, vector<192x32xf32>
    %cst_4 = arith.constant dense<0.000000e+00> : vector<16x32xf32>
    %8 = tpu.matmul %6, %7, %cst_4 {dimension_numbers = #tpu.dot_dimension_numbers<[1], [0], [0], [1], [0, 0, 1, 1], [], []>} : vector<16x192xf32>, vector<192x32xf32>, vector<16x32xf32> -> vector<16x32xf32>
    %c0_5 = arith.constant 0 : index
    %c0_6 = arith.constant 0 : index
    %9 = vector.load %arg1[%c0_5, %c0_6] : memref<16x32xf32, #tpu.memory_space<vmem>>, vector<16x32xf32>
    %10 = arith.addf %8, %9 : vector<16x32xf32>
    %cst_7 = arith.constant dense<0.000000e+00> : vector<16xf32>
    %11 = vector.multi_reduction <add>, %10, %cst_7 [1] : vector<16x32xf32> to vector<16xf32>
    %12 = vector.shape_cast %11 : vector<16xf32> to vector<16x1xf32>
    %cst_8 = arith.constant 3.200000e+01 : f32
    %13 = vector.broadcast %cst_8 : f32 to vector<16x1xf32>
    %14 = arith.divf %12, %13 : vector<16x1xf32>
    %15 = vector.broadcast %14 : vector<16x1xf32> to vector<16x32xf32>
    %16 = arith.subf %10, %15 : vector<16x32xf32>
    %17 = arith.mulf %16, %16 : vector<16x32xf32>
    %cst_9 = arith.constant dense<0.000000e+00> : vector<16xf32>
    %18 = vector.multi_reduction <add>, %17, %cst_9 [1] : vector<16x32xf32> to vector<16xf32>
    %19 = vector.shape_cast %18 : vector<16xf32> to vector<16x1xf32>
    %cst_10 = arith.constant 3.200000e+01 : f32
    %20 = vector.broadcast %cst_10 : f32 to vector<16x1xf32>
    %21 = arith.divf %19, %20 : vector<16x1xf32>
    %22 = vector.broadcast %14 : vector<16x1xf32> to vector<16x32xf32>
    %23 = arith.subf %10, %22 : vector<16x32xf32>
    %cst_11 = arith.constant 9.99999974E-6 : f32
    %24 = vector.broadcast %cst_11 : f32 to vector<16x1xf32>
    %25 = arith.addf %21, %24 : vector<16x1xf32>
    %26 = math.rsqrt %25 : vector<16x1xf32>
    %27 = vector.broadcast %26 : vector<16x1xf32> to vector<16x32xf32>
    %28 = arith.mulf %23, %27 : vector<16x32xf32>
    %c0_12 = arith.constant 0 : index
    %c0_13 = arith.constant 0 : index
    %c0_14 = arith.constant 0 : index
    %29 = vector.load %arg3[%c0_12, %c0_13, %c0_14] : memref<2x33x96xf32, #tpu.memory_space<vmem>>, vector<1x33x96xf32>
    %30 = vector.shape_cast %29 : vector<1x33x96xf32> to vector<33x96xf32>
    %31 = vector.extract_strided_slice %30 {offsets = [0, 0], sizes = [32, 96], strides = [1, 1]} : vector<33x96xf32> to vector<32x96xf32>
    %cst_15 = arith.constant dense<0.000000e+00> : vector<16x96xf32>
    %32 = tpu.matmul %28, %31, %cst_15 {dimension_numbers = #tpu.dot_dimension_numbers<[1], [0], [0], [1], [0, 0, 1, 1], [], []>} : vector<16x32xf32>, vector<32x96xf32>, vector<16x96xf32> -> vector<16x96xf32>
    %33 = vector.extract_strided_slice %30 {offsets = [32, 0], sizes = [1, 96], strides = [1, 1]} : vector<33x96xf32> to vector<1x96xf32>
    %34 = vector.broadcast %33 : vector<1x96xf32> to vector<16x96xf32>
    %35 = arith.addf %32, %34 : vector<16x96xf32>
    %36 = vector.extract_strided_slice %35 {offsets = [0, 0], sizes = [8, 8], strides = [1, 1]} : vector<16x96xf32> to vector<8x8xf32>
    %37 = vector.extract_strided_slice %35 {offsets = [0, 32], sizes = [8, 8], strides = [1, 1]} : vector<16x96xf32> to vector<8x8xf32>
    %38 = vector.extract_strided_slice %35 {offsets = [0, 64], sizes = [8, 8], strides = [1, 1]} : vector<16x96xf32> to vector<8x8xf32>
    %cst_16 = arith.constant dense<0.000000e+00> : vector<8x8xf32>
    %39 = tpu.matmul %36, %37, %cst_16 {dimension_numbers = #tpu.dot_dimension_numbers<[1], [1], [0], [0], [0, 0, 1, 0], [], []>} : vector<8x8xf32>, vector<8x8xf32>, vector<8x8xf32> -> vector<8x8xf32>
    %cst_17 = arith.constant 0.353553385 : f32
    %40 = vector.broadcast %cst_17 : f32 to vector<8x8xf32>
    %41 = arith.mulf %39, %40 : vector<8x8xf32>
    %42 = arith.addf %41, %5 : vector<8x8xf32>
    %cst_18 = arith.constant dense<0xFF800000> : vector<8xf32>
    %43 = vector.multi_reduction <maximumf>, %42, %cst_18 [1] : vector<8x8xf32> to vector<8xf32>
    %44 = vector.shape_cast %43 : vector<8xf32> to vector<8x1xf32>
    %45 = vector.broadcast %44 : vector<8x1xf32> to vector<8x8xf32>
    %46 = arith.subf %42, %45 : vector<8x8xf32>
    %47 = math.exp %46 : vector<8x8xf32>
    %cst_19 = arith.constant dense<0.000000e+00> : vector<8xf32>
    %48 = vector.multi_reduction <add>, %47, %cst_19 [1] : vector<8x8xf32> to vector<8xf32>
    %49 = vector.shape_cast %48 : vector<8xf32> to vector<8x1xf32>
    %50 = tpu.reciprocal %49 {approx = true} : vector<8x1xf32> -> vector<8x1xf32>
    %51 = vector.broadcast %50 : vector<8x1xf32> to vector<8x8xf32>
    %52 = arith.mulf %47, %51 : vector<8x8xf32>
    %cst_20 = arith.constant dense<0.000000e+00> : vector<8x8xf32>
    %53 = tpu.matmul %52, %38, %cst_20 {dimension_numbers = #tpu.dot_dimension_numbers<[1], [0], [0], [1], [0, 0, 1, 1], [], []>} : vector<8x8xf32>, vector<8x8xf32>, vector<8x8xf32> -> vector<8x8xf32>
    %54 = vector.extract_strided_slice %35 {offsets = [0, 8], sizes = [8, 8], strides = [1, 1]} : vector<16x96xf32> to vector<8x8xf32>
    %55 = vector.extract_strided_slice %35 {offsets = [0, 40], sizes = [8, 8], strides = [1, 1]} : vector<16x96xf32> to vector<8x8xf32>
    %56 = vector.extract_strided_slice %35 {offsets = [0, 72], sizes = [8, 8], strides = [1, 1]} : vector<16x96xf32> to vector<8x8xf32>
    %cst_21 = arith.constant dense<0.000000e+00> : vector<8x8xf32>
    %57 = tpu.matmul %54, %55, %cst_21 {dimension_numbers = #tpu.dot_dimension_numbers<[1], [1], [0], [0], [0, 0, 1, 0], [], []>} : vector<8x8xf32>, vector<8x8xf32>, vector<8x8xf32> -> vector<8x8xf32>
    %cst_22 = arith.constant 0.353553385 : f32
    %58 = vector.broadcast %cst_22 : f32 to vector<8x8xf32>
    %59 = arith.mulf %57, %58 : vector<8x8xf32>
    %60 = arith.addf %59, %5 : vector<8x8xf32>
    %cst_23 = arith.constant dense<0xFF800000> : vector<8xf32>
    %61 = vector.multi_reduction <maximumf>, %60, %cst_23 [1] : vector<8x8xf32> to vector<8xf32>
    %62 = vector.shape_cast %61 : vector<8xf32> to vector<8x1xf32>
    %63 = vector.broadcast %62 : vector<8x1xf32> to vector<8x8xf32>
    %64 = arith.subf %60, %63 : vector<8x8xf32>
    %65 = math.exp %64 : vector<8x8xf32>
    %cst_24 = arith.constant dense<0.000000e+00> : vector<8xf32>
    %66 = vector.multi_reduction <add>, %65, %cst_24 [1] : vector<8x8xf32> to vector<8xf32>
    %67 = vector.shape_cast %66 : vector<8xf32> to vector<8x1xf32>
    %68 = tpu.reciprocal %67 {approx = true} : vector<8x1xf32> -> vector<8x1xf32>
    %69 = vector.broadcast %68 : vector<8x1xf32> to vector<8x8xf32>
    %70 = arith.mulf %65, %69 : vector<8x8xf32>
    %cst_25 = arith.constant dense<0.000000e+00> : vector<8x8xf32>
    %71 = tpu.matmul %70, %56, %cst_25 {dimension_numbers = #tpu.dot_dimension_numbers<[1], [0], [0], [1], [0, 0, 1, 1], [], []>} : vector<8x8xf32>, vector<8x8xf32>, vector<8x8xf32> -> vector<8x8xf32>
    %72 = vector.extract_strided_slice %35 {offsets = [0, 16], sizes = [8, 8], strides = [1, 1]} : vector<16x96xf32> to vector<8x8xf32>
    %73 = vector.extract_strided_slice %35 {offsets = [0, 48], sizes = [8, 8], strides = [1, 1]} : vector<16x96xf32> to vector<8x8xf32>
    %74 = vector.extract_strided_slice %35 {offsets = [0, 80], sizes = [8, 8], strides = [1, 1]} : vector<16x96xf32> to vector<8x8xf32>
    %cst_26 = arith.constant dense<0.000000e+00> : vector<8x8xf32>
    %75 = tpu.matmul %72, %73, %cst_26 {dimension_numbers = #tpu.dot_dimension_numbers<[1], [1], [0], [0], [0, 0, 1, 0], [], []>} : vector<8x8xf32>, vector<8x8xf32>, vector<8x8xf32> -> vector<8x8xf32>
    %cst_27 = arith.constant 0.353553385 : f32
    %76 = vector.broadcast %cst_27 : f32 to vector<8x8xf32>
    %77 = arith.mulf %75, %76 : vector<8x8xf32>
    %78 = arith.addf %77, %5 : vector<8x8xf32>
    %cst_28 = arith.constant dense<0xFF800000> : vector<8xf32>
    %79 = vector.multi_reduction <maximumf>, %78, %cst_28 [1] : vector<8x8xf32> to vector<8xf32>
    %80 = vector.shape_cast %79 : vector<8xf32> to vector<8x1xf32>
    %81 = vector.broadcast %80 : vector<8x1xf32> to vector<8x8xf32>
    %82 = arith.subf %78, %81 : vector<8x8xf32>
    %83 = math.exp %82 : vector<8x8xf32>
    %cst_29 = arith.constant dense<0.000000e+00> : vector<8xf32>
    %84 = vector.multi_reduction <add>, %83, %cst_29 [1] : vector<8x8xf32> to vector<8xf32>
    %85 = vector.shape_cast %84 : vector<8xf32> to vector<8x1xf32>
    %86 = tpu.reciprocal %85 {approx = true} : vector<8x1xf32> -> vector<8x1xf32>
    %87 = vector.broadcast %86 : vector<8x1xf32> to vector<8x8xf32>
    %88 = arith.mulf %83, %87 : vector<8x8xf32>
    %cst_30 = arith.constant dense<0.000000e+00> : vector<8x8xf32>
    %89 = tpu.matmul %88, %74, %cst_30 {dimension_numbers = #tpu.dot_dimension_numbers<[1], [0], [0], [1], [0, 0, 1, 1], [], []>} : vector<8x8xf32>, vector<8x8xf32>, vector<8x8xf32> -> vector<8x8xf32>
    %90 = vector.extract_strided_slice %35 {offsets = [0, 24], sizes = [8, 8], strides = [1, 1]} : vector<16x96xf32> to vector<8x8xf32>
    %91 = vector.extract_strided_slice %35 {offsets = [0, 56], sizes = [8, 8], strides = [1, 1]} : vector<16x96xf32> to vector<8x8xf32>
    %92 = vector.extract_strided_slice %35 {offsets = [0, 88], sizes = [8, 8], strides = [1, 1]} : vector<16x96xf32> to vector<8x8xf32>
    %cst_31 = arith.constant dense<0.000000e+00> : vector<8x8xf32>
    %93 = tpu.matmul %90, %91, %cst_31 {dimension_numbers = #tpu.dot_dimension_numbers<[1], [1], [0], [0], [0, 0, 1, 0], [], []>} : vector<8x8xf32>, vector<8x8xf32>, vector<8x8xf32> -> vector<8x8xf32>
    %cst_32 = arith.constant 0.353553385 : f32
    %94 = vector.broadcast %cst_32 : f32 to vector<8x8xf32>
    %95 = arith.mulf %93, %94 : vector<8x8xf32>
    %96 = arith.addf %95, %5 : vector<8x8xf32>
    %cst_33 = arith.constant dense<0xFF800000> : vector<8xf32>
    %97 = vector.multi_reduction <maximumf>, %96, %cst_33 [1] : vector<8x8xf32> to vector<8xf32>
    %98 = vector.shape_cast %97 : vector<8xf32> to vector<8x1xf32>
    %99 = vector.broadcast %98 : vector<8x1xf32> to vector<8x8xf32>
    %100 = arith.subf %96, %99 : vector<8x8xf32>
    %101 = math.exp %100 : vector<8x8xf32>
    %cst_34 = arith.constant dense<0.000000e+00> : vector<8xf32>
    %102 = vector.multi_reduction <add>, %101, %cst_34 [1] : vector<8x8xf32> to vector<8xf32>
    %103 = vector.shape_cast %102 : vector<8xf32> to vector<8x1xf32>
    %104 = tpu.reciprocal %103 {approx = true} : vector<8x1xf32> -> vector<8x1xf32>
    %105 = vector.broadcast %104 : vector<8x1xf32> to vector<8x8xf32>
    %106 = arith.mulf %101, %105 : vector<8x8xf32>
    %cst_35 = arith.constant dense<0.000000e+00> : vector<8x8xf32>
    %107 = tpu.matmul %106, %92, %cst_35 {dimension_numbers = #tpu.dot_dimension_numbers<[1], [0], [0], [1], [0, 0, 1, 1], [], []>} : vector<8x8xf32>, vector<8x8xf32>, vector<8x8xf32> -> vector<8x8xf32>
    %108 = tpu.concatenate %53, %71, %89, %107 in 1 : vector<8x8xf32>, vector<8x8xf32>, vector<8x8xf32>, vector<8x8xf32> -> vector<8x32xf32>
    %109 = vector.extract_strided_slice %35 {offsets = [8, 0], sizes = [8, 8], strides = [1, 1]} : vector<16x96xf32> to vector<8x8xf32>
    %110 = vector.extract_strided_slice %35 {offsets = [8, 32], sizes = [8, 8], strides = [1, 1]} : vector<16x96xf32> to vector<8x8xf32>
    %111 = vector.extract_strided_slice %35 {offsets = [8, 64], sizes = [8, 8], strides = [1, 1]} : vector<16x96xf32> to vector<8x8xf32>
    %cst_36 = arith.constant dense<0.000000e+00> : vector<8x8xf32>
    %112 = tpu.matmul %109, %110, %cst_36 {dimension_numbers = #tpu.dot_dimension_numbers<[1], [1], [0], [0], [0, 0, 1, 0], [], []>} : vector<8x8xf32>, vector<8x8xf32>, vector<8x8xf32> -> vector<8x8xf32>
    %cst_37 = arith.constant 0.353553385 : f32
    %113 = vector.broadcast %cst_37 : f32 to vector<8x8xf32>
    %114 = arith.mulf %112, %113 : vector<8x8xf32>
    %115 = arith.addf %114, %5 : vector<8x8xf32>
    %cst_38 = arith.constant dense<0xFF800000> : vector<8xf32>
    %116 = vector.multi_reduction <maximumf>, %115, %cst_38 [1] : vector<8x8xf32> to vector<8xf32>
    %117 = vector.shape_cast %116 : vector<8xf32> to vector<8x1xf32>
    %118 = vector.broadcast %117 : vector<8x1xf32> to vector<8x8xf32>
    %119 = arith.subf %115, %118 : vector<8x8xf32>
    %120 = math.exp %119 : vector<8x8xf32>
    %cst_39 = arith.constant dense<0.000000e+00> : vector<8xf32>
    %121 = vector.multi_reduction <add>, %120, %cst_39 [1] : vector<8x8xf32> to vector<8xf32>
    %122 = vector.shape_cast %121 : vector<8xf32> to vector<8x1xf32>
    %123 = tpu.reciprocal %122 {approx = true} : vector<8x1xf32> -> vector<8x1xf32>
    %124 = vector.broadcast %123 : vector<8x1xf32> to vector<8x8xf32>
    %125 = arith.mulf %120, %124 : vector<8x8xf32>
    %cst_40 = arith.constant dense<0.000000e+00> : vector<8x8xf32>
    %126 = tpu.matmul %125, %111, %cst_40 {dimension_numbers = #tpu.dot_dimension_numbers<[1], [0], [0], [1], [0, 0, 1, 1], [], []>} : vector<8x8xf32>, vector<8x8xf32>, vector<8x8xf32> -> vector<8x8xf32>
    %127 = vector.extract_strided_slice %35 {offsets = [8, 8], sizes = [8, 8], strides = [1, 1]} : vector<16x96xf32> to vector<8x8xf32>
    %128 = vector.extract_strided_slice %35 {offsets = [8, 40], sizes = [8, 8], strides = [1, 1]} : vector<16x96xf32> to vector<8x8xf32>
    %129 = vector.extract_strided_slice %35 {offsets = [8, 72], sizes = [8, 8], strides = [1, 1]} : vector<16x96xf32> to vector<8x8xf32>
    %cst_41 = arith.constant dense<0.000000e+00> : vector<8x8xf32>
    %130 = tpu.matmul %127, %128, %cst_41 {dimension_numbers = #tpu.dot_dimension_numbers<[1], [1], [0], [0], [0, 0, 1, 0], [], []>} : vector<8x8xf32>, vector<8x8xf32>, vector<8x8xf32> -> vector<8x8xf32>
    %cst_42 = arith.constant 0.353553385 : f32
    %131 = vector.broadcast %cst_42 : f32 to vector<8x8xf32>
    %132 = arith.mulf %130, %131 : vector<8x8xf32>
    %133 = arith.addf %132, %5 : vector<8x8xf32>
    %cst_43 = arith.constant dense<0xFF800000> : vector<8xf32>
    %134 = vector.multi_reduction <maximumf>, %133, %cst_43 [1] : vector<8x8xf32> to vector<8xf32>
    %135 = vector.shape_cast %134 : vector<8xf32> to vector<8x1xf32>
    %136 = vector.broadcast %135 : vector<8x1xf32> to vector<8x8xf32>
    %137 = arith.subf %133, %136 : vector<8x8xf32>
    %138 = math.exp %137 : vector<8x8xf32>
    %cst_44 = arith.constant dense<0.000000e+00> : vector<8xf32>
    %139 = vector.multi_reduction <add>, %138, %cst_44 [1] : vector<8x8xf32> to vector<8xf32>
    %140 = vector.shape_cast %139 : vector<8xf32> to vector<8x1xf32>
    %141 = tpu.reciprocal %140 {approx = true} : vector<8x1xf32> -> vector<8x1xf32>
    %142 = vector.broadcast %141 : vector<8x1xf32> to vector<8x8xf32>
    %143 = arith.mulf %138, %142 : vector<8x8xf32>
    %cst_45 = arith.constant dense<0.000000e+00> : vector<8x8xf32>
    %144 = tpu.matmul %143, %129, %cst_45 {dimension_numbers = #tpu.dot_dimension_numbers<[1], [0], [0], [1], [0, 0, 1, 1], [], []>} : vector<8x8xf32>, vector<8x8xf32>, vector<8x8xf32> -> vector<8x8xf32>
    %145 = vector.extract_strided_slice %35 {offsets = [8, 16], sizes = [8, 8], strides = [1, 1]} : vector<16x96xf32> to vector<8x8xf32>
    %146 = vector.extract_strided_slice %35 {offsets = [8, 48], sizes = [8, 8], strides = [1, 1]} : vector<16x96xf32> to vector<8x8xf32>
    %147 = vector.extract_strided_slice %35 {offsets = [8, 80], sizes = [8, 8], strides = [1, 1]} : vector<16x96xf32> to vector<8x8xf32>
    %cst_46 = arith.constant dense<0.000000e+00> : vector<8x8xf32>
    %148 = tpu.matmul %145, %146, %cst_46 {dimension_numbers = #tpu.dot_dimension_numbers<[1], [1], [0], [0], [0, 0, 1, 0], [], []>} : vector<8x8xf32>, vector<8x8xf32>, vector<8x8xf32> -> vector<8x8xf32>
    %cst_47 = arith.constant 0.353553385 : f32
    %149 = vector.broadcast %cst_47 : f32 to vector<8x8xf32>
    %150 = arith.mulf %148, %149 : vector<8x8xf32>
    %151 = arith.addf %150, %5 : vector<8x8xf32>
    %cst_48 = arith.constant dense<0xFF800000> : vector<8xf32>
    %152 = vector.multi_reduction <maximumf>, %151, %cst_48 [1] : vector<8x8xf32> to vector<8xf32>
    %153 = vector.shape_cast %152 : vector<8xf32> to vector<8x1xf32>
    %154 = vector.broadcast %153 : vector<8x1xf32> to vector<8x8xf32>
    %155 = arith.subf %151, %154 : vector<8x8xf32>
    %156 = math.exp %155 : vector<8x8xf32>
    %cst_49 = arith.constant dense<0.000000e+00> : vector<8xf32>
    %157 = vector.multi_reduction <add>, %156, %cst_49 [1] : vector<8x8xf32> to vector<8xf32>
    %158 = vector.shape_cast %157 : vector<8xf32> to vector<8x1xf32>
    %159 = tpu.reciprocal %158 {approx = true} : vector<8x1xf32> -> vector<8x1xf32>
    %160 = vector.broadcast %159 : vector<8x1xf32> to vector<8x8xf32>
    %161 = arith.mulf %156, %160 : vector<8x8xf32>
    %cst_50 = arith.constant dense<0.000000e+00> : vector<8x8xf32>
    %162 = tpu.matmul %161, %147, %cst_50 {dimension_numbers = #tpu.dot_dimension_numbers<[1], [0], [0], [1], [0, 0, 1, 1], [], []>} : vector<8x8xf32>, vector<8x8xf32>, vector<8x8xf32> -> vector<8x8xf32>
    %163 = vector.extract_strided_slice %35 {offsets = [8, 24], sizes = [8, 8], strides = [1, 1]} : vector<16x96xf32> to vector<8x8xf32>
    %164 = vector.extract_strided_slice %35 {offsets = [8, 56], sizes = [8, 8], strides = [1, 1]} : vector<16x96xf32> to vector<8x8xf32>
    %165 = vector.extract_strided_slice %35 {offsets = [8, 88], sizes = [8, 8], strides = [1, 1]} : vector<16x96xf32> to vector<8x8xf32>
    %cst_51 = arith.constant dense<0.000000e+00> : vector<8x8xf32>
    %166 = tpu.matmul %163, %164, %cst_51 {dimension_numbers = #tpu.dot_dimension_numbers<[1], [1], [0], [0], [0, 0, 1, 0], [], []>} : vector<8x8xf32>, vector<8x8xf32>, vector<8x8xf32> -> vector<8x8xf32>
    %cst_52 = arith.constant 0.353553385 : f32
    %167 = vector.broadcast %cst_52 : f32 to vector<8x8xf32>
    %168 = arith.mulf %166, %167 : vector<8x8xf32>
    %169 = arith.addf %168, %5 : vector<8x8xf32>
    %cst_53 = arith.constant dense<0xFF800000> : vector<8xf32>
    %170 = vector.multi_reduction <maximumf>, %169, %cst_53 [1] : vector<8x8xf32> to vector<8xf32>
    %171 = vector.shape_cast %170 : vector<8xf32> to vector<8x1xf32>
    %172 = vector.broadcast %171 : vector<8x1xf32> to vector<8x8xf32>
    %173 = arith.subf %169, %172 : vector<8x8xf32>
    %174 = math.exp %173 : vector<8x8xf32>
    %cst_54 = arith.constant dense<0.000000e+00> : vector<8xf32>
    %175 = vector.multi_reduction <add>, %174, %cst_54 [1] : vector<8x8xf32> to vector<8xf32>
    %176 = vector.shape_cast %175 : vector<8xf32> to vector<8x1xf32>
    %177 = tpu.reciprocal %176 {approx = true} : vector<8x1xf32> -> vector<8x1xf32>
    %178 = vector.broadcast %177 : vector<8x1xf32> to vector<8x8xf32>
    %179 = arith.mulf %174, %178 : vector<8x8xf32>
    %cst_55 = arith.constant dense<0.000000e+00> : vector<8x8xf32>
    %180 = tpu.matmul %179, %165, %cst_55 {dimension_numbers = #tpu.dot_dimension_numbers<[1], [0], [0], [1], [0, 0, 1, 1], [], []>} : vector<8x8xf32>, vector<8x8xf32>, vector<8x8xf32> -> vector<8x8xf32>
    %181 = tpu.concatenate %126, %144, %162, %180 in 1 : vector<8x8xf32>, vector<8x8xf32>, vector<8x8xf32>, vector<8x8xf32> -> vector<8x32xf32>
    %182 = tpu.concatenate %108, %181 in 0 : vector<8x32xf32>, vector<8x32xf32> -> vector<16x32xf32>
    %c0_56 = arith.constant 0 : index
    %c0_57 = arith.constant 0 : index
    %c0_58 = arith.constant 0 : index
    %183 = vector.load %arg4[%c0_56, %c0_57, %c0_58] : memref<2x33x32xf32, #tpu.memory_space<vmem>>, vector<1x33x32xf32>
    %184 = vector.shape_cast %183 : vector<1x33x32xf32> to vector<33x32xf32>
    %185 = vector.extract_strided_slice %184 {offsets = [0, 0], sizes = [32, 32], strides = [1, 1]} : vector<33x32xf32> to vector<32x32xf32>
    %cst_59 = arith.constant dense<0.000000e+00> : vector<16x32xf32>
    %186 = tpu.matmul %182, %185, %cst_59 {dimension_numbers = #tpu.dot_dimension_numbers<[1], [0], [0], [1], [0, 0, 1, 1], [], []>} : vector<16x32xf32>, vector<32x32xf32>, vector<16x32xf32> -> vector<16x32xf32>
    %187 = vector.extract_strided_slice %184 {offsets = [32, 0], sizes = [1, 32], strides = [1, 1]} : vector<33x32xf32> to vector<1x32xf32>
    %188 = vector.broadcast %187 : vector<1x32xf32> to vector<16x32xf32>
    %189 = arith.addf %186, %188 : vector<16x32xf32>
    %190 = arith.addf %10, %189 : vector<16x32xf32>
    %cst_60 = arith.constant dense<0.000000e+00> : vector<16xf32>
    %191 = vector.multi_reduction <add>, %190, %cst_60 [1] : vector<16x32xf32> to vector<16xf32>
    %192 = vector.shape_cast %191 : vector<16xf32> to vector<16x1xf32>
    %cst_61 = arith.constant 3.200000e+01 : f32
    %193 = vector.broadcast %cst_61 : f32 to vector<16x1xf32>
    %194 = arith.divf %192, %193 : vector<16x1xf32>
    %195 = vector.broadcast %194 : vector<16x1xf32> to vector<16x32xf32>
    %196 = arith.subf %190, %195 : vector<16x32xf32>
    %197 = arith.mulf %196, %196 : vector<16x32xf32>
    %cst_62 = arith.constant dense<0.000000e+00> : vector<16xf32>
    %198 = vector.multi_reduction <add>, %197, %cst_62 [1] : vector<16x32xf32> to vector<16xf32>
    %199 = vector.shape_cast %198 : vector<16xf32> to vector<16x1xf32>
    %cst_63 = arith.constant 3.200000e+01 : f32
    %200 = vector.broadcast %cst_63 : f32 to vector<16x1xf32>
    %201 = arith.divf %199, %200 : vector<16x1xf32>
    %202 = vector.broadcast %194 : vector<16x1xf32> to vector<16x32xf32>
    %203 = arith.subf %190, %202 : vector<16x32xf32>
    %cst_64 = arith.constant 9.99999974E-6 : f32
    %204 = vector.broadcast %cst_64 : f32 to vector<16x1xf32>
    %205 = arith.addf %201, %204 : vector<16x1xf32>
    %206 = math.rsqrt %205 : vector<16x1xf32>
    %207 = vector.broadcast %206 : vector<16x1xf32> to vector<16x32xf32>
    %208 = arith.mulf %203, %207 : vector<16x32xf32>
    %c0_65 = arith.constant 0 : index
    %c0_66 = arith.constant 0 : index
    %c0_67 = arith.constant 0 : index
    %209 = vector.load %arg5[%c0_65, %c0_66, %c0_67] : memref<2x33x128xf32, #tpu.memory_space<vmem>>, vector<1x33x128xf32>
    %210 = vector.shape_cast %209 : vector<1x33x128xf32> to vector<33x128xf32>
    %211 = vector.extract_strided_slice %210 {offsets = [0, 0], sizes = [32, 128], strides = [1, 1]} : vector<33x128xf32> to vector<32x128xf32>
    %cst_68 = arith.constant dense<0.000000e+00> : vector<16x128xf32>
    %212 = tpu.matmul %208, %211, %cst_68 {dimension_numbers = #tpu.dot_dimension_numbers<[1], [0], [0], [1], [0, 0, 1, 1], [], []>} : vector<16x32xf32>, vector<32x128xf32>, vector<16x128xf32> -> vector<16x128xf32>
    %213 = vector.extract_strided_slice %210 {offsets = [32, 0], sizes = [1, 128], strides = [1, 1]} : vector<33x128xf32> to vector<1x128xf32>
    %214 = vector.broadcast %213 : vector<1x128xf32> to vector<16x128xf32>
    %215 = arith.addf %212, %214 : vector<16x128xf32>
    %216 = arith.mulf %215, %215 : vector<16x128xf32>
    %217 = arith.mulf %215, %216 : vector<16x128xf32>
    %cst_69 = arith.constant 4.471500e-02 : f32
    %218 = vector.broadcast %cst_69 : f32 to vector<16x128xf32>
    %219 = arith.mulf %218, %217 : vector<16x128xf32>
    %220 = arith.addf %215, %219 : vector<16x128xf32>
    %cst_70 = arith.constant 0.797884583 : f32
    %221 = vector.broadcast %cst_70 : f32 to vector<16x128xf32>
    %222 = arith.mulf %221, %220 : vector<16x128xf32>
    %223 = math.tanh %222 : vector<16x128xf32>
    %cst_71 = arith.constant 1.000000e+00 : f32
    %224 = vector.broadcast %cst_71 : f32 to vector<16x128xf32>
    %225 = arith.addf %224, %223 : vector<16x128xf32>
    %cst_72 = arith.constant 5.000000e-01 : f32
    %226 = vector.broadcast %cst_72 : f32 to vector<16x128xf32>
    %227 = arith.mulf %226, %225 : vector<16x128xf32>
    %228 = arith.mulf %215, %227 : vector<16x128xf32>
    %c0_73 = arith.constant 0 : index
    %c0_74 = arith.constant 0 : index
    %c0_75 = arith.constant 0 : index
    %229 = vector.load %arg6[%c0_73, %c0_74, %c0_75] : memref<2x129x32xf32, #tpu.memory_space<vmem>>, vector<1x129x32xf32>
    %230 = vector.shape_cast %229 : vector<1x129x32xf32> to vector<129x32xf32>
    %231 = vector.extract_strided_slice %230 {offsets = [0, 0], sizes = [128, 32], strides = [1, 1]} : vector<129x32xf32> to vector<128x32xf32>
    %cst_76 = arith.constant dense<0.000000e+00> : vector<16x32xf32>
    %232 = tpu.matmul %228, %231, %cst_76 {dimension_numbers = #tpu.dot_dimension_numbers<[1], [0], [0], [1], [0, 0, 1, 1], [], []>} : vector<16x128xf32>, vector<128x32xf32>, vector<16x32xf32> -> vector<16x32xf32>
    %233 = vector.extract_strided_slice %230 {offsets = [128, 0], sizes = [1, 32], strides = [1, 1]} : vector<129x32xf32> to vector<1x32xf32>
    %234 = vector.broadcast %233 : vector<1x32xf32> to vector<16x32xf32>
    %235 = arith.addf %232, %234 : vector<16x32xf32>
    %236 = arith.addf %190, %235 : vector<16x32xf32>
    %cst_77 = arith.constant dense<0.000000e+00> : vector<16xf32>
    %237 = vector.multi_reduction <add>, %236, %cst_77 [1] : vector<16x32xf32> to vector<16xf32>
    %238 = vector.shape_cast %237 : vector<16xf32> to vector<16x1xf32>
    %cst_78 = arith.constant 3.200000e+01 : f32
    %239 = vector.broadcast %cst_78 : f32 to vector<16x1xf32>
    %240 = arith.divf %238, %239 : vector<16x1xf32>
    %241 = vector.broadcast %240 : vector<16x1xf32> to vector<16x32xf32>
    %242 = arith.subf %236, %241 : vector<16x32xf32>
    %243 = arith.mulf %242, %242 : vector<16x32xf32>
    %cst_79 = arith.constant dense<0.000000e+00> : vector<16xf32>
    %244 = vector.multi_reduction <add>, %243, %cst_79 [1] : vector<16x32xf32> to vector<16xf32>
    %245 = vector.shape_cast %244 : vector<16xf32> to vector<16x1xf32>
    %cst_80 = arith.constant 3.200000e+01 : f32
    %246 = vector.broadcast %cst_80 : f32 to vector<16x1xf32>
    %247 = arith.divf %245, %246 : vector<16x1xf32>
    %248 = vector.broadcast %240 : vector<16x1xf32> to vector<16x32xf32>
    %249 = arith.subf %236, %248 : vector<16x32xf32>
    %cst_81 = arith.constant 9.99999974E-6 : f32
    %250 = vector.broadcast %cst_81 : f32 to vector<16x1xf32>
    %251 = arith.addf %247, %250 : vector<16x1xf32>
    %252 = math.rsqrt %251 : vector<16x1xf32>
    %253 = vector.broadcast %252 : vector<16x1xf32> to vector<16x32xf32>
    %254 = arith.mulf %249, %253 : vector<16x32xf32>
    %c1 = arith.constant 1 : index
    %c0_82 = arith.constant 0 : index
    %c0_83 = arith.constant 0 : index
    %255 = vector.load %arg3[%c1, %c0_82, %c0_83] : memref<2x33x96xf32, #tpu.memory_space<vmem>>, vector<1x33x96xf32>
    %256 = vector.shape_cast %255 : vector<1x33x96xf32> to vector<33x96xf32>
    %257 = vector.extract_strided_slice %256 {offsets = [0, 0], sizes = [32, 96], strides = [1, 1]} : vector<33x96xf32> to vector<32x96xf32>
    %cst_84 = arith.constant dense<0.000000e+00> : vector<16x96xf32>
    %258 = tpu.matmul %254, %257, %cst_84 {dimension_numbers = #tpu.dot_dimension_numbers<[1], [0], [0], [1], [0, 0, 1, 1], [], []>} : vector<16x32xf32>, vector<32x96xf32>, vector<16x96xf32> -> vector<16x96xf32>
    %259 = vector.extract_strided_slice %256 {offsets = [32, 0], sizes = [1, 96], strides = [1, 1]} : vector<33x96xf32> to vector<1x96xf32>
    %260 = vector.broadcast %259 : vector<1x96xf32> to vector<16x96xf32>
    %261 = arith.addf %258, %260 : vector<16x96xf32>
    %262 = vector.extract_strided_slice %261 {offsets = [0, 0], sizes = [8, 8], strides = [1, 1]} : vector<16x96xf32> to vector<8x8xf32>
    %263 = vector.extract_strided_slice %261 {offsets = [0, 32], sizes = [8, 8], strides = [1, 1]} : vector<16x96xf32> to vector<8x8xf32>
    %264 = vector.extract_strided_slice %261 {offsets = [0, 64], sizes = [8, 8], strides = [1, 1]} : vector<16x96xf32> to vector<8x8xf32>
    %cst_85 = arith.constant dense<0.000000e+00> : vector<8x8xf32>
    %265 = tpu.matmul %262, %263, %cst_85 {dimension_numbers = #tpu.dot_dimension_numbers<[1], [1], [0], [0], [0, 0, 1, 0], [], []>} : vector<8x8xf32>, vector<8x8xf32>, vector<8x8xf32> -> vector<8x8xf32>
    %cst_86 = arith.constant 0.353553385 : f32
    %266 = vector.broadcast %cst_86 : f32 to vector<8x8xf32>
    %267 = arith.mulf %265, %266 : vector<8x8xf32>
    %268 = arith.addf %267, %5 : vector<8x8xf32>
    %cst_87 = arith.constant dense<0xFF800000> : vector<8xf32>
    %269 = vector.multi_reduction <maximumf>, %268, %cst_87 [1] : vector<8x8xf32> to vector<8xf32>
    %270 = vector.shape_cast %269 : vector<8xf32> to vector<8x1xf32>
    %271 = vector.broadcast %270 : vector<8x1xf32> to vector<8x8xf32>
    %272 = arith.subf %268, %271 : vector<8x8xf32>
    %273 = math.exp %272 : vector<8x8xf32>
    %cst_88 = arith.constant dense<0.000000e+00> : vector<8xf32>
    %274 = vector.multi_reduction <add>, %273, %cst_88 [1] : vector<8x8xf32> to vector<8xf32>
    %275 = vector.shape_cast %274 : vector<8xf32> to vector<8x1xf32>
    %276 = tpu.reciprocal %275 {approx = true} : vector<8x1xf32> -> vector<8x1xf32>
    %277 = vector.broadcast %276 : vector<8x1xf32> to vector<8x8xf32>
    %278 = arith.mulf %273, %277 : vector<8x8xf32>
    %cst_89 = arith.constant dense<0.000000e+00> : vector<8x8xf32>
    %279 = tpu.matmul %278, %264, %cst_89 {dimension_numbers = #tpu.dot_dimension_numbers<[1], [0], [0], [1], [0, 0, 1, 1], [], []>} : vector<8x8xf32>, vector<8x8xf32>, vector<8x8xf32> -> vector<8x8xf32>
    %280 = vector.extract_strided_slice %261 {offsets = [0, 8], sizes = [8, 8], strides = [1, 1]} : vector<16x96xf32> to vector<8x8xf32>
    %281 = vector.extract_strided_slice %261 {offsets = [0, 40], sizes = [8, 8], strides = [1, 1]} : vector<16x96xf32> to vector<8x8xf32>
    %282 = vector.extract_strided_slice %261 {offsets = [0, 72], sizes = [8, 8], strides = [1, 1]} : vector<16x96xf32> to vector<8x8xf32>
    %cst_90 = arith.constant dense<0.000000e+00> : vector<8x8xf32>
    %283 = tpu.matmul %280, %281, %cst_90 {dimension_numbers = #tpu.dot_dimension_numbers<[1], [1], [0], [0], [0, 0, 1, 0], [], []>} : vector<8x8xf32>, vector<8x8xf32>, vector<8x8xf32> -> vector<8x8xf32>
    %cst_91 = arith.constant 0.353553385 : f32
    %284 = vector.broadcast %cst_91 : f32 to vector<8x8xf32>
    %285 = arith.mulf %283, %284 : vector<8x8xf32>
    %286 = arith.addf %285, %5 : vector<8x8xf32>
    %cst_92 = arith.constant dense<0xFF800000> : vector<8xf32>
    %287 = vector.multi_reduction <maximumf>, %286, %cst_92 [1] : vector<8x8xf32> to vector<8xf32>
    %288 = vector.shape_cast %287 : vector<8xf32> to vector<8x1xf32>
    %289 = vector.broadcast %288 : vector<8x1xf32> to vector<8x8xf32>
    %290 = arith.subf %286, %289 : vector<8x8xf32>
    %291 = math.exp %290 : vector<8x8xf32>
    %cst_93 = arith.constant dense<0.000000e+00> : vector<8xf32>
    %292 = vector.multi_reduction <add>, %291, %cst_93 [1] : vector<8x8xf32> to vector<8xf32>
    %293 = vector.shape_cast %292 : vector<8xf32> to vector<8x1xf32>
    %294 = tpu.reciprocal %293 {approx = true} : vector<8x1xf32> -> vector<8x1xf32>
    %295 = vector.broadcast %294 : vector<8x1xf32> to vector<8x8xf32>
    %296 = arith.mulf %291, %295 : vector<8x8xf32>
    %cst_94 = arith.constant dense<0.000000e+00> : vector<8x8xf32>
    %297 = tpu.matmul %296, %282, %cst_94 {dimension_numbers = #tpu.dot_dimension_numbers<[1], [0], [0], [1], [0, 0, 1, 1], [], []>} : vector<8x8xf32>, vector<8x8xf32>, vector<8x8xf32> -> vector<8x8xf32>
    %298 = vector.extract_strided_slice %261 {offsets = [0, 16], sizes = [8, 8], strides = [1, 1]} : vector<16x96xf32> to vector<8x8xf32>
    %299 = vector.extract_strided_slice %261 {offsets = [0, 48], sizes = [8, 8], strides = [1, 1]} : vector<16x96xf32> to vector<8x8xf32>
    %300 = vector.extract_strided_slice %261 {offsets = [0, 80], sizes = [8, 8], strides = [1, 1]} : vector<16x96xf32> to vector<8x8xf32>
    %cst_95 = arith.constant dense<0.000000e+00> : vector<8x8xf32>
    %301 = tpu.matmul %298, %299, %cst_95 {dimension_numbers = #tpu.dot_dimension_numbers<[1], [1], [0], [0], [0, 0, 1, 0], [], []>} : vector<8x8xf32>, vector<8x8xf32>, vector<8x8xf32> -> vector<8x8xf32>
    %cst_96 = arith.constant 0.353553385 : f32
    %302 = vector.broadcast %cst_96 : f32 to vector<8x8xf32>
    %303 = arith.mulf %301, %302 : vector<8x8xf32>
    %304 = arith.addf %303, %5 : vector<8x8xf32>
    %cst_97 = arith.constant dense<0xFF800000> : vector<8xf32>
    %305 = vector.multi_reduction <maximumf>, %304, %cst_97 [1] : vector<8x8xf32> to vector<8xf32>
    %306 = vector.shape_cast %305 : vector<8xf32> to vector<8x1xf32>
    %307 = vector.broadcast %306 : vector<8x1xf32> to vector<8x8xf32>
    %308 = arith.subf %304, %307 : vector<8x8xf32>
    %309 = math.exp %308 : vector<8x8xf32>
    %cst_98 = arith.constant dense<0.000000e+00> : vector<8xf32>
    %310 = vector.multi_reduction <add>, %309, %cst_98 [1] : vector<8x8xf32> to vector<8xf32>
    %311 = vector.shape_cast %310 : vector<8xf32> to vector<8x1xf32>
    %312 = tpu.reciprocal %311 {approx = true} : vector<8x1xf32> -> vector<8x1xf32>
    %313 = vector.broadcast %312 : vector<8x1xf32> to vector<8x8xf32>
    %314 = arith.mulf %309, %313 : vector<8x8xf32>
    %cst_99 = arith.constant dense<0.000000e+00> : vector<8x8xf32>
    %315 = tpu.matmul %314, %300, %cst_99 {dimension_numbers = #tpu.dot_dimension_numbers<[1], [0], [0], [1], [0, 0, 1, 1], [], []>} : vector<8x8xf32>, vector<8x8xf32>, vector<8x8xf32> -> vector<8x8xf32>
    %316 = vector.extract_strided_slice %261 {offsets = [0, 24], sizes = [8, 8], strides = [1, 1]} : vector<16x96xf32> to vector<8x8xf32>
    %317 = vector.extract_strided_slice %261 {offsets = [0, 56], sizes = [8, 8], strides = [1, 1]} : vector<16x96xf32> to vector<8x8xf32>
    %318 = vector.extract_strided_slice %261 {offsets = [0, 88], sizes = [8, 8], strides = [1, 1]} : vector<16x96xf32> to vector<8x8xf32>
    %cst_100 = arith.constant dense<0.000000e+00> : vector<8x8xf32>
    %319 = tpu.matmul %316, %317, %cst_100 {dimension_numbers = #tpu.dot_dimension_numbers<[1], [1], [0], [0], [0, 0, 1, 0], [], []>} : vector<8x8xf32>, vector<8x8xf32>, vector<8x8xf32> -> vector<8x8xf32>
    %cst_101 = arith.constant 0.353553385 : f32
    %320 = vector.broadcast %cst_101 : f32 to vector<8x8xf32>
    %321 = arith.mulf %319, %320 : vector<8x8xf32>
    %322 = arith.addf %321, %5 : vector<8x8xf32>
    %cst_102 = arith.constant dense<0xFF800000> : vector<8xf32>
    %323 = vector.multi_reduction <maximumf>, %322, %cst_102 [1] : vector<8x8xf32> to vector<8xf32>
    %324 = vector.shape_cast %323 : vector<8xf32> to vector<8x1xf32>
    %325 = vector.broadcast %324 : vector<8x1xf32> to vector<8x8xf32>
    %326 = arith.subf %322, %325 : vector<8x8xf32>
    %327 = math.exp %326 : vector<8x8xf32>
    %cst_103 = arith.constant dense<0.000000e+00> : vector<8xf32>
    %328 = vector.multi_reduction <add>, %327, %cst_103 [1] : vector<8x8xf32> to vector<8xf32>
    %329 = vector.shape_cast %328 : vector<8xf32> to vector<8x1xf32>
    %330 = tpu.reciprocal %329 {approx = true} : vector<8x1xf32> -> vector<8x1xf32>
    %331 = vector.broadcast %330 : vector<8x1xf32> to vector<8x8xf32>
    %332 = arith.mulf %327, %331 : vector<8x8xf32>
    %cst_104 = arith.constant dense<0.000000e+00> : vector<8x8xf32>
    %333 = tpu.matmul %332, %318, %cst_104 {dimension_numbers = #tpu.dot_dimension_numbers<[1], [0], [0], [1], [0, 0, 1, 1], [], []>} : vector<8x8xf32>, vector<8x8xf32>, vector<8x8xf32> -> vector<8x8xf32>
    %334 = tpu.concatenate %279, %297, %315, %333 in 1 : vector<8x8xf32>, vector<8x8xf32>, vector<8x8xf32>, vector<8x8xf32> -> vector<8x32xf32>
    %335 = vector.extract_strided_slice %261 {offsets = [8, 0], sizes = [8, 8], strides = [1, 1]} : vector<16x96xf32> to vector<8x8xf32>
    %336 = vector.extract_strided_slice %261 {offsets = [8, 32], sizes = [8, 8], strides = [1, 1]} : vector<16x96xf32> to vector<8x8xf32>
    %337 = vector.extract_strided_slice %261 {offsets = [8, 64], sizes = [8, 8], strides = [1, 1]} : vector<16x96xf32> to vector<8x8xf32>
    %cst_105 = arith.constant dense<0.000000e+00> : vector<8x8xf32>
    %338 = tpu.matmul %335, %336, %cst_105 {dimension_numbers = #tpu.dot_dimension_numbers<[1], [1], [0], [0], [0, 0, 1, 0], [], []>} : vector<8x8xf32>, vector<8x8xf32>, vector<8x8xf32> -> vector<8x8xf32>
    %cst_106 = arith.constant 0.353553385 : f32
    %339 = vector.broadcast %cst_106 : f32 to vector<8x8xf32>
    %340 = arith.mulf %338, %339 : vector<8x8xf32>
    %341 = arith.addf %340, %5 : vector<8x8xf32>
    %cst_107 = arith.constant dense<0xFF800000> : vector<8xf32>
    %342 = vector.multi_reduction <maximumf>, %341, %cst_107 [1] : vector<8x8xf32> to vector<8xf32>
    %343 = vector.shape_cast %342 : vector<8xf32> to vector<8x1xf32>
    %344 = vector.broadcast %343 : vector<8x1xf32> to vector<8x8xf32>
    %345 = arith.subf %341, %344 : vector<8x8xf32>
    %346 = math.exp %345 : vector<8x8xf32>
    %cst_108 = arith.constant dense<0.000000e+00> : vector<8xf32>
    %347 = vector.multi_reduction <add>, %346, %cst_108 [1] : vector<8x8xf32> to vector<8xf32>
    %348 = vector.shape_cast %347 : vector<8xf32> to vector<8x1xf32>
    %349 = tpu.reciprocal %348 {approx = true} : vector<8x1xf32> -> vector<8x1xf32>
    %350 = vector.broadcast %349 : vector<8x1xf32> to vector<8x8xf32>
    %351 = arith.mulf %346, %350 : vector<8x8xf32>
    %cst_109 = arith.constant dense<0.000000e+00> : vector<8x8xf32>
    %352 = tpu.matmul %351, %337, %cst_109 {dimension_numbers = #tpu.dot_dimension_numbers<[1], [0], [0], [1], [0, 0, 1, 1], [], []>} : vector<8x8xf32>, vector<8x8xf32>, vector<8x8xf32> -> vector<8x8xf32>
    %353 = vector.extract_strided_slice %261 {offsets = [8, 8], sizes = [8, 8], strides = [1, 1]} : vector<16x96xf32> to vector<8x8xf32>
    %354 = vector.extract_strided_slice %261 {offsets = [8, 40], sizes = [8, 8], strides = [1, 1]} : vector<16x96xf32> to vector<8x8xf32>
    %355 = vector.extract_strided_slice %261 {offsets = [8, 72], sizes = [8, 8], strides = [1, 1]} : vector<16x96xf32> to vector<8x8xf32>
    %cst_110 = arith.constant dense<0.000000e+00> : vector<8x8xf32>
    %356 = tpu.matmul %353, %354, %cst_110 {dimension_numbers = #tpu.dot_dimension_numbers<[1], [1], [0], [0], [0, 0, 1, 0], [], []>} : vector<8x8xf32>, vector<8x8xf32>, vector<8x8xf32> -> vector<8x8xf32>
    %cst_111 = arith.constant 0.353553385 : f32
    %357 = vector.broadcast %cst_111 : f32 to vector<8x8xf32>
    %358 = arith.mulf %356, %357 : vector<8x8xf32>
    %359 = arith.addf %358, %5 : vector<8x8xf32>
    %cst_112 = arith.constant dense<0xFF800000> : vector<8xf32>
    %360 = vector.multi_reduction <maximumf>, %359, %cst_112 [1] : vector<8x8xf32> to vector<8xf32>
    %361 = vector.shape_cast %360 : vector<8xf32> to vector<8x1xf32>
    %362 = vector.broadcast %361 : vector<8x1xf32> to vector<8x8xf32>
    %363 = arith.subf %359, %362 : vector<8x8xf32>
    %364 = math.exp %363 : vector<8x8xf32>
    %cst_113 = arith.constant dense<0.000000e+00> : vector<8xf32>
    %365 = vector.multi_reduction <add>, %364, %cst_113 [1] : vector<8x8xf32> to vector<8xf32>
    %366 = vector.shape_cast %365 : vector<8xf32> to vector<8x1xf32>
    %367 = tpu.reciprocal %366 {approx = true} : vector<8x1xf32> -> vector<8x1xf32>
    %368 = vector.broadcast %367 : vector<8x1xf32> to vector<8x8xf32>
    %369 = arith.mulf %364, %368 : vector<8x8xf32>
    %cst_114 = arith.constant dense<0.000000e+00> : vector<8x8xf32>
    %370 = tpu.matmul %369, %355, %cst_114 {dimension_numbers = #tpu.dot_dimension_numbers<[1], [0], [0], [1], [0, 0, 1, 1], [], []>} : vector<8x8xf32>, vector<8x8xf32>, vector<8x8xf32> -> vector<8x8xf32>
    %371 = vector.extract_strided_slice %261 {offsets = [8, 16], sizes = [8, 8], strides = [1, 1]} : vector<16x96xf32> to vector<8x8xf32>
    %372 = vector.extract_strided_slice %261 {offsets = [8, 48], sizes = [8, 8], strides = [1, 1]} : vector<16x96xf32> to vector<8x8xf32>
    %373 = vector.extract_strided_slice %261 {offsets = [8, 80], sizes = [8, 8], strides = [1, 1]} : vector<16x96xf32> to vector<8x8xf32>
    %cst_115 = arith.constant dense<0.000000e+00> : vector<8x8xf32>
    %374 = tpu.matmul %371, %372, %cst_115 {dimension_numbers = #tpu.dot_dimension_numbers<[1], [1], [0], [0], [0, 0, 1, 0], [], []>} : vector<8x8xf32>, vector<8x8xf32>, vector<8x8xf32> -> vector<8x8xf32>
    %cst_116 = arith.constant 0.353553385 : f32
    %375 = vector.broadcast %cst_116 : f32 to vector<8x8xf32>
    %376 = arith.mulf %374, %375 : vector<8x8xf32>
    %377 = arith.addf %376, %5 : vector<8x8xf32>
    %cst_117 = arith.constant dense<0xFF800000> : vector<8xf32>
    %378 = vector.multi_reduction <maximumf>, %377, %cst_117 [1] : vector<8x8xf32> to vector<8xf32>
    %379 = vector.shape_cast %378 : vector<8xf32> to vector<8x1xf32>
    %380 = vector.broadcast %379 : vector<8x1xf32> to vector<8x8xf32>
    %381 = arith.subf %377, %380 : vector<8x8xf32>
    %382 = math.exp %381 : vector<8x8xf32>
    %cst_118 = arith.constant dense<0.000000e+00> : vector<8xf32>
    %383 = vector.multi_reduction <add>, %382, %cst_118 [1] : vector<8x8xf32> to vector<8xf32>
    %384 = vector.shape_cast %383 : vector<8xf32> to vector<8x1xf32>
    %385 = tpu.reciprocal %384 {approx = true} : vector<8x1xf32> -> vector<8x1xf32>
    %386 = vector.broadcast %385 : vector<8x1xf32> to vector<8x8xf32>
    %387 = arith.mulf %382, %386 : vector<8x8xf32>
    %cst_119 = arith.constant dense<0.000000e+00> : vector<8x8xf32>
    %388 = tpu.matmul %387, %373, %cst_119 {dimension_numbers = #tpu.dot_dimension_numbers<[1], [0], [0], [1], [0, 0, 1, 1], [], []>} : vector<8x8xf32>, vector<8x8xf32>, vector<8x8xf32> -> vector<8x8xf32>
    %389 = vector.extract_strided_slice %261 {offsets = [8, 24], sizes = [8, 8], strides = [1, 1]} : vector<16x96xf32> to vector<8x8xf32>
    %390 = vector.extract_strided_slice %261 {offsets = [8, 56], sizes = [8, 8], strides = [1, 1]} : vector<16x96xf32> to vector<8x8xf32>
    %391 = vector.extract_strided_slice %261 {offsets = [8, 88], sizes = [8, 8], strides = [1, 1]} : vector<16x96xf32> to vector<8x8xf32>
    %cst_120 = arith.constant dense<0.000000e+00> : vector<8x8xf32>
    %392 = tpu.matmul %389, %390, %cst_120 {dimension_numbers = #tpu.dot_dimension_numbers<[1], [1], [0], [0], [0, 0, 1, 0], [], []>} : vector<8x8xf32>, vector<8x8xf32>, vector<8x8xf32> -> vector<8x8xf32>
    %cst_121 = arith.constant 0.353553385 : f32
    %393 = vector.broadcast %cst_121 : f32 to vector<8x8xf32>
    %394 = arith.mulf %392, %393 : vector<8x8xf32>
    %395 = arith.addf %394, %5 : vector<8x8xf32>
    %cst_122 = arith.constant dense<0xFF800000> : vector<8xf32>
    %396 = vector.multi_reduction <maximumf>, %395, %cst_122 [1] : vector<8x8xf32> to vector<8xf32>
    %397 = vector.shape_cast %396 : vector<8xf32> to vector<8x1xf32>
    %398 = vector.broadcast %397 : vector<8x1xf32> to vector<8x8xf32>
    %399 = arith.subf %395, %398 : vector<8x8xf32>
    %400 = math.exp %399 : vector<8x8xf32>
    %cst_123 = arith.constant dense<0.000000e+00> : vector<8xf32>
    %401 = vector.multi_reduction <add>, %400, %cst_123 [1] : vector<8x8xf32> to vector<8xf32>
    %402 = vector.shape_cast %401 : vector<8xf32> to vector<8x1xf32>
    %403 = tpu.reciprocal %402 {approx = true} : vector<8x1xf32> -> vector<8x1xf32>
    %404 = vector.broadcast %403 : vector<8x1xf32> to vector<8x8xf32>
    %405 = arith.mulf %400, %404 : vector<8x8xf32>
    %cst_124 = arith.constant dense<0.000000e+00> : vector<8x8xf32>
    %406 = tpu.matmul %405, %391, %cst_124 {dimension_numbers = #tpu.dot_dimension_numbers<[1], [0], [0], [1], [0, 0, 1, 1], [], []>} : vector<8x8xf32>, vector<8x8xf32>, vector<8x8xf32> -> vector<8x8xf32>
    %407 = tpu.concatenate %352, %370, %388, %406 in 1 : vector<8x8xf32>, vector<8x8xf32>, vector<8x8xf32>, vector<8x8xf32> -> vector<8x32xf32>
    %408 = tpu.concatenate %334, %407 in 0 : vector<8x32xf32>, vector<8x32xf32> -> vector<16x32xf32>
    %c1_125 = arith.constant 1 : index
    %c0_126 = arith.constant 0 : index
    %c0_127 = arith.constant 0 : index
    %409 = vector.load %arg4[%c1_125, %c0_126, %c0_127] : memref<2x33x32xf32, #tpu.memory_space<vmem>>, vector<1x33x32xf32>
    %410 = vector.shape_cast %409 : vector<1x33x32xf32> to vector<33x32xf32>
    %411 = vector.extract_strided_slice %410 {offsets = [0, 0], sizes = [32, 32], strides = [1, 1]} : vector<33x32xf32> to vector<32x32xf32>
    %cst_128 = arith.constant dense<0.000000e+00> : vector<16x32xf32>
    %412 = tpu.matmul %408, %411, %cst_128 {dimension_numbers = #tpu.dot_dimension_numbers<[1], [0], [0], [1], [0, 0, 1, 1], [], []>} : vector<16x32xf32>, vector<32x32xf32>, vector<16x32xf32> -> vector<16x32xf32>
    %413 = vector.extract_strided_slice %410 {offsets = [32, 0], sizes = [1, 32], strides = [1, 1]} : vector<33x32xf32> to vector<1x32xf32>
    %414 = vector.broadcast %413 : vector<1x32xf32> to vector<16x32xf32>
    %415 = arith.addf %412, %414 : vector<16x32xf32>
    %416 = arith.addf %236, %415 : vector<16x32xf32>
    %cst_129 = arith.constant dense<0.000000e+00> : vector<16xf32>
    %417 = vector.multi_reduction <add>, %416, %cst_129 [1] : vector<16x32xf32> to vector<16xf32>
    %418 = vector.shape_cast %417 : vector<16xf32> to vector<16x1xf32>
    %cst_130 = arith.constant 3.200000e+01 : f32
    %419 = vector.broadcast %cst_130 : f32 to vector<16x1xf32>
    %420 = arith.divf %418, %419 : vector<16x1xf32>
    %421 = vector.broadcast %420 : vector<16x1xf32> to vector<16x32xf32>
    %422 = arith.subf %416, %421 : vector<16x32xf32>
    %423 = arith.mulf %422, %422 : vector<16x32xf32>
    %cst_131 = arith.constant dense<0.000000e+00> : vector<16xf32>
    %424 = vector.multi_reduction <add>, %423, %cst_131 [1] : vector<16x32xf32> to vector<16xf32>
    %425 = vector.shape_cast %424 : vector<16xf32> to vector<16x1xf32>
    %cst_132 = arith.constant 3.200000e+01 : f32
    %426 = vector.broadcast %cst_132 : f32 to vector<16x1xf32>
    %427 = arith.divf %425, %426 : vector<16x1xf32>
    %428 = vector.broadcast %420 : vector<16x1xf32> to vector<16x32xf32>
    %429 = arith.subf %416, %428 : vector<16x32xf32>
    %cst_133 = arith.constant 9.99999974E-6 : f32
    %430 = vector.broadcast %cst_133 : f32 to vector<16x1xf32>
    %431 = arith.addf %427, %430 : vector<16x1xf32>
    %432 = math.rsqrt %431 : vector<16x1xf32>
    %433 = vector.broadcast %432 : vector<16x1xf32> to vector<16x32xf32>
    %434 = arith.mulf %429, %433 : vector<16x32xf32>
    %c1_134 = arith.constant 1 : index
    %c0_135 = arith.constant 0 : index
    %c0_136 = arith.constant 0 : index
    %435 = vector.load %arg5[%c1_134, %c0_135, %c0_136] : memref<2x33x128xf32, #tpu.memory_space<vmem>>, vector<1x33x128xf32>
    %436 = vector.shape_cast %435 : vector<1x33x128xf32> to vector<33x128xf32>
    %437 = vector.extract_strided_slice %436 {offsets = [0, 0], sizes = [32, 128], strides = [1, 1]} : vector<33x128xf32> to vector<32x128xf32>
    %cst_137 = arith.constant dense<0.000000e+00> : vector<16x128xf32>
    %438 = tpu.matmul %434, %437, %cst_137 {dimension_numbers = #tpu.dot_dimension_numbers<[1], [0], [0], [1], [0, 0, 1, 1], [], []>} : vector<16x32xf32>, vector<32x128xf32>, vector<16x128xf32> -> vector<16x128xf32>
    %439 = vector.extract_strided_slice %436 {offsets = [32, 0], sizes = [1, 128], strides = [1, 1]} : vector<33x128xf32> to vector<1x128xf32>
    %440 = vector.broadcast %439 : vector<1x128xf32> to vector<16x128xf32>
    %441 = arith.addf %438, %440 : vector<16x128xf32>
    %442 = arith.mulf %441, %441 : vector<16x128xf32>
    %443 = arith.mulf %441, %442 : vector<16x128xf32>
    %cst_138 = arith.constant 4.471500e-02 : f32
    %444 = vector.broadcast %cst_138 : f32 to vector<16x128xf32>
    %445 = arith.mulf %444, %443 : vector<16x128xf32>
    %446 = arith.addf %441, %445 : vector<16x128xf32>
    %cst_139 = arith.constant 0.797884583 : f32
    %447 = vector.broadcast %cst_139 : f32 to vector<16x128xf32>
    %448 = arith.mulf %447, %446 : vector<16x128xf32>
    %449 = math.tanh %448 : vector<16x128xf32>
    %cst_140 = arith.constant 1.000000e+00 : f32
    %450 = vector.broadcast %cst_140 : f32 to vector<16x128xf32>
    %451 = arith.addf %450, %449 : vector<16x128xf32>
    %cst_141 = arith.constant 5.000000e-01 : f32
    %452 = vector.broadcast %cst_141 : f32 to vector<16x128xf32>
    %453 = arith.mulf %452, %451 : vector<16x128xf32>
    %454 = arith.mulf %441, %453 : vector<16x128xf32>
    %c1_142 = arith.constant 1 : index
    %c0_143 = arith.constant 0 : index
    %c0_144 = arith.constant 0 : index
    %455 = vector.load %arg6[%c1_142, %c0_143, %c0_144] : memref<2x129x32xf32, #tpu.memory_space<vmem>>, vector<1x129x32xf32>
    %456 = vector.shape_cast %455 : vector<1x129x32xf32> to vector<129x32xf32>
    %457 = vector.extract_strided_slice %456 {offsets = [0, 0], sizes = [128, 32], strides = [1, 1]} : vector<129x32xf32> to vector<128x32xf32>
    %cst_145 = arith.constant dense<0.000000e+00> : vector<16x32xf32>
    %458 = tpu.matmul %454, %457, %cst_145 {dimension_numbers = #tpu.dot_dimension_numbers<[1], [0], [0], [1], [0, 0, 1, 1], [], []>} : vector<16x128xf32>, vector<128x32xf32>, vector<16x32xf32> -> vector<16x32xf32>
    %459 = vector.extract_strided_slice %456 {offsets = [128, 0], sizes = [1, 32], strides = [1, 1]} : vector<129x32xf32> to vector<1x32xf32>
    %460 = vector.broadcast %459 : vector<1x32xf32> to vector<16x32xf32>
    %461 = arith.addf %458, %460 : vector<16x32xf32>
    %462 = arith.addf %416, %461 : vector<16x32xf32>
    %cst_146 = arith.constant dense<0.000000e+00> : vector<16xf32>
    %463 = vector.multi_reduction <add>, %462, %cst_146 [1] : vector<16x32xf32> to vector<16xf32>
    %464 = vector.shape_cast %463 : vector<16xf32> to vector<16x1xf32>
    %cst_147 = arith.constant 3.200000e+01 : f32
    %465 = vector.broadcast %cst_147 : f32 to vector<16x1xf32>
    %466 = arith.divf %464, %465 : vector<16x1xf32>
    %467 = vector.broadcast %466 : vector<16x1xf32> to vector<16x32xf32>
    %468 = arith.subf %462, %467 : vector<16x32xf32>
    %469 = arith.mulf %468, %468 : vector<16x32xf32>
    %cst_148 = arith.constant dense<0.000000e+00> : vector<16xf32>
    %470 = vector.multi_reduction <add>, %469, %cst_148 [1] : vector<16x32xf32> to vector<16xf32>
    %471 = vector.shape_cast %470 : vector<16xf32> to vector<16x1xf32>
    %cst_149 = arith.constant 3.200000e+01 : f32
    %472 = vector.broadcast %cst_149 : f32 to vector<16x1xf32>
    %473 = arith.divf %471, %472 : vector<16x1xf32>
    %474 = vector.broadcast %466 : vector<16x1xf32> to vector<16x32xf32>
    %475 = arith.subf %462, %474 : vector<16x32xf32>
    %cst_150 = arith.constant 9.99999974E-6 : f32
    %476 = vector.broadcast %cst_150 : f32 to vector<16x1xf32>
    %477 = arith.addf %473, %476 : vector<16x1xf32>
    %478 = math.rsqrt %477 : vector<16x1xf32>
    %479 = vector.broadcast %478 : vector<16x1xf32> to vector<16x32xf32>
    %480 = arith.mulf %475, %479 : vector<16x32xf32>
    %c0_151 = arith.constant 0 : index
    %c0_152 = arith.constant 0 : index
    %481 = vector.load %arg7[%c0_151, %c0_152] : memref<33x32xf32, #tpu.memory_space<vmem>>, vector<33x32xf32>
    %482 = vector.extract_strided_slice %481 {offsets = [0, 0], sizes = [32, 32], strides = [1, 1]} : vector<33x32xf32> to vector<32x32xf32>
    %cst_153 = arith.constant dense<0.000000e+00> : vector<16x32xf32>
    %483 = tpu.matmul %480, %482, %cst_153 {dimension_numbers = #tpu.dot_dimension_numbers<[1], [0], [0], [1], [0, 0, 1, 1], [], []>} : vector<16x32xf32>, vector<32x32xf32>, vector<16x32xf32> -> vector<16x32xf32>
    %484 = vector.extract_strided_slice %481 {offsets = [32, 0], sizes = [1, 32], strides = [1, 1]} : vector<33x32xf32> to vector<1x32xf32>
    %485 = vector.broadcast %484 : vector<1x32xf32> to vector<16x32xf32>
    %486 = arith.addf %483, %485 : vector<16x32xf32>
    %c0_154 = arith.constant 0 : index
    %c0_155 = arith.constant 0 : index
    %487 = vector.load %arg8[%c0_154, %c0_155] : memref<33x128xf32, #tpu.memory_space<vmem>>, vector<33x128xf32>
    %488 = vector.extract_strided_slice %487 {offsets = [0, 0], sizes = [32, 128], strides = [1, 1]} : vector<33x128xf32> to vector<32x128xf32>
    %cst_156 = arith.constant dense<0.000000e+00> : vector<16x128xf32>
    %489 = tpu.matmul %486, %488, %cst_156 {dimension_numbers = #tpu.dot_dimension_numbers<[1], [0], [0], [1], [0, 0, 1, 1], [], []>} : vector<16x32xf32>, vector<32x128xf32>, vector<16x128xf32> -> vector<16x128xf32>
    %490 = vector.extract_strided_slice %487 {offsets = [32, 0], sizes = [1, 128], strides = [1, 1]} : vector<33x128xf32> to vector<1x128xf32>
    %491 = vector.broadcast %490 : vector<1x128xf32> to vector<16x128xf32>
    %492 = arith.addf %489, %491 : vector<16x128xf32>
    %c0_157 = arith.constant 0 : index
    %c0_158 = arith.constant 0 : index
    %493 = vector.load %arg9[%c0_157, %c0_158] : memref<16x128xf32, #tpu.memory_space<vmem>>, vector<16x128xf32>
    tpu.vector_store %arg9[%c0_157, %c0_158], %492 {strides = array<i32>} : memref<16x128xf32, #tpu.memory_space<vmem>>, vector<16x128xf32>,
    return
  }
}

</mosaic_0001>

<llo_original>
// kernel: tpu_custom_call.1
$region0: #{tpu_custom_call.1}
  #allocation0 [shape = 'u32[]', space=smem, size = 0x4, offset = 0x4, fixed_abs, tag = 'smem constant byte address 0x4 - core index']
  #allocation1 [shape = 'u32[144,128]{1,0:T(1,128)}', space=vmem, size = 0x12000, scoped, tag = 'internal scratch']
  %s0 = inlined_call_operand.vmem [shape: f32[16,192], index: 0, kind: input, shape index: {}]
  %s1 = inlined_call_operand.vmem [shape: f32[16,32], index: 1, kind: input, shape index: {}]
  %s2 = inlined_call_operand.vmem [shape: f32[192,32], index: 2, kind: input, shape index: {}]
  %s3 = inlined_call_operand.vmem [shape: f32[2,33,96], index: 3, kind: input, shape index: {}]
  %s4 = inlined_call_operand.vmem [shape: f32[2,33,32], index: 4, kind: input, shape index: {}]
  %s5 = inlined_call_operand.vmem [shape: f32[2,33,128], index: 5, kind: input, shape index: {}]
  %s6 = inlined_call_operand.vmem [shape: f32[2,129,32], index: 6, kind: input, shape index: {}]
  %s7 = inlined_call_operand.vmem [shape: f32[33,32], index: 7, kind: input, shape index: {}]
  %s8 = inlined_call_operand.vmem [shape: f32[33,128], index: 8, kind: input, shape index: {}]
  %s9 = inlined_call_operand.hbm [shape: f32[16,128], index: 9, kind: output, shape index: {}]
  %s10 = sld [smem:[#allocation0]]
  $region46: #{tpu_custom_call.1} parent=0
    _
  %s12 = ssub.s32 1, %s10
  %s13 = scalar_select 0, %s12, %s10
  $region1: #{tpu_custom_call.1} parent=0
    #allocation2 [shape = 'u8[8192]{0}', space=vmem, size = 0x2000, scoped, tag = 'output window, operand 0, single buffered']
    #allocation3 [shape = 's32[1]{0}', space=sflag, size = 0x4, scoped, tag = 'scoped memory for tpu_custom_call.1']
    %14 = vsyncpa [#allocation3], 0
    // Predicated region
    $region2: #{tpu_custom_call.1} parent=1 // pred_check
      _
    $region3: #{tpu_custom_call.1} parent=1 // pred_check_branch
      %16 = sbr.rel (0) target = $region5
    $region4: #{tpu_custom_call.1} parent=1 // pred_region
      _
    $region5: #{tpu_custom_call.1} parent=1 // pred_fallthru
      _
    // Predicated region
    $region6: #{tpu_custom_call.1} parent=1 // pred_check
      _
    $region7: #{tpu_custom_call.1} parent=1 // pred_check_branch
      %18 = sbr.rel (0) target = $region9
    $region8: #{tpu_custom_call.1} parent=1 // pred_region
      _
    $region9: #{tpu_custom_call.1} parent=1 // pred_fallthru
      _
    // Predicated region
    $region10: #{tpu_custom_call.1} parent=1 // pred_check
      _
    $region11: #{tpu_custom_call.1} parent=1 // pred_check_branch
      %20 = sbr.rel (0) target = $region13
    $region12: #{tpu_custom_call.1} parent=1 // pred_region
      _
    $region13: #{tpu_custom_call.1} parent=1 // pred_fallthru
      _
    // Predicated region
    $region14: #{tpu_custom_call.1} parent=1 // pred_check
      _
    $region15: #{tpu_custom_call.1} parent=1 // pred_check_branch
      %22 = sbr.rel (0) target = $region17
    $region16: #{tpu_custom_call.1} parent=1 // pred_region
      _
    $region17: #{tpu_custom_call.1} parent=1 // pred_fallthru
      _
    // Predicated region
    $region18: #{tpu_custom_call.1} parent=1 // pred_check
      _
    $region19: #{tpu_custom_call.1} parent=1 // pred_check_branch
      %24 = sbr.rel (0) target = $region21
    $region20: #{tpu_custom_call.1} parent=1 // pred_region
      _
    $region21: #{tpu_custom_call.1} parent=1 // pred_fallthru
      _
    // Predicated region
    $region22: #{tpu_custom_call.1} parent=1 // pred_check
      _
    $region23: #{tpu_custom_call.1} parent=1 // pred_check_branch
      %26 = sbr.rel (0) target = $region25
    $region24: #{tpu_custom_call.1} parent=1 // pred_region
      _
    $region25: #{tpu_custom_call.1} parent=1 // pred_fallthru
      _
    // Predicated region
    $region26: #{tpu_custom_call.1} parent=1 // pred_check
      _
    $region27: #{tpu_custom_call.1} parent=1 // pred_check_branch
      %28 = sbr.rel (0) target = $region29
    $region28: #{tpu_custom_call.1} parent=1 // pred_region
      _
    $region29: #{tpu_custom_call.1} parent=1 // pred_fallthru
      _
    // Predicated region
    $region30: #{tpu_custom_call.1} parent=1 // pred_check
      _
    $region31: #{tpu_custom_call.1} parent=1 // pred_check_branch
      %30 = sbr.rel (0) target = $region33
    $region32: #{tpu_custom_call.1} parent=1 // pred_region
      _
    $region33: #{tpu_custom_call.1} parent=1 // pred_fallthru
      _
    // Predicated region
    $region34: #{tpu_custom_call.1} parent=1 // pred_check
      _
    $region35: #{tpu_custom_call.1} parent=1 // pred_check_branch
      %32 = sbr.rel (0) target = $region37
    $region36: #{tpu_custom_call.1} parent=1 // pred_region
      _
    $region37: #{tpu_custom_call.1} parent=1 // pred_fallthru
      _
    %v33 = vlaneseq
    %v34 = vand.u32 %v33, 127
    %vm35 = vcmp.lt.s32.totalorder %v34, 5
    %v36 = vsel %vm35, 0.0, -1e+30
    %v37 = vld [vmem:[%s0] sm:$0xff]
    %v38 = vld [vmem:[%s0 + $0x8] sm:$0xff]
    %v39 = vld [vmem:[%s0 + $0x10] sm:$0xff]
    %v40 = vld [vmem:[%s0 + $0x18] sm:$0xff]
    %v41 = vld [vmem:[%s2] sm:$0xff]
    %v42 = vld [vmem:[%s2 + $0x8] sm:$0xff]
    %v43 = vld [vmem:[%s2 + $0x10] sm:$0xff]
    %v44 = vld [vmem:[%s2 + $0x18] sm:$0xff]
    %v45 = vld [vmem:[%s2 + $0x20] sm:$0xff]
    %v46 = vld [vmem:[%s2 + $0x28] sm:$0xff]
    %v47 = vld [vmem:[%s2 + $0x30] sm:$0xff]
    %v48 = vld [vmem:[%s2 + $0x38] sm:$0xff]
    %v49 = vld [vmem:[%s2 + $0x40] sm:$0xff]
    %v50 = vld [vmem:[%s2 + $0x48] sm:$0xff]
    %v51 = vld [vmem:[%s2 + $0x50] sm:$0xff]
    %v52 = vld [vmem:[%s2 + $0x58] sm:$0xff]
    %v53 = vld [vmem:[%s2 + $0x60] sm:$0xff]
    %v54 = vld [vmem:[%s2 + $0x68] sm:$0xff]
    %v55 = vld [vmem:[%s2 + $0x70] sm:$0xff]
    %v56 = vld [vmem:[%s2 + $0x78] sm:$0xff]
    %v57 = vld [vmem:[%s2 + $0x80] sm:$0xff]
    %v58 = vld [vmem:[%s2 + $0x88] sm:$0xff]
    %v59 = vld [vmem:[%s2 + $0x90] sm:$0xff]
    %v60 = vld [vmem:[%s2 + $0x98] sm:$0xff]
    %v61 = vld [vmem:[%s2 + $0xa0] sm:$0xff]
    %v62 = vld [vmem:[%s2 + $0xa8] sm:$0xff]
    %v63 = vld [vmem:[%s2 + $0xb0] sm:$0xff]
    %v64 = vld [vmem:[%s2 + $0xb8] sm:$0xff]
    %v65 = vld [vmem:[%s1] sm:$0xff]
    %v66 = vld [vmem:[%s1 + $0x8] sm:$0xff]
    %vm67 = vcmask 523264
    %v69 = vsel %vm67, %v38, 0
    %v72 = vsel %vm67, %v40, 0
    %74 = vmatprep.subr.mxu0 0.0
    %75 = vmatpush1.msra.mxu0 %v56
    %76 = vmatprep.subr.mxu0 0.0
    %77 = vmatpush1.msra.mxu0 %v55
    %78 = vmatprep.subr.mxu0 0.0
    %79 = vmatpush1.msra.mxu0 %v54
    %80 = vmatprep.subr.mxu0 0.0
    %81 = vmatpush1.msra.mxu0 %v53
    %82 = vmatprep.subr.mxu0 0.0
    %83 = vmatpush1.msra.mxu0 %v52
    %84 = vmatprep.subr.mxu0 0.0
    %85 = vmatpush1.msra.mxu0 %v51
    %86 = vmatprep.subr.mxu0 0.0
    %87 = vmatpush1.msra.mxu0 %v50
    %88 = vmatprep.subr.mxu0 0.0
    %89 = vmatpush1.msra.mxu0 %v49
    %90 = vmatprep.subr.mxu0 0.0
    %91 = vmatpush1.msra.mxu0 %v48
    %92 = vmatprep.subr.mxu0 0.0
    %93 = vmatpush1.msra.mxu0 %v47
    %94 = vmatprep.subr.mxu0 0.0
    %95 = vmatpush1.msra.mxu0 %v46
    %96 = vmatprep.subr.mxu0 0.0
    %97 = vmatpush1.msra.mxu0 %v45
    %98 = vmatprep.subr.mxu0 0.0
    %99 = vmatpush1.msra.mxu0 %v44
    %100 = vmatprep.subr.mxu0 0.0
    %101 = vmatpush1.msra.mxu0 %v43
    %102 = vmatprep.subr.mxu0 0.0
    %103 = vmatpush1.msra.mxu0 %v42
    %104 = vmatprep.subr.mxu0 0.0
    %105 = vmatpush1.msra.mxu0 %v41
    %106 = vmatprep.subr.mxu0 0.0
    %107 = vmatpush2.msra.mxu0 0.0
    %108 = vmatprep.subr.mxu0 0.0
    %109 = vmatpush2.msra.mxu0 0.0
    %110 = vmatprep.subr.mxu0 0.0
    %111 = vmatpush2.msra.mxu0 0.0
    %112 = vmatprep.subr.mxu0 0.0
    %113 = vmatpush2.msra.mxu0 0.0
    %114 = vmatprep.subr.mxu0 0.0
    %115 = vmatpush2.msra.mxu0 0.0
    %116 = vmatprep.subr.mxu0 0.0
    %117 = vmatpush2.msra.mxu0 0.0
    %118 = vmatprep.subr.mxu0 0.0
    %119 = vmatpush2.msra.mxu0 0.0
    %120 = vmatprep.subr.mxu0 0.0
    %121 = vmatpush2.msra.mxu0 0.0
    %122 = vmatprep.subr.mxu0 0.0
    %123 = vmatpush2.msra.mxu0 %v64
    %124 = vmatprep.subr.mxu0 0.0
    %125 = vmatpush2.msra.mxu0 %v63
    %126 = vmatprep.subr.mxu0 0.0
    %127 = vmatpush2.msra.mxu0 %v62
    %128 = vmatprep.subr.mxu0 0.0
    %129 = vmatpush2.msra.mxu0 %v61
    %130 = vmatprep.subr.mxu0 0.0
    %131 = vmatpush2.msra.mxu0 %v60
    %132 = vmatprep.subr.mxu0 0.0
    %133 = vmatpush2.msra.mxu0 %v59
    %134 = vmatprep.subr.mxu0 0.0
    %135 = vmatpush2.msra.mxu0 %v58
    %136 = vmatprep.subr.mxu0 0.0
    %137 = vmatpush2.msra.mxu0 %v57
    %138 = vmatprep.mubr.f32.mxu0 %v69
    %139 = vmatmul.mubr.f32.gmra.mxu0 %v37
    %v140 = vpop.f32.mrf.mxu0
    %v141 = vadd.f32 %v65, %v140
    %v142 = vpop.f32.mrf.mxu0
    %143 = vmatprep.mubr.f32.mxu0 %v72
    %144 = vmatmul.mubr.f32.gmra.mxu0 %v39
    %v145 = vpop.f32.mrf.mxu0
    %v146 = vadd.f32 %v66, %v145
    %v147 = vpop.f32.mrf.mxu0
    %148 = vdwg.mxu0
    %vm149 = vcmask 261120
    %v150 = vsel %vm149, %v141, 0.0
    %151 = vadd.xlane.f32.xlu0 %v150
    %v152 = vpop.xlane.xlu0 %151
    %v153 = vsel %vm149, %v146, 0.0
    %154 = vadd.xlane.f32.xlu0 %v153
    %v155 = vpop.xlane.xlu0 %154
    %v156 = vrcp.pop 32.0
    %v157 = vmul.f32 %v152, %v156
    %v158 = vmul.f32 %v155, %v156
    %v159 = vsub.f32 %v141, %v157
    %v160 = vsub.f32 %v146, %v158
    %v161 = vmul.f32 %v159, %v159
    %v162 = vmul.f32 %v160, %v160
    %v163 = vsel %vm149, %v161, 0.0
    %164 = vadd.xlane.f32.xlu0 %v163
    %v165 = vpop.xlane.xlu0 %164
    %v166 = vsel %vm149, %v162, 0.0
    %167 = vadd.xlane.f32.xlu0 %v166
    %v168 = vpop.xlane.xlu0 %167
    %v169 = vmul.f32 %v165, %v156
    %v170 = vmul.f32 %v168, %v156
    %v171 = vadd.f32 %v169, 1e-05
    %v172 = vadd.f32 %v170, 1e-05
    %v173 = vrsqrt.pop %v171
    %v174 = vrsqrt.pop %v172
    %v175 = vmul.f32 %v159, %v173
    %v176 = vmul.f32 %v160, %v174
    %v177 = vld [vmem:[%s3] sm:$0xff]
    %v178 = vld [vmem:[%s3 + $0x8] sm:$0xff]
    %v179 = vld [vmem:[%s3 + $0x10] sm:$0xff]
    %v180 = vld [vmem:[%s3 + $0x18] sm:$0xff]
    %v181 = vld [vmem:[%s3 + $0x20] sm:$0x1]
    %v182 = vlaneseq
    %v183 = vshrl.u32 %v182, 7
    %v184 = vsub.s32 0, %v183
    %v185 = vrot.slane %v181, %v184
    %v187 = vsel %vm149, %v175, 0
    %v190 = vsel %vm149, %v176, 0
    %192 = vmatprep.subr.mxu0 0.0
    %193 = vmatpush1.msra.mxu0 0.0
    %194 = vmatprep.subr.mxu0 0.0
    %195 = vmatpush1.msra.mxu0 0.0
    %196 = vmatprep.subr.mxu0 0.0
    %197 = vmatpush1.msra.mxu0 0.0
    %198 = vmatprep.subr.mxu0 0.0
    %199 = vmatpush1.msra.mxu0 0.0
    %200 = vmatprep.subr.mxu0 0.0
    %201 = vmatpush1.msra.mxu0 0.0
    %202 = vmatprep.subr.mxu0 0.0
    %203 = vmatpush1.msra.mxu0 0.0
    %204 = vmatprep.subr.mxu0 0.0
    %205 = vmatpush1.msra.mxu0 0.0
    %206 = vmatprep.subr.mxu0 0.0
    %207 = vmatpush1.msra.mxu0 0.0
    %208 = vmatprep.subr.mxu0 0.0
    %209 = vmatpush1.msra.mxu0 0.0
    %210 = vmatprep.subr.mxu0 0.0
    %211 = vmatpush1.msra.mxu0 0.0
    %212 = vmatprep.subr.mxu0 0.0
    %213 = vmatpush1.msra.mxu0 0.0
    %214 = vmatprep.subr.mxu0 0.0
    %215 = vmatpush1.msra.mxu0 0.0
    %216 = vmatprep.subr.mxu0 0.0
    %217 = vmatpush1.msra.mxu0 %v180
    %218 = vmatprep.subr.mxu0 0.0
    %219 = vmatpush1.msra.mxu0 %v179
    %220 = vmatprep.subr.mxu0 0.0
    %221 = vmatpush1.msra.mxu0 %v178
    %222 = vmatprep.subr.mxu0 0.0
    %223 = vmatpush1.msra.mxu0 %v177
    %224 = vmatprep.subr.mxu0 0.0
    %225 = vmatpush2.msra.mxu0 0.0
    %226 = vmatprep.subr.mxu0 0.0
    %227 = vmatpush2.msra.mxu0 0.0
    %228 = vmatprep.subr.mxu0 0.0
    %229 = vmatpush2.msra.mxu0 0.0
    %230 = vmatprep.subr.mxu0 0.0
    %231 = vmatpush2.msra.mxu0 0.0
    %232 = vmatprep.subr.mxu0 0.0
    %233 = vmatpush2.msra.mxu0 0.0
    %234 = vmatprep.subr.mxu0 0.0
    %235 = vmatpush2.msra.mxu0 0.0
    %236 = vmatprep.subr.mxu0 0.0
    %237 = vmatpush2.msra.mxu0 0.0
    %238 = vmatprep.subr.mxu0 0.0
    %239 = vmatpush2.msra.mxu0 0.0
    %240 = vmatprep.subr.mxu0 0.0
    %241 = vmatpush2.msra.mxu0 0.0
    %242 = vmatprep.subr.mxu0 0.0
    %243 = vmatpush2.msra.mxu0 0.0
    %244 = vmatprep.subr.mxu0 0.0
    %245 = vmatpush2.msra.mxu0 0.0
    %246 = vmatprep.subr.mxu0 0.0
    %247 = vmatpush2.msra.mxu0 0.0
    %248 = vmatprep.subr.mxu0 0.0
    %249 = vmatpush2.msra.mxu0 0.0
    %250 = vmatprep.subr.mxu0 0.0
    %251 = vmatpush2.msra.mxu0 0.0
    %252 = vmatprep.subr.mxu0 0.0
    %253 = vmatpush2.msra.mxu0 0.0
    %254 = vmatprep.subr.mxu0 0.0
    %255 = vmatpush2.msra.mxu0 0.0
    %256 = vmatprep.mubr.f32.mxu0 0.0
    %257 = vmatmul.mubr.f32.gmra.mxu0 %v187
    %v258 = vpop.f32.mrf.mxu0
    %v259 = vadd.f32 %v185, %v258
    %v260 = vpop.f32.mrf.mxu0
    %261 = vmatprep.mubr.f32.mxu0 0.0
    %262 = vmatmul.mubr.f32.gmra.mxu0 %v190
    %v263 = vpop.f32.mrf.mxu0
    %v264 = vadd.f32 %v185, %v263
    %v265 = vpop.f32.mrf.mxu0
    %266 = vdwg.mxu0
    %268 = vrot.lane.b32.xlu0 %v259, 96
    %v269 = vpop.permute.xlu0 %268
    %vm270 = vcmask 64512
    %v271 = vsel %vm270, %v259, 0
    %v273 = vsel %vm270, %v269, 0
    %275 = vmatprep.subr.mxu0 0.0
    %276 = vmatpush1.xpose.msra.mxu0 0.0
    %277 = vmatprep.subr.mxu0 0.0
    %278 = vmatpush1.xpose.msra.mxu0 0.0
    %279 = vmatprep.subr.mxu0 0.0
    %280 = vmatpush1.xpose.msra.mxu0 0.0
    %281 = vmatprep.subr.mxu0 0.0
    %282 = vmatpush1.xpose.msra.mxu0 0.0
    %283 = vmatprep.subr.mxu0 0.0
    %284 = vmatpush1.xpose.msra.mxu0 0.0
    %285 = vmatprep.subr.mxu0 0.0
    %286 = vmatpush1.xpose.msra.mxu0 0.0
    %287 = vmatprep.subr.mxu0 0.0
    %288 = vmatpush1.xpose.msra.mxu0 0.0
    %289 = vmatprep.subr.mxu0 0.0
    %290 = vmatpush1.xpose.msra.mxu0 0.0
    %291 = vmatprep.subr.mxu0 0.0
    %292 = vmatpush1.xpose.msra.mxu0 0.0
    %293 = vmatprep.subr.mxu0 0.0
    %294 = vmatpush1.xpose.msra.mxu0 0.0
    %295 = vmatprep.subr.mxu0 0.0
    %296 = vmatpush1.xpose.msra.mxu0 0.0
    %297 = vmatprep.subr.mxu0 0.0
    %298 = vmatpush1.xpose.msra.mxu0 0.0
    %299 = vmatprep.subr.mxu0 0.0
    %300 = vmatpush1.xpose.msra.mxu0 0.0
    %301 = vmatprep.subr.mxu0 0.0
    %302 = vmatpush1.xpose.msra.mxu0 0.0
    %303 = vmatprep.subr.mxu0 0.0
    %304 = vmatpush1.xpose.msra.mxu0 0.0
    %305 = vmatprep.subr.mxu0 0.0
    %306 = vmatpush1.xpose.msra.mxu0 %v273
    %307 = vmatprep.subr.mxu0 0.0
    %308 = vmatpush2.xpose.msra.mxu0 0.0
    %309 = vmatprep.subr.mxu0 0.0
    %310 = vmatpush2.xpose.msra.mxu0 0.0
    %311 = vmatprep.subr.mxu0 0.0
    %312 = vmatpush2.xpose.msra.mxu0 0.0
    %313 = vmatprep.subr.mxu0 0.0
    %314 = vmatpush2.xpose.msra.mxu0 0.0
    %315 = vmatprep.subr.mxu0 0.0
    %316 = vmatpush2.xpose.msra.mxu0 0.0
    %317 = vmatprep.subr.mxu0 0.0
    %318 = vmatpush2.xpose.msra.mxu0 0.0
    %319 = vmatprep.subr.mxu0 0.0
    %320 = vmatpush2.xpose.msra.mxu0 0.0
    %321 = vmatprep.subr.mxu0 0.0
    %322 = vmatpush2.xpose.msra.mxu0 0.0
    %323 = vmatprep.subr.mxu0 0.0
    %324 = vmatpush2.xpose.msra.mxu0 0.0
    %325 = vmatprep.subr.mxu0 0.0
    %326 = vmatpush2.xpose.msra.mxu0 0.0
    %327 = vmatprep.subr.mxu0 0.0
    %328 = vmatpush2.xpose.msra.mxu0 0.0
    %329 = vmatprep.subr.mxu0 0.0
    %330 = vmatpush2.xpose.msra.mxu0 0.0
    %331 = vmatprep.subr.mxu0 0.0
    %332 = vmatpush2.xpose.msra.mxu0 0.0
    %333 = vmatprep.subr.mxu0 0.0
    %334 = vmatpush2.xpose.msra.mxu0 0.0
    %335 = vmatprep.subr.mxu0 0.0
    %336 = vmatpush2.xpose.msra.mxu0 0.0
    %337 = vmatprep.subr.mxu0 0.0
    %338 = vmatpush2.xpose.msra.mxu0 0.0
    %339 = vmatprep.mubr.f32.mxu0 0.0
    %340 = vmatmul.mubr.f32.gmra.mxu0 %v271
    %v341 = vpop.f32.mrf.mxu0
    %v342 = vadd.f32 0.0, %v341
    %v343 = vpop.f32.mrf.mxu0
    %344 = vdwg.mxu0
    %v345 = vmul.f32 %v342, 0.35355338
    %v346 = vadd.f32 %v345, %v36
    %v347 = vsel %vm270, %v346, -inf
    %348 = vmax.xlane.f32.xlu0 %v347
    %v349 = vpop.xlane.xlu0 %348
    %v350 = vsub.f32 %v346, %v349
    %v351 = vmul.f32 %v350, 1.442695
    %v352 = vpow.pop %v351
    %v353 = vsel %vm270, %v352, 0.0
    %354 = vadd.xlane.f32.xlu0 %v353
    %v355 = vpop.xlane.xlu0 %354
    %v356 = vrcp.pop %v355
    %v357 = vmul.f32 %v352, %v356
    %358 = vrot.lane.b32.xlu0 %v259, 64
    %v359 = vpop.permute.xlu0 %358
    %v362 = vsel %vm270, %v357, 0
    %364 = vmatprep.subr.mxu0 0.0
    %365 = vmatpush1.msra.mxu0 0.0
    %366 = vmatprep.subr.mxu0 0.0
    %367 = vmatpush1.msra.mxu0 0.0
    %368 = vmatprep.subr.mxu0 0.0
    %369 = vmatpush1.msra.mxu0 0.0
    %370 = vmatprep.subr.mxu0 0.0
    %371 = vmatpush1.msra.mxu0 0.0
    %372 = vmatprep.subr.mxu0 0.0
    %373 = vmatpush1.msra.mxu0 0.0
    %374 = vmatprep.subr.mxu0 0.0
    %375 = vmatpush1.msra.mxu0 0.0
    %376 = vmatprep.subr.mxu0 0.0
    %377 = vmatpush1.msra.mxu0 0.0
    %378 = vmatprep.subr.mxu0 0.0
    %379 = vmatpush1.msra.mxu0 0.0
    %380 = vmatprep.subr.mxu0 0.0
    %381 = vmatpush1.msra.mxu0 0.0
    %382 = vmatprep.subr.mxu0 0.0
    %383 = vmatpush1.msra.mxu0 0.0
    %384 = vmatprep.subr.mxu0 0.0
    %385 = vmatpush1.msra.mxu0 0.0
    %386 = vmatprep.subr.mxu0 0.0
    %387 = vmatpush1.msra.mxu0 0.0
    %388 = vmatprep.subr.mxu0 0.0
    %389 = vmatpush1.msra.mxu0 0.0
    %390 = vmatprep.subr.mxu0 0.0
    %391 = vmatpush1.msra.mxu0 0.0
    %392 = vmatprep.subr.mxu0 0.0
    %393 = vmatpush1.msra.mxu0 0.0
    %394 = vmatprep.subr.mxu0 0.0
    %395 = vmatpush1.msra.mxu0 %v359
    %396 = vmatprep.subr.mxu0 0.0
    %397 = vmatpush2.msra.mxu0 0.0
    %398 = vmatprep.subr.mxu0 0.0
    %399 = vmatpush2.msra.mxu0 0.0
    %400 = vmatprep.subr.mxu0 0.0
    %401 = vmatpush2.msra.mxu0 0.0
    %402 = vmatprep.subr.mxu0 0.0
    %403 = vmatpush2.msra.mxu0 0.0
    %404 = vmatprep.subr.mxu0 0.0
    %405 = vmatpush2.msra.mxu0 0.0
    %406 = vmatprep.subr.mxu0 0.0
    %407 = vmatpush2.msra.mxu0 0.0
    %408 = vmatprep.subr.mxu0 0.0
    %409 = vmatpush2.msra.mxu0 0.0
    %410 = vmatprep.subr.mxu0 0.0
    %411 = vmatpush2.msra.mxu0 0.0
    %412 = vmatprep.subr.mxu0 0.0
    %413 = vmatpush2.msra.mxu0 0.0
    %414 = vmatprep.subr.mxu0 0.0
    %415 = vmatpush2.msra.mxu0 0.0
    %416 = vmatprep.subr.mxu0 0.0
    %417 = vmatpush2.msra.mxu0 0.0
    %418 = vmatprep.subr.mxu0 0.0
    %419 = vmatpush2.msra.mxu0 0.0
    %420 = vmatprep.subr.mxu0 0.0
    %421 = vmatpush2.msra.mxu0 0.0
    %422 = vmatprep.subr.mxu0 0.0
    %423 = vmatpush2.msra.mxu0 0.0
    %424 = vmatprep.subr.mxu0 0.0
    %425 = vmatpush2.msra.mxu0 0.0
    %426 = vmatprep.subr.mxu0 0.0
    %427 = vmatpush2.msra.mxu0 0.0
    %428 = vmatprep.mubr.f32.mxu0 0.0
    %429 = vmatmul.mubr.f32.gmra.mxu0 %v362
    %v430 = vpop.f32.mrf.mxu0
    %v431 = vadd.f32 0.0, %v430
    %v432 = vpop.f32.mrf.mxu0
    %433 = vdwg.mxu0
    %434 = vrot.lane.b32.xlu0 %v259, 120
    %v435 = vpop.permute.xlu0 %434
    %436 = vrot.lane.b32.xlu0 %v259, 88
    %v437 = vpop.permute.xlu0 %436
    %v438 = vsel %vm270, %v435, 0
    %v440 = vsel %vm270, %v437, 0
    %442 = vmatprep.subr.mxu0 0.0
    %443 = vmatpush1.xpose.msra.mxu0 0.0
    %444 = vmatprep.subr.mxu0 0.0
    %445 = vmatpush1.xpose.msra.mxu0 0.0
    %446 = vmatprep.subr.mxu0 0.0
    %447 = vmatpush1.xpose.msra.mxu0 0.0
    %448 = vmatprep.subr.mxu0 0.0
    %449 = vmatpush1.xpose.msra.mxu0 0.0
    %450 = vmatprep.subr.mxu0 0.0
    %451 = vmatpush1.xpose.msra.mxu0 0.0
    %452 = vmatprep.subr.mxu0 0.0
    %453 = vmatpush1.xpose.msra.mxu0 0.0
    %454 = vmatprep.subr.mxu0 0.0
    %455 = vmatpush1.xpose.msra.mxu0 0.0
    %456 = vmatprep.subr.mxu0 0.0
    %457 = vmatpush1.xpose.msra.mxu0 0.0
    %458 = vmatprep.subr.mxu0 0.0
    %459 = vmatpush1.xpose.msra.mxu0 0.0
    %460 = vmatprep.subr.mxu0 0.0
    %461 = vmatpush1.xpose.msra.mxu0 0.0
    %462 = vmatprep.subr.mxu0 0.0
    %463 = vmatpush1.xpose.msra.mxu0 0.0
    %464 = vmatprep.subr.mxu0 0.0
    %465 = vmatpush1.xpose.msra.mxu0 0.0
    %466 = vmatprep.subr.mxu0 0.0
    %467 = vmatpush1.xpose.msra.mxu0 0.0
    %468 = vmatprep.subr.mxu0 0.0
    %469 = vmatpush1.xpose.msra.mxu0 0.0
    %470 = vmatprep.subr.mxu0 0.0
    %471 = vmatpush1.xpose.msra.mxu0 0.0
    %472 = vmatprep.subr.mxu0 0.0
    %473 = vmatpush1.xpose.msra.mxu0 %v440
    %474 = vmatprep.subr.mxu0 0.0
    %475 = vmatpush2.xpose.msra.mxu0 0.0
    %476 = vmatprep.subr.mxu0 0.0
    %477 = vmatpush2.xpose.msra.mxu0 0.0
    %478 = vmatprep.subr.mxu0 0.0
    %479 = vmatpush2.xpose.msra.mxu0 0.0
    %480 = vmatprep.subr.mxu0 0.0
    %481 = vmatpush2.xpose.msra.mxu0 0.0
    %482 = vmatprep.subr.mxu0 0.0
    %483 = vmatpush2.xpose.msra.mxu0 0.0
    %484 = vmatprep.subr.mxu0 0.0
    %485 = vmatpush2.xpose.msra.mxu0 0.0
    %486 = vmatprep.subr.mxu0 0.0
    %487 = vmatpush2.xpose.msra.mxu0 0.0
    %488 = vmatprep.subr.mxu0 0.0
    %489 = vmatpush2.xpose.msra.mxu0 0.0
    %490 = vmatprep.subr.mxu0 0.0
    %491 = vmatpush2.xpose.msra.mxu0 0.0
    %492 = vmatprep.subr.mxu0 0.0
    %493 = vmatpush2.xpose.msra.mxu0 0.0
    %494 = vmatprep.subr.mxu0 0.0
    %495 = vmatpush2.xpose.msra.mxu0 0.0
    %496 = vmatprep.subr.mxu0 0.0
    %497 = vmatpush2.xpose.msra.mxu0 0.0
    %498 = vmatprep.subr.mxu0 0.0
    %499 = vmatpush2.xpose.msra.mxu0 0.0
    %500 = vmatprep.subr.mxu0 0.0
    %501 = vmatpush2.xpose.msra.mxu0 0.0
    %502 = vmatprep.subr.mxu0 0.0
    %503 = vmatpush2.xpose.msra.mxu0 0.0
    %504 = vmatprep.subr.mxu0 0.0
    %505 = vmatpush2.xpose.msra.mxu0 0.0
    %506 = vmatprep.mubr.f32.mxu0 0.0
    %507 = vmatmul.mubr.f32.gmra.mxu0 %v438
    %v508 = vpop.f32.mrf.mxu0
    %v509 = vadd.f32 0.0, %v508
    %v510 = vpop.f32.mrf.mxu0
    %511 = vdwg.mxu0
    %v512 = vmul.f32 %v509, 0.35355338
    %v513 = vadd.f32 %v512, %v36
    %v514 = vsel %vm270, %v513, -inf
    %515 = vmax.xlane.f32.xlu0 %v514
    %v516 = vpop.xlane.xlu0 %515
    %v517 = vsub.f32 %v513, %v516
    %v518 = vmul.f32 %v517, 1.442695
    %v519 = vpow.pop %v518
    %v520 = vsel %vm270, %v519, 0.0
    %521 = vadd.xlane.f32.xlu0 %v520
    %v522 = vpop.xlane.xlu0 %521
    %v523 = vrcp.pop %v522
    %v524 = vmul.f32 %v519, %v523
    %525 = vrot.lane.b32.xlu0 %v259, 56
    %v526 = vpop.permute.xlu0 %525
    %v529 = vsel %vm270, %v524, 0
    %531 = vmatprep.subr.mxu0 0.0
    %532 = vmatpush1.msra.mxu0 0.0
    %533 = vmatprep.subr.mxu0 0.0
    %534 = vmatpush1.msra.mxu0 0.0
    %535 = vmatprep.subr.mxu0 0.0
    %536 = vmatpush1.msra.mxu0 0.0
    %537 = vmatprep.subr.mxu0 0.0
    %538 = vmatpush1.msra.mxu0 0.0
    %539 = vmatprep.subr.mxu0 0.0
    %540 = vmatpush1.msra.mxu0 0.0
    %541 = vmatprep.subr.mxu0 0.0
    %542 = vmatpush1.msra.mxu0 0.0
    %543 = vmatprep.subr.mxu0 0.0
    %544 = vmatpush1.msra.mxu0 0.0
    %545 = vmatprep.subr.mxu0 0.0
    %546 = vmatpush1.msra.mxu0 0.0
    %547 = vmatprep.subr.mxu0 0.0
    %548 = vmatpush1.msra.mxu0 0.0
    %549 = vmatprep.subr.mxu0 0.0
    %550 = vmatpush1.msra.mxu0 0.0
    %551 = vmatprep.subr.mxu0 0.0
    %552 = vmatpush1.msra.mxu0 0.0
    %553 = vmatprep.subr.mxu0 0.0
    %554 = vmatpush1.msra.mxu0 0.0
    %555 = vmatprep.subr.mxu0 0.0
    %556 = vmatpush1.msra.mxu0 0.0
    %557 = vmatprep.subr.mxu0 0.0
    %558 = vmatpush1.msra.mxu0 0.0
    %559 = vmatprep.subr.mxu0 0.0
    %560 = vmatpush1.msra.mxu0 0.0
    %561 = vmatprep.subr.mxu0 0.0
    %562 = vmatpush1.msra.mxu0 %v526
    %563 = vmatprep.subr.mxu0 0.0
    %564 = vmatpush2.msra.mxu0 0.0
    %565 = vmatprep.subr.mxu0 0.0
    %566 = vmatpush2.msra.mxu0 0.0
    %567 = vmatprep.subr.mxu0 0.0
    %568 = vmatpush2.msra.mxu0 0.0
    %569 = vmatprep.subr.mxu0 0.0
    %570 = vmatpush2.msra.mxu0 0.0
    %571 = vmatprep.subr.mxu0 0.0
    %572 = vmatpush2.msra.mxu0 0.0
    %573 = vmatprep.subr.mxu0 0.0
    %574 = vmatpush2.msra.mxu0 0.0
    %575 = vmatprep.subr.mxu0 0.0
    %576 = vmatpush2.msra.mxu0 0.0
    %577 = vmatprep.subr.mxu0 0.0
    %578 = vmatpush2.msra.mxu0 0.0
    %579 = vmatprep.subr.mxu0 0.0
    %580 = vmatpush2.msra.mxu0 0.0
    %581 = vmatprep.subr.mxu0 0.0
    %582 = vmatpush2.msra.mxu0 0.0
    %583 = vmatprep.subr.mxu0 0.0
    %584 = vmatpush2.msra.mxu0 0.0
    %585 = vmatprep.subr.mxu0 0.0
    %586 = vmatpush2.msra.mxu0 0.0
    %587 = vmatprep.subr.mxu0 0.0
    %588 = vmatpush2.msra.mxu0 0.0
    %589 = vmatprep.subr.mxu0 0.0
    %590 = vmatpush2.msra.mxu0 0.0
    %591 = vmatprep.subr.mxu0 0.0
    %592 = vmatpush2.msra.mxu0 0.0
    %593 = vmatprep.subr.mxu0 0.0
    %594 = vmatpush2.msra.mxu0 0.0
    %595 = vmatprep.mubr.f32.mxu0 0.0
    %596 = vmatmul.mubr.f32.gmra.mxu0 %v529
    %v597 = vpop.f32.mrf.mxu0
    %v598 = vadd.f32 0.0, %v597
    %v599 = vpop.f32.mrf.mxu0
    %600 = vdwg.mxu0
    %601 = vrot.lane.b32.xlu0 %v259, 112
    %v602 = vpop.permute.xlu0 %601
    %603 = vrot.lane.b32.xlu0 %v259, 80
    %v604 = vpop.permute.xlu0 %603
    %v605 = vsel %vm270, %v602, 0
    %v607 = vsel %vm270, %v604, 0
    %609 = vmatprep.subr.mxu0 0.0
    %610 = vmatpush1.xpose.msra.mxu0 0.0
    %611 = vmatprep.subr.mxu0 0.0
    %612 = vmatpush1.xpose.msra.mxu0 0.0
    %613 = vmatprep.subr.mxu0 0.0
    %614 = vmatpush1.xpose.msra.mxu0 0.0
    %615 = vmatprep.subr.mxu0 0.0
    %616 = vmatpush1.xpose.msra.mxu0 0.0
    %617 = vmatprep.subr.mxu0 0.0
    %618 = vmatpush1.xpose.msra.mxu0 0.0
    %619 = vmatprep.subr.mxu0 0.0
    %620 = vmatpush1.xpose.msra.mxu0 0.0
    %621 = vmatprep.subr.mxu0 0.0
    %622 = vmatpush1.xpose.msra.mxu0 0.0
    %623 = vmatprep.subr.mxu0 0.0
    %624 = vmatpush1.xpose.msra.mxu0 0.0
    %625 = vmatprep.subr.mxu0 0.0
    %626 = vmatpush1.xpose.msra.mxu0 0.0
    %627 = vmatprep.subr.mxu0 0.0
    %628 = vmatpush1.xpose.msra.mxu0 0.0
    %629 = vmatprep.subr.mxu0 0.0
    %630 = vmatpush1.xpose.msra.mxu0 0.0
    %631 = vmatprep.subr.mxu0 0.0
    %632 = vmatpush1.xpose.msra.mxu0 0.0
    %633 = vmatprep.subr.mxu0 0.0
    %634 = vmatpush1.xpose.msra.mxu0 0.0
    %635 = vmatprep.subr.mxu0 0.0
    %636 = vmatpush1.xpose.msra.mxu0 0.0
    %637 = vmatprep.subr.mxu0 0.0
    %638 = vmatpush1.xpose.msra.mxu0 0.0
    %639 = vmatprep.subr.mxu0 0.0
    %640 = vmatpush1.xpose.msra.mxu0 %v607
    %641 = vmatprep.subr.mxu0 0.0
    %642 = vmatpush2.xpose.msra.mxu0 0.0
    %643 = vmatprep.subr.mxu0 0.0
    %644 = vmatpush2.xpose.msra.mxu0 0.0
    %645 = vmatprep.subr.mxu0 0.0
    %646 = vmatpush2.xpose.msra.mxu0 0.0
    %647 = vmatprep.subr.mxu0 0.0
    %648 = vmatpush2.xpose.msra.mxu0 0.0
    %649 = vmatprep.subr.mxu0 0.0
    %650 = vmatpush2.xpose.msra.mxu0 0.0
    %651 = vmatprep.subr.mxu0 0.0
    %652 = vmatpush2.xpose.msra.mxu0 0.0
    %653 = vmatprep.subr.mxu0 0.0
    %654 = vmatpush2.xpose.msra.mxu0 0.0
    %655 = vmatprep.subr.mxu0 0.0
    %656 = vmatpush2.xpose.msra.mxu0 0.0
    %657 = vmatprep.subr.mxu0 0.0
    %658 = vmatpush2.xpose.msra.mxu0 0.0
    %659 = vmatprep.subr.mxu0 0.0
    %660 = vmatpush2.xpose.msra.mxu0 0.0
    %661 = vmatprep.subr.mxu0 0.0
    %662 = vmatpush2.xpose.msra.mxu0 0.0
    %663 = vmatprep.subr.mxu0 0.0
    %664 = vmatpush2.xpose.msra.mxu0 0.0
    %665 = vmatprep.subr.mxu0 0.0
    %666 = vmatpush2.xpose.msra.mxu0 0.0
    %667 = vmatprep.subr.mxu0 0.0
    %668 = vmatpush2.xpose.msra.mxu0 0.0
    %669 = vmatprep.subr.mxu0 0.0
    %670 = vmatpush2.xpose.msra.mxu0 0.0
    %671 = vmatprep.subr.mxu0 0.0
    %672 = vmatpush2.xpose.msra.mxu0 0.0
    %673 = vmatprep.mubr.f32.mxu0 0.0
    %674 = vmatmul.mubr.f32.gmra.mxu0 %v605
    %v675 = vpop.f32.mrf.mxu0
    %v676 = vadd.f32 0.0, %v675
    %v677 = vpop.f32.mrf.mxu0
    %678 = vdwg.mxu0
    %v679 = vmul.f32 %v676, 0.35355338
    %v680 = vadd.f32 %v679, %v36
    %v681 = vsel %vm270, %v680, -inf
    %682 = vmax.xlane.f32.xlu0 %v681
    %v683 = vpop.xlane.xlu0 %682
    %v684 = vsub.f32 %v680, %v683
    %v685 = vmul.f32 %v684, 1.442695
    %v686 = vpow.pop %v685
    %v687 = vsel %vm270, %v686, 0.0
    %688 = vadd.xlane.f32.xlu0 %v687
    %v689 = vpop.xlane.xlu0 %688
    %v690 = vrcp.pop %v689
    %v691 = vmul.f32 %v686, %v690
    %692 = vrot.lane.b32.xlu0 %v259, 48
    %v693 = vpop.permute.xlu0 %692
    %v696 = vsel %vm270, %v691, 0
    %698 = vmatprep.subr.mxu0 0.0
    %699 = vmatpush1.msra.mxu0 0.0
    %700 = vmatprep.subr.mxu0 0.0
    %701 = vmatpush1.msra.mxu0 0.0
    %702 = vmatprep.subr.mxu0 0.0
    %703 = vmatpush1.msra.mxu0 0.0
    %704 = vmatprep.subr.mxu0 0.0
    %705 = vmatpush1.msra.mxu0 0.0
    %706 = vmatprep.subr.mxu0 0.0
    %707 = vmatpush1.msra.mxu0 0.0
    %708 = vmatprep.subr.mxu0 0.0
    %709 = vmatpush1.msra.mxu0 0.0
    %710 = vmatprep.subr.mxu0 0.0
    %711 = vmatpush1.msra.mxu0 0.0
    %712 = vmatprep.subr.mxu0 0.0
    %713 = vmatpush1.msra.mxu0 0.0
    %714 = vmatprep.subr.mxu0 0.0
    %715 = vmatpush1.msra.mxu0 0.0
    %716 = vmatprep.subr.mxu0 0.0
    %717 = vmatpush1.msra.mxu0 0.0
    %718 = vmatprep.subr.mxu0 0.0
    %719 = vmatpush1.msra.mxu0 0.0
    %720 = vmatprep.subr.mxu0 0.0
    %721 = vmatpush1.msra.mxu0 0.0
    %722 = vmatprep.subr.mxu0 0.0
    %723 = vmatpush1.msra.mxu0 0.0
    %724 = vmatprep.subr.mxu0 0.0
    %725 = vmatpush1.msra.mxu0 0.0
    %726 = vmatprep.subr.mxu0 0.0
    %727 = vmatpush1.msra.mxu0 0.0
    %728 = vmatprep.subr.mxu0 0.0
    %729 = vmatpush1.msra.mxu0 %v693
    %730 = vmatprep.subr.mxu0 0.0
    %731 = vmatpush2.msra.mxu0 0.0
    %732 = vmatprep.subr.mxu0 0.0
    %733 = vmatpush2.msra.mxu0 0.0
    %734 = vmatprep.subr.mxu0 0.0
    %735 = vmatpush2.msra.mxu0 0.0
    %736 = vmatprep.subr.mxu0 0.0
    %737 = vmatpush2.msra.mxu0 0.0
    %738 = vmatprep.subr.mxu0 0.0
    %739 = vmatpush2.msra.mxu0 0.0
    %740 = vmatprep.subr.mxu0 0.0
    %741 = vmatpush2.msra.mxu0 0.0
    %742 = vmatprep.subr.mxu0 0.0
    %743 = vmatpush2.msra.mxu0 0.0
    %744 = vmatprep.subr.mxu0 0.0
    %745 = vmatpush2.msra.mxu0 0.0
    %746 = vmatprep.subr.mxu0 0.0
    %747 = vmatpush2.msra.mxu0 0.0
    %748 = vmatprep.subr.mxu0 0.0
    %749 = vmatpush2.msra.mxu0 0.0
    %750 = vmatprep.subr.mxu0 0.0
    %751 = vmatpush2.msra.mxu0 0.0
    %752 = vmatprep.subr.mxu0 0.0
    %753 = vmatpush2.msra.mxu0 0.0
    %754 = vmatprep.subr.mxu0 0.0
    %755 = vmatpush2.msra.mxu0 0.0
    %756 = vmatprep.subr.mxu0 0.0
    %757 = vmatpush2.msra.mxu0 0.0
    %758 = vmatprep.subr.mxu0 0.0
    %759 = vmatpush2.msra.mxu0 0.0
    %760 = vmatprep.subr.mxu0 0.0
    %761 = vmatpush2.msra.mxu0 0.0
    %762 = vmatprep.mubr.f32.mxu0 0.0
    %763 = vmatmul.mubr.f32.gmra.mxu0 %v696
    %v764 = vpop.f32.mrf.mxu0
    %v765 = vadd.f32 0.0, %v764
    %v766 = vpop.f32.mrf.mxu0
    %767 = vdwg.mxu0
    %768 = vrot.lane.b32.xlu0 %v259, 104
    %v769 = vpop.permute.xlu0 %768
    %770 = vrot.lane.b32.xlu0 %v259, 72
    %v771 = vpop.permute.xlu0 %770
    %v772 = vsel %vm270, %v769, 0
    %v774 = vsel %vm270, %v771, 0
    %776 = vmatprep.subr.mxu0 0.0
    %777 = vmatpush1.xpose.msra.mxu0 0.0
    %778 = vmatprep.subr.mxu0 0.0
    %779 = vmatpush1.xpose.msra.mxu0 0.0
    %780 = vmatprep.subr.mxu0 0.0
    %781 = vmatpush1.xpose.msra.mxu0 0.0
    %782 = vmatprep.subr.mxu0 0.0
    %783 = vmatpush1.xpose.msra.mxu0 0.0
    %784 = vmatprep.subr.mxu0 0.0
    %785 = vmatpush1.xpose.msra.mxu0 0.0
    %786 = vmatprep.subr.mxu0 0.0
    %787 = vmatpush1.xpose.msra.mxu0 0.0
    %788 = vmatprep.subr.mxu0 0.0
    %789 = vmatpush1.xpose.msra.mxu0 0.0
    %790 = vmatprep.subr.mxu0 0.0
    %791 = vmatpush1.xpose.msra.mxu0 0.0
    %792 = vmatprep.subr.mxu0 0.0
    %793 = vmatpush1.xpose.msra.mxu0 0.0
    %794 = vmatprep.subr.mxu0 0.0
    %795 = vmatpush1.xpose.msra.mxu0 0.0
    %796 = vmatprep.subr.mxu0 0.0
    %797 = vmatpush1.xpose.msra.mxu0 0.0
    %798 = vmatprep.subr.mxu0 0.0
    %799 = vmatpush1.xpose.msra.mxu0 0.0
    %800 = vmatprep.subr.mxu0 0.0
    %801 = vmatpush1.xpose.msra.mxu0 0.0
    %802 = vmatprep.subr.mxu0 0.0
    %803 = vmatpush1.xpose.msra.mxu0 0.0
    %804 = vmatprep.subr.mxu0 0.0
    %805 = vmatpush1.xpose.msra.mxu0 0.0
    %806 = vmatprep.subr.mxu0 0.0
    %807 = vmatpush1.xpose.msra.mxu0 %v774
    %808 = vmatprep.subr.mxu0 0.0
    %809 = vmatpush2.xpose.msra.mxu0 0.0
    %810 = vmatprep.subr.mxu0 0.0
    %811 = vmatpush2.xpose.msra.mxu0 0.0
    %812 = vmatprep.subr.mxu0 0.0
    %813 = vmatpush2.xpose.msra.mxu0 0.0
    %814 = vmatprep.subr.mxu0 0.0
    %815 = vmatpush2.xpose.msra.mxu0 0.0
    %816 = vmatprep.subr.mxu0 0.0
    %817 = vmatpush2.xpose.msra.mxu0 0.0
    %818 = vmatprep.subr.mxu0 0.0
    %819 = vmatpush2.xpose.msra.mxu0 0.0
    %820 = vmatprep.subr.mxu0 0.0
    %821 = vmatpush2.xpose.msra.mxu0 0.0
    %822 = vmatprep.subr.mxu0 0.0
    %823 = vmatpush2.xpose.msra.mxu0 0.0
    %824 = vmatprep.subr.mxu0 0.0
    %825 = vmatpush2.xpose.msra.mxu0 0.0
    %826 = vmatprep.subr.mxu0 0.0
    %827 = vmatpush2.xpose.msra.mxu0 0.0
    %828 = vmatprep.subr.mxu0 0.0
    %829 = vmatpush2.xpose.msra.mxu0 0.0
    %830 = vmatprep.subr.mxu0 0.0
    %831 = vmatpush2.xpose.msra.mxu0 0.0
    %832 = vmatprep.subr.mxu0 0.0
    %833 = vmatpush2.xpose.msra.mxu0 0.0
    %834 = vmatprep.subr.mxu0 0.0
    %835 = vmatpush2.xpose.msra.mxu0 0.0
    %836 = vmatprep.subr.mxu0 0.0
    %837 = vmatpush2.xpose.msra.mxu0 0.0
    %838 = vmatprep.subr.mxu0 0.0
    %839 = vmatpush2.xpose.msra.mxu0 0.0
    %840 = vmatprep.mubr.f32.mxu0 0.0
    %841 = vmatmul.mubr.f32.gmra.mxu0 %v772
    %v842 = vpop.f32.mrf.mxu0
    %v843 = vadd.f32 0.0, %v842
    %v844 = vpop.f32.mrf.mxu0
    %845 = vdwg.mxu0
    %v846 = vmul.f32 %v843, 0.35355338
    %v847 = vadd.f32 %v846, %v36
    %v848 = vsel %vm270, %v847, -inf
    %849 = vmax.xlane.f32.xlu0 %v848
    %v850 = vpop.xlane.xlu0 %849
    %v851 = vsub.f32 %v847, %v850
    %v852 = vmul.f32 %v851, 1.442695
    %v853 = vpow.pop %v852
    %v854 = vsel %vm270, %v853, 0.0
    %855 = vadd.xlane.f32.xlu0 %v854
    %v856 = vpop.xlane.xlu0 %855
    %v857 = vrcp.pop %v856
    %v858 = vmul.f32 %v853, %v857
    %859 = vrot.lane.b32.xlu0 %v259, 40
    %v860 = vpop.permute.xlu0 %859
    %v863 = vsel %vm270, %v858, 0
    %865 = vmatprep.subr.mxu0 0.0
    %866 = vmatpush1.msra.mxu0 0.0
    %867 = vmatprep.subr.mxu0 0.0
    %868 = vmatpush1.msra.mxu0 0.0
    %869 = vmatprep.subr.mxu0 0.0
    %870 = vmatpush1.msra.mxu0 0.0
    %871 = vmatprep.subr.mxu0 0.0
    %872 = vmatpush1.msra.mxu0 0.0
    %873 = vmatprep.subr.mxu0 0.0
    %874 = vmatpush1.msra.mxu0 0.0
    %875 = vmatprep.subr.mxu0 0.0
    %876 = vmatpush1.msra.mxu0 0.0
    %877 = vmatprep.subr.mxu0 0.0
    %878 = vmatpush1.msra.mxu0 0.0
    %879 = vmatprep.subr.mxu0 0.0
    %880 = vmatpush1.msra.mxu0 0.0
    %881 = vmatprep.subr.mxu0 0.0
    %882 = vmatpush1.msra.mxu0 0.0
    %883 = vmatprep.subr.mxu0 0.0
    %884 = vmatpush1.msra.mxu0 0.0
    %885 = vmatprep.subr.mxu0 0.0
    %886 = vmatpush1.msra.mxu0 0.0
    %887 = vmatprep.subr.mxu0 0.0
    %888 = vmatpush1.msra.mxu0 0.0
    %889 = vmatprep.subr.mxu0 0.0
    %890 = vmatpush1.msra.mxu0 0.0
    %891 = vmatprep.subr.mxu0 0.0
    %892 = vmatpush1.msra.mxu0 0.0
    %893 = vmatprep.subr.mxu0 0.0
    %894 = vmatpush1.msra.mxu0 0.0
    %895 = vmatprep.subr.mxu0 0.0
    %896 = vmatpush1.msra.mxu0 %v860
    %897 = vmatprep.subr.mxu0 0.0
    %898 = vmatpush2.msra.mxu0 0.0
    %899 = vmatprep.subr.mxu0 0.0
    %900 = vmatpush2.msra.mxu0 0.0
    %901 = vmatprep.subr.mxu0 0.0
    %902 = vmatpush2.msra.mxu0 0.0
    %903 = vmatprep.subr.mxu0 0.0
    %904 = vmatpush2.msra.mxu0 0.0
    %905 = vmatprep.subr.mxu0 0.0
    %906 = vmatpush2.msra.mxu0 0.0
    %907 = vmatprep.subr.mxu0 0.0
    %908 = vmatpush2.msra.mxu0 0.0
    %909 = vmatprep.subr.mxu0 0.0
    %910 = vmatpush2.msra.mxu0 0.0
    %911 = vmatprep.subr.mxu0 0.0
    %912 = vmatpush2.msra.mxu0 0.0
    %913 = vmatprep.subr.mxu0 0.0
    %914 = vmatpush2.msra.mxu0 0.0
    %915 = vmatprep.subr.mxu0 0.0
    %916 = vmatpush2.msra.mxu0 0.0
    %917 = vmatprep.subr.mxu0 0.0
    %918 = vmatpush2.msra.mxu0 0.0
    %919 = vmatprep.subr.mxu0 0.0
    %920 = vmatpush2.msra.mxu0 0.0
    %921 = vmatprep.subr.mxu0 0.0
    %922 = vmatpush2.msra.mxu0 0.0
    %923 = vmatprep.subr.mxu0 0.0
    %924 = vmatpush2.msra.mxu0 0.0
    %925 = vmatprep.subr.mxu0 0.0
    %926 = vmatpush2.msra.mxu0 0.0
    %927 = vmatprep.subr.mxu0 0.0
    %928 = vmatpush2.msra.mxu0 0.0
    %929 = vmatprep.mubr.f32.mxu0 0.0
    %930 = vmatmul.mubr.f32.gmra.mxu0 %v863
    %v931 = vpop.f32.mrf.mxu0
    %v932 = vadd.f32 0.0, %v931
    %v933 = vpop.f32.mrf.mxu0
    %934 = vdwg.mxu0
    %936 = vrot.lane.b32.xlu0 %v598, 8
    %v937 = vpop.permute.xlu0 %936
    %940 = vrot.lane.b32.xlu0 %v765, 16
    %v941 = vpop.permute.xlu0 %940
    %944 = vrot.lane.b32.xlu0 %v932, 24
    %v945 = vpop.permute.xlu0 %944
    %v947 = vsel %vm270, %v431, %v937
    %vm948 = vcmask 130048
    %v949 = vsel %vm948, %v947, %v941
    %vm950 = vcmask 195584
    %v951 = vsel %vm950, %v949, %v945
    %953 = vrot.lane.b32.xlu0 %v264, 96
    %v954 = vpop.permute.xlu0 %953
    %v955 = vsel %vm270, %v264, 0
    %v957 = vsel %vm270, %v954, 0
    %959 = vmatprep.subr.mxu0 0.0
    %960 = vmatpush1.xpose.msra.mxu0 0.0
    %961 = vmatprep.subr.mxu0 0.0
    %962 = vmatpush1.xpose.msra.mxu0 0.0
    %963 = vmatprep.subr.mxu0 0.0
    %964 = vmatpush1.xpose.msra.mxu0 0.0
    %965 = vmatprep.subr.mxu0 0.0
    %966 = vmatpush1.xpose.msra.mxu0 0.0
    %967 = vmatprep.subr.mxu0 0.0
    %968 = vmatpush1.xpose.msra.mxu0 0.0
    %969 = vmatprep.subr.mxu0 0.0
    %970 = vmatpush1.xpose.msra.mxu0 0.0
    %971 = vmatprep.subr.mxu0 0.0
    %972 = vmatpush1.xpose.msra.mxu0 0.0
    %973 = vmatprep.subr.mxu0 0.0
    %974 = vmatpush1.xpose.msra.mxu0 0.0
    %975 = vmatprep.subr.mxu0 0.0
    %976 = vmatpush1.xpose.msra.mxu0 0.0
    %977 = vmatprep.subr.mxu0 0.0
    %978 = vmatpush1.xpose.msra.mxu0 0.0
    %979 = vmatprep.subr.mxu0 0.0
    %980 = vmatpush1.xpose.msra.mxu0 0.0
    %981 = vmatprep.subr.mxu0 0.0
    %982 = vmatpush1.xpose.msra.mxu0 0.0
    %983 = vmatprep.subr.mxu0 0.0
    %984 = vmatpush1.xpose.msra.mxu0 0.0
    %985 = vmatprep.subr.mxu0 0.0
    %986 = vmatpush1.xpose.msra.mxu0 0.0
    %987 = vmatprep.subr.mxu0 0.0
    %988 = vmatpush1.xpose.msra.mxu0 0.0
    %989 = vmatprep.subr.mxu0 0.0
    %990 = vmatpush1.xpose.msra.mxu0 %v957
    %991 = vmatprep.subr.mxu0 0.0
    %992 = vmatpush2.xpose.msra.mxu0 0.0
    %993 = vmatprep.subr.mxu0 0.0
    %994 = vmatpush2.xpose.msra.mxu0 0.0
    %995 = vmatprep.subr.mxu0 0.0
    %996 = vmatpush2.xpose.msra.mxu0 0.0
    %997 = vmatprep.subr.mxu0 0.0
    %998 = vmatpush2.xpose.msra.mxu0 0.0
    %999 = vmatprep.subr.mxu0 0.0
    %1000 = vmatpush2.xpose.msra.mxu0 0.0
    %1001 = vmatprep.subr.mxu0 0.0
    %1002 = vmatpush2.xpose.msra.mxu0 0.0
    %1003 = vmatprep.subr.mxu0 0.0
    %1004 = vmatpush2.xpose.msra.mxu0 0.0
    %1005 = vmatprep.subr.mxu0 0.0
    %1006 = vmatpush2.xpose.msra.mxu0 0.0
    %1007 = vmatprep.subr.mxu0 0.0
    %1008 = vmatpush2.xpose.msra.mxu0 0.0
    %1009 = vmatprep.subr.mxu0 0.0
    %1010 = vmatpush2.xpose.msra.mxu0 0.0
    %1011 = vmatprep.subr.mxu0 0.0
    %1012 = vmatpush2.xpose.msra.mxu0 0.0
    %1013 = vmatprep.subr.mxu0 0.0
    %1014 = vmatpush2.xpose.msra.mxu0 0.0
    %1015 = vmatprep.subr.mxu0 0.0
    %1016 = vmatpush2.xpose.msra.mxu0 0.0
    %1017 = vmatprep.subr.mxu0 0.0
    %1018 = vmatpush2.xpose.msra.mxu0 0.0
    %1019 = vmatprep.subr.mxu0 0.0
    %1020 = vmatpush2.xpose.msra.mxu0 0.0
    %1021 = vmatprep.subr.mxu0 0.0
    %1022 = vmatpush2.xpose.msra.mxu0 0.0
    %1023 = vmatprep.mubr.f32.mxu0 0.0
    %1024 = vmatmul.mubr.f32.gmra.mxu0 %v955
    %v1025 = vpop.f32.mrf.mxu0
    %v1026 = vadd.f32 0.0, %v1025
    %v1027 = vpop.f32.mrf.mxu0
    %1028 = vdwg.mxu0
    %v1029 = vmul.f32 %v1026, 0.35355338
    %v1030 = vadd.f32 %v1029, %v36
    %v1031 = vsel %vm270, %v1030, -inf
    %1032 = vmax.xlane.f32.xlu0 %v1031
    %v1033 = vpop.xlane.xlu0 %1032
    %v1034 = vsub.f32 %v1030, %v1033
    %v1035 = vmul.f32 %v1034, 1.442695
    %v1036 = vpow.pop %v1035
    %v1037 = vsel %vm270, %v1036, 0.0
    %1038 = vadd.xlane.f32.xlu0 %v1037
    %v1039 = vpop.xlane.xlu0 %1038
    %v1040 = vrcp.pop %v1039
    %v1041 = vmul.f32 %v1036, %v1040
    %1042 = vrot.lane.b32.xlu0 %v264, 64
    %v1043 = vpop.permute.xlu0 %1042
    %v1046 = vsel %vm270, %v1041, 0
    %1048 = vmatprep.subr.mxu0 0.0
    %1049 = vmatpush1.msra.mxu0 0.0
    %1050 = vmatprep.subr.mxu0 0.0
    %1051 = vmatpush1.msra.mxu0 0.0
    %1052 = vmatprep.subr.mxu0 0.0
    %1053 = vmatpush1.msra.mxu0 0.0
    %1054 = vmatprep.subr.mxu0 0.0
    %1055 = vmatpush1.msra.mxu0 0.0
    %1056 = vmatprep.subr.mxu0 0.0
    %1057 = vmatpush1.msra.mxu0 0.0
    %1058 = vmatprep.subr.mxu0 0.0
    %1059 = vmatpush1.msra.mxu0 0.0
    %1060 = vmatprep.subr.mxu0 0.0
    %1061 = vmatpush1.msra.mxu0 0.0
    %1062 = vmatprep.subr.mxu0 0.0
    %1063 = vmatpush1.msra.mxu0 0.0
    %1064 = vmatprep.subr.mxu0 0.0
    %1065 = vmatpush1.msra.mxu0 0.0
    %1066 = vmatprep.subr.mxu0 0.0
    %1067 = vmatpush1.msra.mxu0 0.0
    %1068 = vmatprep.subr.mxu0 0.0
    %1069 = vmatpush1.msra.mxu0 0.0
    %1070 = vmatprep.subr.mxu0 0.0
    %1071 = vmatpush1.msra.mxu0 0.0
    %1072 = vmatprep.subr.mxu0 0.0
    %1073 = vmatpush1.msra.mxu0 0.0
    %1074 = vmatprep.subr.mxu0 0.0
    %1075 = vmatpush1.msra.mxu0 0.0
    %1076 = vmatprep.subr.mxu0 0.0
    %1077 = vmatpush1.msra.mxu0 0.0
    %1078 = vmatprep.subr.mxu0 0.0
    %1079 = vmatpush1.msra.mxu0 %v1043
    %1080 = vmatprep.subr.mxu0 0.0
    %1081 = vmatpush2.msra.mxu0 0.0
    %1082 = vmatprep.subr.mxu0 0.0
    %1083 = vmatpush2.msra.mxu0 0.0
    %1084 = vmatprep.subr.mxu0 0.0
    %1085 = vmatpush2.msra.mxu0 0.0
    %1086 = vmatprep.subr.mxu0 0.0
    %1087 = vmatpush2.msra.mxu0 0.0
    %1088 = vmatprep.subr.mxu0 0.0
    %1089 = vmatpush2.msra.mxu0 0.0
    %1090 = vmatprep.subr.mxu0 0.0
    %1091 = vmatpush2.msra.mxu0 0.0
    %1092 = vmatprep.subr.mxu0 0.0
    %1093 = vmatpush2.msra.mxu0 0.0
    %1094 = vmatprep.subr.mxu0 0.0
    %1095 = vmatpush2.msra.mxu0 0.0
    %1096 = vmatprep.subr.mxu0 0.0
    %1097 = vmatpush2.msra.mxu0 0.0
    %1098 = vmatprep.subr.mxu0 0.0
    %1099 = vmatpush2.msra.mxu0 0.0
    %1100 = vmatprep.subr.mxu0 0.0
    %1101 = vmatpush2.msra.mxu0 0.0
    %1102 = vmatprep.subr.mxu0 0.0
    %1103 = vmatpush2.msra.mxu0 0.0
    %1104 = vmatprep.subr.mxu0 0.0
    %1105 = vmatpush2.msra.mxu0 0.0
    %1106 = vmatprep.subr.mxu0 0.0
    %1107 = vmatpush2.msra.mxu0 0.0
    %1108 = vmatprep.subr.mxu0 0.0
    %1109 = vmatpush2.msra.mxu0 0.0
    %1110 = vmatprep.subr.mxu0 0.0
    %1111 = vmatpush2.msra.mxu0 0.0
    %1112 = vmatprep.mubr.f32.mxu0 0.0
    %1113 = vmatmul.mubr.f32.gmra.mxu0 %v1046
    %v1114 = vpop.f32.mrf.mxu0
    %v1115 = vadd.f32 0.0, %v1114
    %v1116 = vpop.f32.mrf.mxu0
    %1117 = vdwg.mxu0
    %1118 = vrot.lane.b32.xlu0 %v264, 120
    %v1119 = vpop.permute.xlu0 %1118
    %1120 = vrot.lane.b32.xlu0 %v264, 88
    %v1121 = vpop.permute.xlu0 %1120
    %v1122 = vsel %vm270, %v1119, 0
    %v1124 = vsel %vm270, %v1121, 0
    %1126 = vmatprep.subr.mxu0 0.0
    %1127 = vmatpush1.xpose.msra.mxu0 0.0
    %1128 = vmatprep.subr.mxu0 0.0
    %1129 = vmatpush1.xpose.msra.mxu0 0.0
    %1130 = vmatprep.subr.mxu0 0.0
    %1131 = vmatpush1.xpose.msra.mxu0 0.0
    %1132 = vmatprep.subr.mxu0 0.0
    %1133 = vmatpush1.xpose.msra.mxu0 0.0
    %1134 = vmatprep.subr.mxu0 0.0
    %1135 = vmatpush1.xpose.msra.mxu0 0.0
    %1136 = vmatprep.subr.mxu0 0.0
    %1137 = vmatpush1.xpose.msra.mxu0 0.0
    %1138 = vmatprep.subr.mxu0 0.0
    %1139 = vmatpush1.xpose.msra.mxu0 0.0
    %1140 = vmatprep.subr.mxu0 0.0
    %1141 = vmatpush1.xpose.msra.mxu0 0.0
    %1142 = vmatprep.subr.mxu0 0.0
    %1143 = vmatpush1.xpose.msra.mxu0 0.0
    %1144 = vmatprep.subr.mxu0 0.0
    %1145 = vmatpush1.xpose.msra.mxu0 0.0
    %1146 = vmatprep.subr.mxu0 0.0
    %1147 = vmatpush1.xpose.msra.mxu0 0.0
    %1148 = vmatprep.subr.mxu0 0.0
    %1149 = vmatpush1.xpose.msra.mxu0 0.0
    %1150 = vmatprep.subr.mxu0 0.0
    %1151 = vmatpush1.xpose.msra.mxu0 0.0
    %1152 = vmatprep.subr.mxu0 0.0
    %1153 = vmatpush1.xpose.msra.mxu0 0.0
    %1154 = vmatprep.subr.mxu0 0.0
    %1155 = vmatpush1.xpose.msra.mxu0 0.0
    %1156 = vmatprep.subr.mxu0 0.0
    %1157 = vmatpush1.xpose.msra.mxu0 %v1124
    %1158 = vmatprep.subr.mxu0 0.0
    %1159 = vmatpush2.xpose.msra.mxu0 0.0
    %1160 = vmatprep.subr.mxu0 0.0
    %1161 = vmatpush2.xpose.msra.mxu0 0.0
    %1162 = vmatprep.subr.mxu0 0.0
    %1163 = vmatpush2.xpose.msra.mxu0 0.0
    %1164 = vmatprep.subr.mxu0 0.0
    %1165 = vmatpush2.xpose.msra.mxu0 0.0
    %1166 = vmatprep.subr.mxu0 0.0
    %1167 = vmatpush2.xpose.msra.mxu0 0.0
    %1168 = vmatprep.subr.mxu0 0.0
    %1169 = vmatpush2.xpose.msra.mxu0 0.0
    %1170 = vmatprep.subr.mxu0 0.0
    %1171 = vmatpush2.xpose.msra.mxu0 0.0
    %1172 = vmatprep.subr.mxu0 0.0
    %1173 = vmatpush2.xpose.msra.mxu0 0.0
    %1174 = vmatprep.subr.mxu0 0.0
    %1175 = vmatpush2.xpose.msra.mxu0 0.0
    %1176 = vmatprep.subr.mxu0 0.0
    %1177 = vmatpush2.xpose.msra.mxu0 0.0
    %1178 = vmatprep.subr.mxu0 0.0
    %1179 = vmatpush2.xpose.msra.mxu0 0.0
    %1180 = vmatprep.subr.mxu0 0.0
    %1181 = vmatpush2.xpose.msra.mxu0 0.0
    %1182 = vmatprep.subr.mxu0 0.0
    %1183 = vmatpush2.xpose.msra.mxu0 0.0
    %1184 = vmatprep.subr.mxu0 0.0
    %1185 = vmatpush2.xpose.msra.mxu0 0.0
    %1186 = vmatprep.subr.mxu0 0.0
    %1187 = vmatpush2.xpose.msra.mxu0 0.0
    %1188 = vmatprep.subr.mxu0 0.0
    %1189 = vmatpush2.xpose.msra.mxu0 0.0
    %1190 = vmatprep.mubr.f32.mxu0 0.0
    %1191 = vmatmul.mubr.f32.gmra.mxu0 %v1122
    %v1192 = vpop.f32.mrf.mxu0
    %v1193 = vadd.f32 0.0, %v1192
    %v1194 = vpop.f32.mrf.mxu0
    %1195 = vdwg.mxu0
    %v1196 = vmul.f32 %v1193, 0.35355338
    %v1197 = vadd.f32 %v1196, %v36
    %v1198 = vsel %vm270, %v1197, -inf
    %1199 = vmax.xlane.f32.xlu0 %v1198
    %v1200 = vpop.xlane.xlu0 %1199
    %v1201 = vsub.f32 %v1197, %v1200
    %v1202 = vmul.f32 %v1201, 1.442695
    %v1203 = vpow.pop %v1202
    %v1204 = vsel %vm270, %v1203, 0.0
    %1205 = vadd.xlane.f32.xlu0 %v1204
    %v1206 = vpop.xlane.xlu0 %1205
    %v1207 = vrcp.pop %v1206
    %v1208 = vmul.f32 %v1203, %v1207
    %1209 = vrot.lane.b32.xlu0 %v264, 56
    %v1210 = vpop.permute.xlu0 %1209
    %v1213 = vsel %vm270, %v1208, 0
    %1215 = vmatprep.subr.mxu0 0.0
    %1216 = vmatpush1.msra.mxu0 0.0
    %1217 = vmatprep.subr.mxu0 0.0
    %1218 = vmatpush1.msra.mxu0 0.0
    %1219 = vmatprep.subr.mxu0 0.0
    %1220 = vmatpush1.msra.mxu0 0.0
    %1221 = vmatprep.subr.mxu0 0.0
    %1222 = vmatpush1.msra.mxu0 0.0
    %1223 = vmatprep.subr.mxu0 0.0
    %1224 = vmatpush1.msra.mxu0 0.0
    %1225 = vmatprep.subr.mxu0 0.0
    %1226 = vmatpush1.msra.mxu0 0.0
    %1227 = vmatprep.subr.mxu0 0.0
    %1228 = vmatpush1.msra.mxu0 0.0
    %1229 = vmatprep.subr.mxu0 0.0
    %1230 = vmatpush1.msra.mxu0 0.0
    %1231 = vmatprep.subr.mxu0 0.0
    %1232 = vmatpush1.msra.mxu0 0.0
    %1233 = vmatprep.subr.mxu0 0.0
    %1234 = vmatpush1.msra.mxu0 0.0
    %1235 = vmatprep.subr.mxu0 0.0
    %1236 = vmatpush1.msra.mxu0 0.0
    %1237 = vmatprep.subr.mxu0 0.0
    %1238 = vmatpush1.msra.mxu0 0.0
    %1239 = vmatprep.subr.mxu0 0.0
    %1240 = vmatpush1.msra.mxu0 0.0
    %1241 = vmatprep.subr.mxu0 0.0
    %1242 = vmatpush1.msra.mxu0 0.0
    %1243 = vmatprep.subr.mxu0 0.0
    %1244 = vmatpush1.msra.mxu0 0.0
    %1245 = vmatprep.subr.mxu0 0.0
    %1246 = vmatpush1.msra.mxu0 %v1210
    %1247 = vmatprep.subr.mxu0 0.0
    %1248 = vmatpush2.msra.mxu0 0.0
    %1249 = vmatprep.subr.mxu0 0.0
    %1250 = vmatpush2.msra.mxu0 0.0
    %1251 = vmatprep.subr.mxu0 0.0
    %1252 = vmatpush2.msra.mxu0 0.0
    %1253 = vmatprep.subr.mxu0 0.0
    %1254 = vmatpush2.msra.mxu0 0.0
    %1255 = vmatprep.subr.mxu0 0.0
    %1256 = vmatpush2.msra.mxu0 0.0
    %1257 = vmatprep.subr.mxu0 0.0
    %1258 = vmatpush2.msra.mxu0 0.0
    %1259 = vmatprep.subr.mxu0 0.0
    %1260 = vmatpush2.msra.mxu0 0.0
    %1261 = vmatprep.subr.mxu0 0.0
    %1262 = vmatpush2.msra.mxu0 0.0
    %1263 = vmatprep.subr.mxu0 0.0
    %1264 = vmatpush2.msra.mxu0 0.0
    %1265 = vmatprep.subr.mxu0 0.0
    %1266 = vmatpush2.msra.mxu0 0.0
    %1267 = vmatprep.subr.mxu0 0.0
    %1268 = vmatpush2.msra.mxu0 0.0
    %1269 = vmatprep.subr.mxu0 0.0
    %1270 = vmatpush2.msra.mxu0 0.0
    %1271 = vmatprep.subr.mxu0 0.0
    %1272 = vmatpush2.msra.mxu0 0.0
    %1273 = vmatprep.subr.mxu0 0.0
    %1274 = vmatpush2.msra.mxu0 0.0
    %1275 = vmatprep.subr.mxu0 0.0
    %1276 = vmatpush2.msra.mxu0 0.0
    %1277 = vmatprep.subr.mxu0 0.0
    %1278 = vmatpush2.msra.mxu0 0.0
    %1279 = vmatprep.mubr.f32.mxu0 0.0
    %1280 = vmatmul.mubr.f32.gmra.mxu0 %v1213
    %v1281 = vpop.f32.mrf.mxu0
    %v1282 = vadd.f32 0.0, %v1281
    %v1283 = vpop.f32.mrf.mxu0
    %1284 = vdwg.mxu0
    %1285 = vrot.lane.b32.xlu0 %v264, 112
    %v1286 = vpop.permute.xlu0 %1285
    %1287 = vrot.lane.b32.xlu0 %v264, 80
    %v1288 = vpop.permute.xlu0 %1287
    %v1289 = vsel %vm270, %v1286, 0
    %v1291 = vsel %vm270, %v1288, 0
    %1293 = vmatprep.subr.mxu0 0.0
    %1294 = vmatpush1.xpose.msra.mxu0 0.0
    %1295 = vmatprep.subr.mxu0 0.0
    %1296 = vmatpush1.xpose.msra.mxu0 0.0
    %1297 = vmatprep.subr.mxu0 0.0
    %1298 = vmatpush1.xpose.msra.mxu0 0.0
    %1299 = vmatprep.subr.mxu0 0.0
    %1300 = vmatpush1.xpose.msra.mxu0 0.0
    %1301 = vmatprep.subr.mxu0 0.0
    %1302 = vmatpush1.xpose.msra.mxu0 0.0
    %1303 = vmatprep.subr.mxu0 0.0
    %1304 = vmatpush1.xpose.msra.mxu0 0.0
    %1305 = vmatprep.subr.mxu0 0.0
    %1306 = vmatpush1.xpose.msra.mxu0 0.0
    %1307 = vmatprep.subr.mxu0 0.0
    %1308 = vmatpush1.xpose.msra.mxu0 0.0
    %1309 = vmatprep.subr.mxu0 0.0
    %1310 = vmatpush1.xpose.msra.mxu0 0.0
    %1311 = vmatprep.subr.mxu0 0.0
    %1312 = vmatpush1.xpose.msra.mxu0 0.0
    %1313 = vmatprep.subr.mxu0 0.0
    %1314 = vmatpush1.xpose.msra.mxu0 0.0
    %1315 = vmatprep.subr.mxu0 0.0
    %1316 = vmatpush1.xpose.msra.mxu0 0.0
    %1317 = vmatprep.subr.mxu0 0.0
    %1318 = vmatpush1.xpose.msra.mxu0 0.0
    %1319 = vmatprep.subr.mxu0 0.0
    %1320 = vmatpush1.xpose.msra.mxu0 0.0
    %1321 = vmatprep.subr.mxu0 0.0
    %1322 = vmatpush1.xpose.msra.mxu0 0.0
    %1323 = vmatprep.subr.mxu0 0.0
    %1324 = vmatpush1.xpose.msra.mxu0 %v1291
    %1325 = vmatprep.subr.mxu0 0.0
    %1326 = vmatpush2.xpose.msra.mxu0 0.0
    %1327 = vmatprep.subr.mxu0 0.0
    %1328 = vmatpush2.xpose.msra.mxu0 0.0
    %1329 = vmatprep.subr.mxu0 0.0
    %1330 = vmatpush2.xpose.msra.mxu0 0.0
    %1331 = vmatprep.subr.mxu0 0.0
    %1332 = vmatpush2.xpose.msra.mxu0 0.0
    %1333 = vmatprep.subr.mxu0 0.0
    %1334 = vmatpush2.xpose.msra.mxu0 0.0
    %1335 = vmatprep.subr.mxu0 0.0
    %1336 = vmatpush2.xpose.msra.mxu0 0.0
    %1337 = vmatprep.subr.mxu0 0.0
    %1338 = vmatpush2.xpose.msra.mxu0 0.0
    %1339 = vmatprep.subr.mxu0 0.0
    %1340 = vmatpush2.xpose.msra.mxu0 0.0
    %1341 = vmatprep.subr.mxu0 0.0
    %1342 = vmatpush2.xpose.msra.mxu0 0.0
    %1343 = vmatprep.subr.mxu0 0.0
    %1344 = vmatpush2.xpose.msra.mxu0 0.0
    %1345 = vmatprep.subr.mxu0 0.0
    %1346 = vmatpush2.xpose.msra.mxu0 0.0
    %1347 = vmatprep.subr.mxu0 0.0
    %1348 = vmatpush2.xpose.msra.mxu0 0.0
    %1349 = vmatprep.subr.mxu0 0.0
    %1350 = vmatpush2.xpose.msra.mxu0 0.0
    %1351 = vmatprep.subr.mxu0 0.0
    %1352 = vmatpush2.xpose.msra.mxu0 0.0
    %1353 = vmatprep.subr.mxu0 0.0
    %1354 = vmatpush2.xpose.msra.mxu0 0.0
    %1355 = vmatprep.subr.mxu0 0.0
    %1356 = vmatpush2.xpose.msra.mxu0 0.0
    %1357 = vmatprep.mubr.f32.mxu0 0.0
    %1358 = vmatmul.mubr.f32.gmra.mxu0 %v1289
    %v1359 = vpop.f32.mrf.mxu0
    %v1360 = vadd.f32 0.0, %v1359
    %v1361 = vpop.f32.mrf.mxu0
    %1362 = vdwg.mxu0
    %v1363 = vmul.f32 %v1360, 0.35355338
    %v1364 = vadd.f32 %v1363, %v36
    %v1365 = vsel %vm270, %v1364, -inf
    %1366 = vmax.xlane.f32.xlu0 %v1365
    %v1367 = vpop.xlane.xlu0 %1366
    %v1368 = vsub.f32 %v1364, %v1367
    %v1369 = vmul.f32 %v1368, 1.442695
    %v1370 = vpow.pop %v1369
    %v1371 = vsel %vm270, %v1370, 0.0
    %1372 = vadd.xlane.f32.xlu0 %v1371
    %v1373 = vpop.xlane.xlu0 %1372
    %v1374 = vrcp.pop %v1373
    %v1375 = vmul.f32 %v1370, %v1374
    %1376 = vrot.lane.b32.xlu0 %v264, 48
    %v1377 = vpop.permute.xlu0 %1376
    %v1380 = vsel %vm270, %v1375, 0
    %1382 = vmatprep.subr.mxu0 0.0
    %1383 = vmatpush1.msra.mxu0 0.0
    %1384 = vmatprep.subr.mxu0 0.0
    %1385 = vmatpush1.msra.mxu0 0.0
    %1386 = vmatprep.subr.mxu0 0.0
    %1387 = vmatpush1.msra.mxu0 0.0
    %1388 = vmatprep.subr.mxu0 0.0
    %1389 = vmatpush1.msra.mxu0 0.0
    %1390 = vmatprep.subr.mxu0 0.0
    %1391 = vmatpush1.msra.mxu0 0.0
    %1392 = vmatprep.subr.mxu0 0.0
    %1393 = vmatpush1.msra.mxu0 0.0
    %1394 = vmatprep.subr.mxu0 0.0
    %1395 = vmatpush1.msra.mxu0 0.0
    %1396 = vmatprep.subr.mxu0 0.0
    %1397 = vmatpush1.msra.mxu0 0.0
    %1398 = vmatprep.subr.mxu0 0.0
    %1399 = vmatpush1.msra.mxu0 0.0
    %1400 = vmatprep.subr.mxu0 0.0
    %1401 = vmatpush1.msra.mxu0 0.0
    %1402 = vmatprep.subr.mxu0 0.0
    %1403 = vmatpush1.msra.mxu0 0.0
    %1404 = vmatprep.subr.mxu0 0.0
    %1405 = vmatpush1.msra.mxu0 0.0
    %1406 = vmatprep.subr.mxu0 0.0
    %1407 = vmatpush1.msra.mxu0 0.0
    %1408 = vmatprep.subr.mxu0 0.0
    %1409 = vmatpush1.msra.mxu0 0.0
    %1410 = vmatprep.subr.mxu0 0.0
    %1411 = vmatpush1.msra.mxu0 0.0
    %1412 = vmatprep.subr.mxu0 0.0
    %1413 = vmatpush1.msra.mxu0 %v1377
    %1414 = vmatprep.subr.mxu0 0.0
    %1415 = vmatpush2.msra.mxu0 0.0
    %1416 = vmatprep.subr.mxu0 0.0
    %1417 = vmatpush2.msra.mxu0 0.0
    %1418 = vmatprep.subr.mxu0 0.0
    %1419 = vmatpush2.msra.mxu0 0.0
    %1420 = vmatprep.subr.mxu0 0.0
    %1421 = vmatpush2.msra.mxu0 0.0
    %1422 = vmatprep.subr.mxu0 0.0
    %1423 = vmatpush2.msra.mxu0 0.0
    %1424 = vmatprep.subr.mxu0 0.0
    %1425 = vmatpush2.msra.mxu0 0.0
    %1426 = vmatprep.subr.mxu0 0.0
    %1427 = vmatpush2.msra.mxu0 0.0
    %1428 = vmatprep.subr.mxu0 0.0
    %1429 = vmatpush2.msra.mxu0 0.0
    %1430 = vmatprep.subr.mxu0 0.0
    %1431 = vmatpush2.msra.mxu0 0.0
    %1432 = vmatprep.subr.mxu0 0.0
    %1433 = vmatpush2.msra.mxu0 0.0
    %1434 = vmatprep.subr.mxu0 0.0
    %1435 = vmatpush2.msra.mxu0 0.0
    %1436 = vmatprep.subr.mxu0 0.0
    %1437 = vmatpush2.msra.mxu0 0.0
    %1438 = vmatprep.subr.mxu0 0.0
    %1439 = vmatpush2.msra.mxu0 0.0
    %1440 = vmatprep.subr.mxu0 0.0
    %1441 = vmatpush2.msra.mxu0 0.0
    %1442 = vmatprep.subr.mxu0 0.0
    %1443 = vmatpush2.msra.mxu0 0.0
    %1444 = vmatprep.subr.mxu0 0.0
    %1445 = vmatpush2.msra.mxu0 0.0
    %1446 = vmatprep.mubr.f32.mxu0 0.0
    %1447 = vmatmul.mubr.f32.gmra.mxu0 %v1380
    %v1448 = vpop.f32.mrf.mxu0
    %v1449 = vadd.f32 0.0, %v1448
    %v1450 = vpop.f32.mrf.mxu0
    %1451 = vdwg.mxu0
    %1452 = vrot.lane.b32.xlu0 %v264, 104
    %v1453 = vpop.permute.xlu0 %1452
    %1454 = vrot.lane.b32.xlu0 %v264, 72
    %v1455 = vpop.permute.xlu0 %1454
    %v1456 = vsel %vm270, %v1453, 0
    %v1458 = vsel %vm270, %v1455, 0
    %1460 = vmatprep.subr.mxu0 0.0
    %1461 = vmatpush1.xpose.msra.mxu0 0.0
    %1462 = vmatprep.subr.mxu0 0.0
    %1463 = vmatpush1.xpose.msra.mxu0 0.0
    %1464 = vmatprep.subr.mxu0 0.0
    %1465 = vmatpush1.xpose.msra.mxu0 0.0
    %1466 = vmatprep.subr.mxu0 0.0
    %1467 = vmatpush1.xpose.msra.mxu0 0.0
    %1468 = vmatprep.subr.mxu0 0.0
    %1469 = vmatpush1.xpose.msra.mxu0 0.0
    %1470 = vmatprep.subr.mxu0 0.0
    %1471 = vmatpush1.xpose.msra.mxu0 0.0
    %1472 = vmatprep.subr.mxu0 0.0
    %1473 = vmatpush1.xpose.msra.mxu0 0.0
    %1474 = vmatprep.subr.mxu0 0.0
    %1475 = vmatpush1.xpose.msra.mxu0 0.0
    %1476 = vmatprep.subr.mxu0 0.0
    %1477 = vmatpush1.xpose.msra.mxu0 0.0
    %1478 = vmatprep.subr.mxu0 0.0
    %1479 = vmatpush1.xpose.msra.mxu0 0.0
    %1480 = vmatprep.subr.mxu0 0.0
    %1481 = vmatpush1.xpose.msra.mxu0 0.0
    %1482 = vmatprep.subr.mxu0 0.0
    %1483 = vmatpush1.xpose.msra.mxu0 0.0
    %1484 = vmatprep.subr.mxu0 0.0
    %1485 = vmatpush1.xpose.msra.mxu0 0.0
    %1486 = vmatprep.subr.mxu0 0.0
    %1487 = vmatpush1.xpose.msra.mxu0 0.0
    %1488 = vmatprep.subr.mxu0 0.0
    %1489 = vmatpush1.xpose.msra.mxu0 0.0
    %1490 = vmatprep.subr.mxu0 0.0
    %1491 = vmatpush1.xpose.msra.mxu0 %v1458
    %1492 = vmatprep.subr.mxu0 0.0
    %1493 = vmatpush2.xpose.msra.mxu0 0.0
    %1494 = vmatprep.subr.mxu0 0.0
    %1495 = vmatpush2.xpose.msra.mxu0 0.0
    %1496 = vmatprep.subr.mxu0 0.0
    %1497 = vmatpush2.xpose.msra.mxu0 0.0
    %1498 = vmatprep.subr.mxu0 0.0
    %1499 = vmatpush2.xpose.msra.mxu0 0.0
    %1500 = vmatprep.subr.mxu0 0.0
    %1501 = vmatpush2.xpose.msra.mxu0 0.0
    %1502 = vmatprep.subr.mxu0 0.0
    %1503 = vmatpush2.xpose.msra.mxu0 0.0
    %1504 = vmatprep.subr.mxu0 0.0
    %1505 = vmatpush2.xpose.msra.mxu0 0.0
    %1506 = vmatprep.subr.mxu0 0.0
    %1507 = vmatpush2.xpose.msra.mxu0 0.0
    %1508 = vmatprep.subr.mxu0 0.0
    %1509 = vmatpush2.xpose.msra.mxu0 0.0
    %1510 = vmatprep.subr.mxu0 0.0
    %1511 = vmatpush2.xpose.msra.mxu0 0.0
    %1512 = vmatprep.subr.mxu0 0.0
    %1513 = vmatpush2.xpose.msra.mxu0 0.0
    %1514 = vmatprep.subr.mxu0 0.0
    %1515 = vmatpush2.xpose.msra.mxu0 0.0
    %1516 = vmatprep.subr.mxu0 0.0
    %1517 = vmatpush2.xpose.msra.mxu0 0.0
    %1518 = vmatprep.subr.mxu0 0.0
    %1519 = vmatpush2.xpose.msra.mxu0 0.0
    %1520 = vmatprep.subr.mxu0 0.0
    %1521 = vmatpush2.xpose.msra.mxu0 0.0
    %1522 = vmatprep.subr.mxu0 0.0
    %1523 = vmatpush2.xpose.msra.mxu0 0.0
    %1524 = vmatprep.mubr.f32.mxu0 0.0
    %1525 = vmatmul.mubr.f32.gmra.mxu0 %v1456
    %v1526 = vpop.f32.mrf.mxu0
    %v1527 = vadd.f32 0.0, %v1526
    %v1528 = vpop.f32.mrf.mxu0
    %1529 = vdwg.mxu0
    %v1530 = vmul.f32 %v1527, 0.35355338
    %v1531 = vadd.f32 %v1530, %v36
    %v1532 = vsel %vm270, %v1531, -inf
    %1533 = vmax.xlane.f32.xlu0 %v1532
    %v1534 = vpop.xlane.xlu0 %1533
    %v1535 = vsub.f32 %v1531, %v1534
    %v1536 = vmul.f32 %v1535, 1.442695
    %v1537 = vpow.pop %v1536
    %v1538 = vsel %vm270, %v1537, 0.0
    %1539 = vadd.xlane.f32.xlu0 %v1538
    %v1540 = vpop.xlane.xlu0 %1539
    %v1541 = vrcp.pop %v1540
    %v1542 = vmul.f32 %v1537, %v1541
    %1543 = vrot.lane.b32.xlu0 %v264, 40
    %v1544 = vpop.permute.xlu0 %1543
    %v1547 = vsel %vm270, %v1542, 0
    %1549 = vmatprep.subr.mxu0 0.0
    %1550 = vmatpush1.msra.mxu0 0.0
    %1551 = vmatprep.subr.mxu0 0.0
    %1552 = vmatpush1.msra.mxu0 0.0
    %1553 = vmatprep.subr.mxu0 0.0
    %1554 = vmatpush1.msra.mxu0 0.0
    %1555 = vmatprep.subr.mxu0 0.0
    %1556 = vmatpush1.msra.mxu0 0.0
    %1557 = vmatprep.subr.mxu0 0.0
    %1558 = vmatpush1.msra.mxu0 0.0
    %1559 = vmatprep.subr.mxu0 0.0
    %1560 = vmatpush1.msra.mxu0 0.0
    %1561 = vmatprep.subr.mxu0 0.0
    %1562 = vmatpush1.msra.mxu0 0.0
    %1563 = vmatprep.subr.mxu0 0.0
    %1564 = vmatpush1.msra.mxu0 0.0
    %1565 = vmatprep.subr.mxu0 0.0
    %1566 = vmatpush1.msra.mxu0 0.0
    %1567 = vmatprep.subr.mxu0 0.0
    %1568 = vmatpush1.msra.mxu0 0.0
    %1569 = vmatprep.subr.mxu0 0.0
    %1570 = vmatpush1.msra.mxu0 0.0
    %1571 = vmatprep.subr.mxu0 0.0
    %1572 = vmatpush1.msra.mxu0 0.0
    %1573 = vmatprep.subr.mxu0 0.0
    %1574 = vmatpush1.msra.mxu0 0.0
    %1575 = vmatprep.subr.mxu0 0.0
    %1576 = vmatpush1.msra.mxu0 0.0
    %1577 = vmatprep.subr.mxu0 0.0
    %1578 = vmatpush1.msra.mxu0 0.0
    %1579 = vmatprep.subr.mxu0 0.0
    %1580 = vmatpush1.msra.mxu0 %v1544
    %1581 = vmatprep.subr.mxu0 0.0
    %1582 = vmatpush2.msra.mxu0 0.0
    %1583 = vmatprep.subr.mxu0 0.0
    %1584 = vmatpush2.msra.mxu0 0.0
    %1585 = vmatprep.subr.mxu0 0.0
    %1586 = vmatpush2.msra.mxu0 0.0
    %1587 = vmatprep.subr.mxu0 0.0
    %1588 = vmatpush2.msra.mxu0 0.0
    %1589 = vmatprep.subr.mxu0 0.0
    %1590 = vmatpush2.msra.mxu0 0.0
    %1591 = vmatprep.subr.mxu0 0.0
    %1592 = vmatpush2.msra.mxu0 0.0
    %1593 = vmatprep.subr.mxu0 0.0
    %1594 = vmatpush2.msra.mxu0 0.0
    %1595 = vmatprep.subr.mxu0 0.0
    %1596 = vmatpush2.msra.mxu0 0.0
    %1597 = vmatprep.subr.mxu0 0.0
    %1598 = vmatpush2.msra.mxu0 0.0
    %1599 = vmatprep.subr.mxu0 0.0
    %1600 = vmatpush2.msra.mxu0 0.0
    %1601 = vmatprep.subr.mxu0 0.0
    %1602 = vmatpush2.msra.mxu0 0.0
    %1603 = vmatprep.subr.mxu0 0.0
    %1604 = vmatpush2.msra.mxu0 0.0
    %1605 = vmatprep.subr.mxu0 0.0
    %1606 = vmatpush2.msra.mxu0 0.0
    %1607 = vmatprep.subr.mxu0 0.0
    %1608 = vmatpush2.msra.mxu0 0.0
    %1609 = vmatprep.subr.mxu0 0.0
    %1610 = vmatpush2.msra.mxu0 0.0
    %1611 = vmatprep.subr.mxu0 0.0
    %1612 = vmatpush2.msra.mxu0 0.0
    %1613 = vmatprep.mubr.f32.mxu0 0.0
    %1614 = vmatmul.mubr.f32.gmra.mxu0 %v1547
    %v1615 = vpop.f32.mrf.mxu0
    %v1616 = vadd.f32 0.0, %v1615
    %v1617 = vpop.f32.mrf.mxu0
    %1618 = vdwg.mxu0
    %1620 = vrot.lane.b32.xlu0 %v1282, 8
    %v1621 = vpop.permute.xlu0 %1620
    %1624 = vrot.lane.b32.xlu0 %v1449, 16
    %v1625 = vpop.permute.xlu0 %1624
    %1628 = vrot.lane.b32.xlu0 %v1616, 24
    %v1629 = vpop.permute.xlu0 %1628
    %v1631 = vsel %vm270, %v1115, %v1621
    %v1632 = vsel %vm948, %v1631, %v1625
    %v1633 = vsel %vm950, %v1632, %v1629
    %v1634 = vld [vmem:[%s4] sm:$0xff]
    %v1635 = vld [vmem:[%s4 + $0x8] sm:$0xff]
    %v1636 = vld [vmem:[%s4 + $0x10] sm:$0xff]
    %v1637 = vld [vmem:[%s4 + $0x18] sm:$0xff]
    %v1638 = vld [vmem:[%s4 + $0x20] sm:$0x1]
    %v1639 = vlaneseq
    %v1640 = vshrl.u32 %v1639, 7
    %v1641 = vsub.s32 0, %v1640
    %v1642 = vrot.slane %v1638, %v1641
    %v1644 = vsel %vm149, %v951, 0
    %v1647 = vsel %vm149, %v1633, 0
    %1649 = vmatprep.subr.mxu0 0.0
    %1650 = vmatpush1.msra.mxu0 0.0
    %1651 = vmatprep.subr.mxu0 0.0
    %1652 = vmatpush1.msra.mxu0 0.0
    %1653 = vmatprep.subr.mxu0 0.0
    %1654 = vmatpush1.msra.mxu0 0.0
    %1655 = vmatprep.subr.mxu0 0.0
    %1656 = vmatpush1.msra.mxu0 0.0
    %1657 = vmatprep.subr.mxu0 0.0
    %1658 = vmatpush1.msra.mxu0 0.0
    %1659 = vmatprep.subr.mxu0 0.0
    %1660 = vmatpush1.msra.mxu0 0.0
    %1661 = vmatprep.subr.mxu0 0.0
    %1662 = vmatpush1.msra.mxu0 0.0
    %1663 = vmatprep.subr.mxu0 0.0
    %1664 = vmatpush1.msra.mxu0 0.0
    %1665 = vmatprep.subr.mxu0 0.0
    %1666 = vmatpush1.msra.mxu0 0.0
    %1667 = vmatprep.subr.mxu0 0.0
    %1668 = vmatpush1.msra.mxu0 0.0
    %1669 = vmatprep.subr.mxu0 0.0
    %1670 = vmatpush1.msra.mxu0 0.0
    %1671 = vmatprep.subr.mxu0 0.0
    %1672 = vmatpush1.msra.mxu0 0.0
    %1673 = vmatprep.subr.mxu0 0.0
    %1674 = vmatpush1.msra.mxu0 %v1637
    %1675 = vmatprep.subr.mxu0 0.0
    %1676 = vmatpush1.msra.mxu0 %v1636
    %1677 = vmatprep.subr.mxu0 0.0
    %1678 = vmatpush1.msra.mxu0 %v1635
    %1679 = vmatprep.subr.mxu0 0.0
    %1680 = vmatpush1.msra.mxu0 %v1634
    %1681 = vmatprep.subr.mxu0 0.0
    %1682 = vmatpush2.msra.mxu0 0.0
    %1683 = vmatprep.subr.mxu0 0.0
    %1684 = vmatpush2.msra.mxu0 0.0
    %1685 = vmatprep.subr.mxu0 0.0
    %1686 = vmatpush2.msra.mxu0 0.0
    %1687 = vmatprep.subr.mxu0 0.0
    %1688 = vmatpush2.msra.mxu0 0.0
    %1689 = vmatprep.subr.mxu0 0.0
    %1690 = vmatpush2.msra.mxu0 0.0
    %1691 = vmatprep.subr.mxu0 0.0
    %1692 = vmatpush2.msra.mxu0 0.0
    %1693 = vmatprep.subr.mxu0 0.0
    %1694 = vmatpush2.msra.mxu0 0.0
    %1695 = vmatprep.subr.mxu0 0.0
    %1696 = vmatpush2.msra.mxu0 0.0
    %1697 = vmatprep.subr.mxu0 0.0
    %1698 = vmatpush2.msra.mxu0 0.0
    %1699 = vmatprep.subr.mxu0 0.0
    %1700 = vmatpush2.msra.mxu0 0.0
    %1701 = vmatprep.subr.mxu0 0.0
    %1702 = vmatpush2.msra.mxu0 0.0
    %1703 = vmatprep.subr.mxu0 0.0
    %1704 = vmatpush2.msra.mxu0 0.0
    %1705 = vmatprep.subr.mxu0 0.0
    %1706 = vmatpush2.msra.mxu0 0.0
    %1707 = vmatprep.subr.mxu0 0.0
    %1708 = vmatpush2.msra.mxu0 0.0
    %1709 = vmatprep.subr.mxu0 0.0
    %1710 = vmatpush2.msra.mxu0 0.0
    %1711 = vmatprep.subr.mxu0 0.0
    %1712 = vmatpush2.msra.mxu0 0.0
    %1713 = vmatprep.mubr.f32.mxu0 0.0
    %1714 = vmatmul.mubr.f32.gmra.mxu0 %v1644
    %v1715 = vpop.f32.mrf.mxu0
    %v1716 = vadd.f32 %v1642, %v1715
    %v1717 = vpop.f32.mrf.mxu0
    %1718 = vmatprep.mubr.f32.mxu0 0.0
    %1719 = vmatmul.mubr.f32.gmra.mxu0 %v1647
    %v1720 = vpop.f32.mrf.mxu0
    %v1721 = vadd.f32 %v1642, %v1720
    %v1722 = vpop.f32.mrf.mxu0
    %1723 = vdwg.mxu0
    %v1724 = vadd.f32 %v141, %v1716
    %v1725 = vadd.f32 %v146, %v1721
    %v1726 = vsel %vm149, %v1724, 0.0
    %1727 = vadd.xlane.f32.xlu0 %v1726
    %v1728 = vpop.xlane.xlu0 %1727
    %v1729 = vsel %vm149, %v1725, 0.0
    %1730 = vadd.xlane.f32.xlu0 %v1729
    %v1731 = vpop.xlane.xlu0 %1730
    %v1732 = vmul.f32 %v1728, %v156
    %v1733 = vmul.f32 %v1731, %v156
    %v1734 = vsub.f32 %v1724, %v1732
    %v1735 = vsub.f32 %v1725, %v1733
    %v1736 = vmul.f32 %v1734, %v1734
    %v1737 = vmul.f32 %v1735, %v1735
    %v1738 = vsel %vm149, %v1736, 0.0
    %1739 = vadd.xlane.f32.xlu0 %v1738
    %v1740 = vpop.xlane.xlu0 %1739
    %v1741 = vsel %vm149, %v1737, 0.0
    %1742 = vadd.xlane.f32.xlu0 %v1741
    %v1743 = vpop.xlane.xlu0 %1742
    %v1744 = vmul.f32 %v1740, %v156
    %v1745 = vmul.f32 %v1743, %v156
    %v1746 = vadd.f32 %v1744, 1e-05
    %v1747 = vadd.f32 %v1745, 1e-05
    %v1748 = vrsqrt.pop %v1746
    %v1749 = vrsqrt.pop %v1747
    %v1750 = vmul.f32 %v1734, %v1748
    %v1751 = vmul.f32 %v1735, %v1749
    %v1752 = vld [vmem:[%s5] sm:$0xff]
    %v1753 = vld [vmem:[%s5 + $0x8] sm:$0xff]
    %v1754 = vld [vmem:[%s5 + $0x10] sm:$0xff]
    %v1755 = vld [vmem:[%s5 + $0x18] sm:$0xff]
    %v1756 = vld [vmem:[%s5 + $0x20] sm:$0x1]
    %v1757 = vlaneseq
    %v1758 = vshrl.u32 %v1757, 7
    %v1759 = vsub.s32 0, %v1758
    %v1760 = vrot.slane %v1756, %v1759
    %v1762 = vsel %vm149, %v1750, 0
    %v1765 = vsel %vm149, %v1751, 0
    %1767 = vmatprep.subr.mxu0 0.0
    %1768 = vmatpush1.msra.mxu0 0.0
    %1769 = vmatprep.subr.mxu0 0.0
    %1770 = vmatpush1.msra.mxu0 0.0
    %1771 = vmatprep.subr.mxu0 0.0
    %1772 = vmatpush1.msra.mxu0 0.0
    %1773 = vmatprep.subr.mxu0 0.0
    %1774 = vmatpush1.msra.mxu0 0.0
    %1775 = vmatprep.subr.mxu0 0.0
    %1776 = vmatpush1.msra.mxu0 0.0
    %1777 = vmatprep.subr.mxu0 0.0
    %1778 = vmatpush1.msra.mxu0 0.0
    %1779 = vmatprep.subr.mxu0 0.0
    %1780 = vmatpush1.msra.mxu0 0.0
    %1781 = vmatprep.subr.mxu0 0.0
    %1782 = vmatpush1.msra.mxu0 0.0
    %1783 = vmatprep.subr.mxu0 0.0
    %1784 = vmatpush1.msra.mxu0 0.0
    %1785 = vmatprep.subr.mxu0 0.0
    %1786 = vmatpush1.msra.mxu0 0.0
    %1787 = vmatprep.subr.mxu0 0.0
    %1788 = vmatpush1.msra.mxu0 0.0
    %1789 = vmatprep.subr.mxu0 0.0
    %1790 = vmatpush1.msra.mxu0 0.0
    %1791 = vmatprep.subr.mxu0 0.0
    %1792 = vmatpush1.msra.mxu0 %v1755
    %1793 = vmatprep.subr.mxu0 0.0
    %1794 = vmatpush1.msra.mxu0 %v1754
    %1795 = vmatprep.subr.mxu0 0.0
    %1796 = vmatpush1.msra.mxu0 %v1753
    %1797 = vmatprep.subr.mxu0 0.0
    %1798 = vmatpush1.msra.mxu0 %v1752
    %1799 = vmatprep.subr.mxu0 0.0
    %1800 = vmatpush2.msra.mxu0 0.0
    %1801 = vmatprep.subr.mxu0 0.0
    %1802 = vmatpush2.msra.mxu0 0.0
    %1803 = vmatprep.subr.mxu0 0.0
    %1804 = vmatpush2.msra.mxu0 0.0
    %1805 = vmatprep.subr.mxu0 0.0
    %1806 = vmatpush2.msra.mxu0 0.0
    %1807 = vmatprep.subr.mxu0 0.0
    %1808 = vmatpush2.msra.mxu0 0.0
    %1809 = vmatprep.subr.mxu0 0.0
    %1810 = vmatpush2.msra.mxu0 0.0
    %1811 = vmatprep.subr.mxu0 0.0
    %1812 = vmatpush2.msra.mxu0 0.0
    %1813 = vmatprep.subr.mxu0 0.0
    %1814 = vmatpush2.msra.mxu0 0.0
    %1815 = vmatprep.subr.mxu0 0.0
    %1816 = vmatpush2.msra.mxu0 0.0
    %1817 = vmatprep.subr.mxu0 0.0
    %1818 = vmatpush2.msra.mxu0 0.0
    %1819 = vmatprep.subr.mxu0 0.0
    %1820 = vmatpush2.msra.mxu0 0.0
    %1821 = vmatprep.subr.mxu0 0.0
    %1822 = vmatpush2.msra.mxu0 0.0
    %1823 = vmatprep.subr.mxu0 0.0
    %1824 = vmatpush2.msra.mxu0 0.0
    %1825 = vmatprep.subr.mxu0 0.0
    %1826 = vmatpush2.msra.mxu0 0.0
    %1827 = vmatprep.subr.mxu0 0.0
    %1828 = vmatpush2.msra.mxu0 0.0
    %1829 = vmatprep.subr.mxu0 0.0
    %1830 = vmatpush2.msra.mxu0 0.0
    %1831 = vmatprep.mubr.f32.mxu0 0.0
    %1832 = vmatmul.mubr.f32.gmra.mxu0 %v1762
    %v1833 = vpop.f32.mrf.mxu0
    %v1834 = vadd.f32 %v1760, %v1833
    %v1835 = vpop.f32.mrf.mxu0
    %1836 = vmatprep.mubr.f32.mxu0 0.0
    %1837 = vmatmul.mubr.f32.gmra.mxu0 %v1765
    %v1838 = vpop.f32.mrf.mxu0
    %v1839 = vadd.f32 %v1760, %v1838
    %v1840 = vpop.f32.mrf.mxu0
    %1841 = vdwg.mxu0
    %v1842 = vmul.f32 %v1834, %v1834
    %v1843 = vmul.f32 %v1839, %v1839
    %v1844 = vmul.f32 %v1834, %v1842
    %v1845 = vmul.f32 %v1839, %v1843
    %v1846 = vmul.f32 %v1844, 0.044715
    %v1847 = vmul.f32 %v1845, 0.044715
    %v1848 = vadd.f32 %v1834, %v1846
    %v1849 = vadd.f32 %v1839, %v1847
    %v1850 = vmul.f32 %v1848, 0.7978846
    %v1851 = vmul.f32 %v1849, 0.7978846
    %v1852 = vtanh.pop %v1850
    %v1853 = vtanh.pop %v1851
    %v1854 = vadd.f32 %v1852, 1.0
    %v1855 = vadd.f32 %v1853, 1.0
    %v1856 = vmul.f32 %v1854, 0.5
    %v1857 = vmul.f32 %v1855, 0.5
    %v1858 = vmul.f32 %v1834, %v1856
    %v1859 = vmul.f32 %v1839, %v1857
    %v1860 = vld [vmem:[%s6] sm:$0xff]
    %v1861 = vld [vmem:[%s6 + $0x8] sm:$0xff]
    %v1862 = vld [vmem:[%s6 + $0x10] sm:$0xff]
    %v1863 = vld [vmem:[%s6 + $0x18] sm:$0xff]
    %v1864 = vld [vmem:[%s6 + $0x20] sm:$0xff]
    %v1865 = vld [vmem:[%s6 + $0x28] sm:$0xff]
    %v1866 = vld [vmem:[%s6 + $0x30] sm:$0xff]
    %v1867 = vld [vmem:[%s6 + $0x38] sm:$0xff]
    %v1868 = vld [vmem:[%s6 + $0x40] sm:$0xff]
    %v1869 = vld [vmem:[%s6 + $0x48] sm:$0xff]
    %v1870 = vld [vmem:[%s6 + $0x50] sm:$0xff]
    %v1871 = vld [vmem:[%s6 + $0x58] sm:$0xff]
    %v1872 = vld [vmem:[%s6 + $0x60] sm:$0xff]
    %v1873 = vld [vmem:[%s6 + $0x68] sm:$0xff]
    %v1874 = vld [vmem:[%s6 + $0x70] sm:$0xff]
    %v1875 = vld [vmem:[%s6 + $0x78] sm:$0xff]
    %v1876 = vld [vmem:[%s6 + $0x80] sm:$0x1]
    %v1877 = vlaneseq
    %v1878 = vshrl.u32 %v1877, 7
    %v1879 = vsub.s32 0, %v1878
    %v1880 = vrot.slane %v1876, %v1879
    %1881 = vmatprep.subr.mxu0 0.0
    %1882 = vmatpush1.msra.mxu0 %v1875
    %1883 = vmatprep.subr.mxu0 0.0
    %1884 = vmatpush1.msra.mxu0 %v1874
    %1885 = vmatprep.subr.mxu0 0.0
    %1886 = vmatpush1.msra.mxu0 %v1873
    %1887 = vmatprep.subr.mxu0 0.0
    %1888 = vmatpush1.msra.mxu0 %v1872
    %1889 = vmatprep.subr.mxu0 0.0
    %1890 = vmatpush1.msra.mxu0 %v1871
    %1891 = vmatprep.subr.mxu0 0.0
    %1892 = vmatpush1.msra.mxu0 %v1870
    %1893 = vmatprep.subr.mxu0 0.0
    %1894 = vmatpush1.msra.mxu0 %v1869
    %1895 = vmatprep.subr.mxu0 0.0
    %1896 = vmatpush1.msra.mxu0 %v1868
    %1897 = vmatprep.subr.mxu0 0.0
    %1898 = vmatpush1.msra.mxu0 %v1867
    %1899 = vmatprep.subr.mxu0 0.0
    %1900 = vmatpush1.msra.mxu0 %v1866
    %1901 = vmatprep.subr.mxu0 0.0
    %1902 = vmatpush1.msra.mxu0 %v1865
    %1903 = vmatprep.subr.mxu0 0.0
    %1904 = vmatpush1.msra.mxu0 %v1864
    %1905 = vmatprep.subr.mxu0 0.0
    %1906 = vmatpush1.msra.mxu0 %v1863
    %1907 = vmatprep.subr.mxu0 0.0
    %1908 = vmatpush1.msra.mxu0 %v1862
    %1909 = vmatprep.subr.mxu0 0.0
    %1910 = vmatpush1.msra.mxu0 %v1861
    %1911 = vmatprep.subr.mxu0 0.0
    %1912 = vmatpush1.msra.mxu0 %v1860
    %1913 = vmatprep.subr.mxu0 0.0
    %1914 = vmatpush2.msra.mxu0 0.0
    %1915 = vmatprep.subr.mxu0 0.0
    %1916 = vmatpush2.msra.mxu0 0.0
    %1917 = vmatprep.subr.mxu0 0.0
    %1918 = vmatpush2.msra.mxu0 0.0
    %1919 = vmatprep.subr.mxu0 0.0
    %1920 = vmatpush2.msra.mxu0 0.0
    %1921 = vmatprep.subr.mxu0 0.0
    %1922 = vmatpush2.msra.mxu0 0.0
    %1923 = vmatprep.subr.mxu0 0.0
    %1924 = vmatpush2.msra.mxu0 0.0
    %1925 = vmatprep.subr.mxu0 0.0
    %1926 = vmatpush2.msra.mxu0 0.0
    %1927 = vmatprep.subr.mxu0 0.0
    %1928 = vmatpush2.msra.mxu0 0.0
    %1929 = vmatprep.subr.mxu0 0.0
    %1930 = vmatpush2.msra.mxu0 0.0
    %1931 = vmatprep.subr.mxu0 0.0
    %1932 = vmatpush2.msra.mxu0 0.0
    %1933 = vmatprep.subr.mxu0 0.0
    %1934 = vmatpush2.msra.mxu0 0.0
    %1935 = vmatprep.subr.mxu0 0.0
    %1936 = vmatpush2.msra.mxu0 0.0
    %1937 = vmatprep.subr.mxu0 0.0
    %1938 = vmatpush2.msra.mxu0 0.0
    %1939 = vmatprep.subr.mxu0 0.0
    %1940 = vmatpush2.msra.mxu0 0.0
    %1941 = vmatprep.subr.mxu0 0.0
    %1942 = vmatpush2.msra.mxu0 0.0
    %1943 = vmatprep.subr.mxu0 0.0
    %1944 = vmatpush2.msra.mxu0 0.0
    %1945 = vmatprep.mubr.f32.mxu0 0.0
    %1946 = vmatmul.mubr.f32.gmra.mxu0 %v1858
    %v1947 = vpop.f32.mrf.mxu0
    %v1948 = vadd.f32 %v1880, %v1947
    %v1949 = vpop.f32.mrf.mxu0
    %1950 = vmatprep.mubr.f32.mxu0 0.0
    %1951 = vmatmul.mubr.f32.gmra.mxu0 %v1859
    %v1952 = vpop.f32.mrf.mxu0
    %v1953 = vadd.f32 %v1880, %v1952
    %v1954 = vpop.f32.mrf.mxu0
    %1955 = vdwg.mxu0
    %v1956 = vadd.f32 %v1724, %v1948
    %v1957 = vadd.f32 %v1725, %v1953
    %v1958 = vsel %vm149, %v1956, 0.0
    %1959 = vadd.xlane.f32.xlu0 %v1958
    %v1960 = vpop.xlane.xlu0 %1959
    %v1961 = vsel %vm149, %v1957, 0.0
    %1962 = vadd.xlane.f32.xlu0 %v1961
    %v1963 = vpop.xlane.xlu0 %1962
    %v1964 = vmul.f32 %v1960, %v156
    %v1965 = vmul.f32 %v1963, %v156
    %v1966 = vsub.f32 %v1956, %v1964
    %v1967 = vsub.f32 %v1957, %v1965
    %v1968 = vmul.f32 %v1966, %v1966
    %v1969 = vmul.f32 %v1967, %v1967
    %v1970 = vsel %vm149, %v1968, 0.0
    %1971 = vadd.xlane.f32.xlu0 %v1970
    %v1972 = vpop.xlane.xlu0 %1971
    %v1973 = vsel %vm149, %v1969, 0.0
    %1974 = vadd.xlane.f32.xlu0 %v1973
    %v1975 = vpop.xlane.xlu0 %1974
    %v1976 = vmul.f32 %v1972, %v156
    %v1977 = vmul.f32 %v1975, %v156
    %v1978 = vadd.f32 %v1976, 1e-05
    %v1979 = vadd.f32 %v1977, 1e-05
    %v1980 = vrsqrt.pop %v1978
    %v1981 = vrsqrt.pop %v1979
    %v1982 = vmul.f32 %v1966, %v1980
    %v1983 = vmul.f32 %v1967, %v1981
    %s1984 = scalar_lea.vmem %s3, 40
    %v1985 = vld [vmem:[%s1984] sm:$0xff]
    %v1986 = vld [vmem:[%s1984 + $0x8] sm:$0xff]
    %v1987 = vld [vmem:[%s1984 + $0x10] sm:$0xff]
    %v1988 = vld [vmem:[%s1984 + $0x18] sm:$0xff]
    %v1989 = vld [vmem:[%s1984 + $0x20] sm:$0x1]
    %v1990 = vlaneseq
    %v1991 = vshrl.u32 %v1990, 7
    %v1992 = vsub.s32 0, %v1991
    %v1993 = vrot.slane %v1989, %v1992
    %v1995 = vsel %vm149, %v1982, 0
    %v1998 = vsel %vm149, %v1983, 0
    %2000 = vmatprep.subr.mxu0 0.0
    %2001 = vmatpush1.msra.mxu0 0.0
    %2002 = vmatprep.subr.mxu0 0.0
    %2003 = vmatpush1.msra.mxu0 0.0
    %2004 = vmatprep.subr.mxu0 0.0
    %2005 = vmatpush1.msra.mxu0 0.0
    %2006 = vmatprep.subr.mxu0 0.0
    %2007 = vmatpush1.msra.mxu0 0.0
    %2008 = vmatprep.subr.mxu0 0.0
    %2009 = vmatpush1.msra.mxu0 0.0
    %2010 = vmatprep.subr.mxu0 0.0
    %2011 = vmatpush1.msra.mxu0 0.0
    %2012 = vmatprep.subr.mxu0 0.0
    %2013 = vmatpush1.msra.mxu0 0.0
    %2014 = vmatprep.subr.mxu0 0.0
    %2015 = vmatpush1.msra.mxu0 0.0
    %2016 = vmatprep.subr.mxu0 0.0
    %2017 = vmatpush1.msra.mxu0 0.0
    %2018 = vmatprep.subr.mxu0 0.0
    %2019 = vmatpush1.msra.mxu0 0.0
    %2020 = vmatprep.subr.mxu0 0.0
    %2021 = vmatpush1.msra.mxu0 0.0
    %2022 = vmatprep.subr.mxu0 0.0
    %2023 = vmatpush1.msra.mxu0 0.0
    %2024 = vmatprep.subr.mxu0 0.0
    %2025 = vmatpush1.msra.mxu0 %v1988
    %2026 = vmatprep.subr.mxu0 0.0
    %2027 = vmatpush1.msra.mxu0 %v1987
    %2028 = vmatprep.subr.mxu0 0.0
    %2029 = vmatpush1.msra.mxu0 %v1986
    %2030 = vmatprep.subr.mxu0 0.0
    %2031 = vmatpush1.msra.mxu0 %v1985
    %2032 = vmatprep.subr.mxu0 0.0
    %2033 = vmatpush2.msra.mxu0 0.0
    %2034 = vmatprep.subr.mxu0 0.0
    %2035 = vmatpush2.msra.mxu0 0.0
    %2036 = vmatprep.subr.mxu0 0.0
    %2037 = vmatpush2.msra.mxu0 0.0
    %2038 = vmatprep.subr.mxu0 0.0
    %2039 = vmatpush2.msra.mxu0 0.0
    %2040 = vmatprep.subr.mxu0 0.0
    %2041 = vmatpush2.msra.mxu0 0.0
    %2042 = vmatprep.subr.mxu0 0.0
    %2043 = vmatpush2.msra.mxu0 0.0
    %2044 = vmatprep.subr.mxu0 0.0
    %2045 = vmatpush2.msra.mxu0 0.0
    %2046 = vmatprep.subr.mxu0 0.0
    %2047 = vmatpush2.msra.mxu0 0.0
    %2048 = vmatprep.subr.mxu0 0.0
    %2049 = vmatpush2.msra.mxu0 0.0
    %2050 = vmatprep.subr.mxu0 0.0
    %2051 = vmatpush2.msra.mxu0 0.0
    %2052 = vmatprep.subr.mxu0 0.0
    %2053 = vmatpush2.msra.mxu0 0.0
    %2054 = vmatprep.subr.mxu0 0.0
    %2055 = vmatpush2.msra.mxu0 0.0
    %2056 = vmatprep.subr.mxu0 0.0
    %2057 = vmatpush2.msra.mxu0 0.0
    %2058 = vmatprep.subr.mxu0 0.0
    %2059 = vmatpush2.msra.mxu0 0.0
    %2060 = vmatprep.subr.mxu0 0.0
    %2061 = vmatpush2.msra.mxu0 0.0
    %2062 = vmatprep.subr.mxu0 0.0
    %2063 = vmatpush2.msra.mxu0 0.0
    %2064 = vmatprep.mubr.f32.mxu0 0.0
    %2065 = vmatmul.mubr.f32.gmra.mxu0 %v1995
    %v2066 = vpop.f32.mrf.mxu0
    %v2067 = vadd.f32 %v1993, %v2066
    %v2068 = vpop.f32.mrf.mxu0
    %2069 = vmatprep.mubr.f32.mxu0 0.0
    %2070 = vmatmul.mubr.f32.gmra.mxu0 %v1998
    %v2071 = vpop.f32.mrf.mxu0
    %v2072 = vadd.f32 %v1993, %v2071
    %v2073 = vpop.f32.mrf.mxu0
    %2074 = vdwg.mxu0
    %2076 = vrot.lane.b32.xlu0 %v2067, 96
    %v2077 = vpop.permute.xlu0 %2076
    %v2078 = vsel %vm270, %v2067, 0
    %v2080 = vsel %vm270, %v2077, 0
    %2082 = vmatprep.subr.mxu0 0.0
    %2083 = vmatpush1.xpose.msra.mxu0 0.0
    %2084 = vmatprep.subr.mxu0 0.0
    %2085 = vmatpush1.xpose.msra.mxu0 0.0
    %2086 = vmatprep.subr.mxu0 0.0
    %2087 = vmatpush1.xpose.msra.mxu0 0.0
    %2088 = vmatprep.subr.mxu0 0.0
    %2089 = vmatpush1.xpose.msra.mxu0 0.0
    %2090 = vmatprep.subr.mxu0 0.0
    %2091 = vmatpush1.xpose.msra.mxu0 0.0
    %2092 = vmatprep.subr.mxu0 0.0
    %2093 = vmatpush1.xpose.msra.mxu0 0.0
    %2094 = vmatprep.subr.mxu0 0.0
    %2095 = vmatpush1.xpose.msra.mxu0 0.0
    %2096 = vmatprep.subr.mxu0 0.0
    %2097 = vmatpush1.xpose.msra.mxu0 0.0
    %2098 = vmatprep.subr.mxu0 0.0
    %2099 = vmatpush1.xpose.msra.mxu0 0.0
    %2100 = vmatprep.subr.mxu0 0.0
    %2101 = vmatpush1.xpose.msra.mxu0 0.0
    %2102 = vmatprep.subr.mxu0 0.0
    %2103 = vmatpush1.xpose.msra.mxu0 0.0
    %2104 = vmatprep.subr.mxu0 0.0
    %2105 = vmatpush1.xpose.msra.mxu0 0.0
    %2106 = vmatprep.subr.mxu0 0.0
    %2107 = vmatpush1.xpose.msra.mxu0 0.0
    %2108 = vmatprep.subr.mxu0 0.0
    %2109 = vmatpush1.xpose.msra.mxu0 0.0
    %2110 = vmatprep.subr.mxu0 0.0
    %2111 = vmatpush1.xpose.msra.mxu0 0.0
    %2112 = vmatprep.subr.mxu0 0.0
    %2113 = vmatpush1.xpose.msra.mxu0 %v2080
    %2114 = vmatprep.subr.mxu0 0.0
    %2115 = vmatpush2.xpose.msra.mxu0 0.0
    %2116 = vmatprep.subr.mxu0 0.0
    %2117 = vmatpush2.xpose.msra.mxu0 0.0
    %2118 = vmatprep.subr.mxu0 0.0
    %2119 = vmatpush2.xpose.msra.mxu0 0.0
    %2120 = vmatprep.subr.mxu0 0.0
    %2121 = vmatpush2.xpose.msra.mxu0 0.0
    %2122 = vmatprep.subr.mxu0 0.0
    %2123 = vmatpush2.xpose.msra.mxu0 0.0
    %2124 = vmatprep.subr.mxu0 0.0
    %2125 = vmatpush2.xpose.msra.mxu0 0.0
    %2126 = vmatprep.subr.mxu0 0.0
    %2127 = vmatpush2.xpose.msra.mxu0 0.0
    %2128 = vmatprep.subr.mxu0 0.0
    %2129 = vmatpush2.xpose.msra.mxu0 0.0
    %2130 = vmatprep.subr.mxu0 0.0
    %2131 = vmatpush2.xpose.msra.mxu0 0.0
    %2132 = vmatprep.subr.mxu0 0.0
    %2133 = vmatpush2.xpose.msra.mxu0 0.0
    %2134 = vmatprep.subr.mxu0 0.0
    %2135 = vmatpush2.xpose.msra.mxu0 0.0
    %2136 = vmatprep.subr.mxu0 0.0
    %2137 = vmatpush2.xpose.msra.mxu0 0.0
    %2138 = vmatprep.subr.mxu0 0.0
    %2139 = vmatpush2.xpose.msra.mxu0 0.0
    %2140 = vmatprep.subr.mxu0 0.0
    %2141 = vmatpush2.xpose.msra.mxu0 0.0
    %2142 = vmatprep.subr.mxu0 0.0
    %2143 = vmatpush2.xpose.msra.mxu0 0.0
    %2144 = vmatprep.subr.mxu0 0.0
    %2145 = vmatpush2.xpose.msra.mxu0 0.0
    %2146 = vmatprep.mubr.f32.mxu0 0.0
    %2147 = vmatmul.mubr.f32.gmra.mxu0 %v2078
    %v2148 = vpop.f32.mrf.mxu0
    %v2149 = vadd.f32 0.0, %v2148
    %v2150 = vpop.f32.mrf.mxu0
    %2151 = vdwg.mxu0
    %v2152 = vmul.f32 %v2149, 0.35355338
    %v2153 = vadd.f32 %v2152, %v36
    %v2154 = vsel %vm270, %v2153, -inf
    %2155 = vmax.xlane.f32.xlu0 %v2154
    %v2156 = vpop.xlane.xlu0 %2155
    %v2157 = vsub.f32 %v2153, %v2156
    %v2158 = vmul.f32 %v2157, 1.442695
    %v2159 = vpow.pop %v2158
    %v2160 = vsel %vm270, %v2159, 0.0
    %2161 = vadd.xlane.f32.xlu0 %v2160
    %v2162 = vpop.xlane.xlu0 %2161
    %v2163 = vrcp.pop %v2162
    %v2164 = vmul.f32 %v2159, %v2163
    %2165 = vrot.lane.b32.xlu0 %v2067, 64
    %v2166 = vpop.permute.xlu0 %2165
    %v2169 = vsel %vm270, %v2164, 0
    %2171 = vmatprep.subr.mxu0 0.0
    %2172 = vmatpush1.msra.mxu0 0.0
    %2173 = vmatprep.subr.mxu0 0.0
    %2174 = vmatpush1.msra.mxu0 0.0
    %2175 = vmatprep.subr.mxu0 0.0
    %2176 = vmatpush1.msra.mxu0 0.0
    %2177 = vmatprep.subr.mxu0 0.0
    %2178 = vmatpush1.msra.mxu0 0.0
    %2179 = vmatprep.subr.mxu0 0.0
    %2180 = vmatpush1.msra.mxu0 0.0
    %2181 = vmatprep.subr.mxu0 0.0
    %2182 = vmatpush1.msra.mxu0 0.0
    %2183 = vmatprep.subr.mxu0 0.0
    %2184 = vmatpush1.msra.mxu0 0.0
    %2185 = vmatprep.subr.mxu0 0.0
    %2186 = vmatpush1.msra.mxu0 0.0
    %2187 = vmatprep.subr.mxu0 0.0
    %2188 = vmatpush1.msra.mxu0 0.0
    %2189 = vmatprep.subr.mxu0 0.0
    %2190 = vmatpush1.msra.mxu0 0.0
    %2191 = vmatprep.subr.mxu0 0.0
    %2192 = vmatpush1.msra.mxu0 0.0
    %2193 = vmatprep.subr.mxu0 0.0
    %2194 = vmatpush1.msra.mxu0 0.0
    %2195 = vmatprep.subr.mxu0 0.0
    %2196 = vmatpush1.msra.mxu0 0.0
    %2197 = vmatprep.subr.mxu0 0.0
    %2198 = vmatpush1.msra.mxu0 0.0
    %2199 = vmatprep.subr.mxu0 0.0
    %2200 = vmatpush1.msra.mxu0 0.0
    %2201 = vmatprep.subr.mxu0 0.0
    %2202 = vmatpush1.msra.mxu0 %v2166
    %2203 = vmatprep.subr.mxu0 0.0
    %2204 = vmatpush2.msra.mxu0 0.0
    %2205 = vmatprep.subr.mxu0 0.0
    %2206 = vmatpush2.msra.mxu0 0.0
    %2207 = vmatprep.subr.mxu0 0.0
    %2208 = vmatpush2.msra.mxu0 0.0
    %2209 = vmatprep.subr.mxu0 0.0
    %2210 = vmatpush2.msra.mxu0 0.0
    %2211 = vmatprep.subr.mxu0 0.0
    %2212 = vmatpush2.msra.mxu0 0.0
    %2213 = vmatprep.subr.mxu0 0.0
    %2214 = vmatpush2.msra.mxu0 0.0
    %2215 = vmatprep.subr.mxu0 0.0
    %2216 = vmatpush2.msra.mxu0 0.0
    %2217 = vmatprep.subr.mxu0 0.0
    %2218 = vmatpush2.msra.mxu0 0.0
    %2219 = vmatprep.subr.mxu0 0.0
    %2220 = vmatpush2.msra.mxu0 0.0
    %2221 = vmatprep.subr.mxu0 0.0
    %2222 = vmatpush2.msra.mxu0 0.0
    %2223 = vmatprep.subr.mxu0 0.0
    %2224 = vmatpush2.msra.mxu0 0.0
    %2225 = vmatprep.subr.mxu0 0.0
    %2226 = vmatpush2.msra.mxu0 0.0
    %2227 = vmatprep.subr.mxu0 0.0
    %2228 = vmatpush2.msra.mxu0 0.0
    %2229 = vmatprep.subr.mxu0 0.0
    %2230 = vmatpush2.msra.mxu0 0.0
    %2231 = vmatprep.subr.mxu0 0.0
    %2232 = vmatpush2.msra.mxu0 0.0
    %2233 = vmatprep.subr.mxu0 0.0
    %2234 = vmatpush2.msra.mxu0 0.0
    %2235 = vmatprep.mubr.f32.mxu0 0.0
    %2236 = vmatmul.mubr.f32.gmra.mxu0 %v2169
    %v2237 = vpop.f32.mrf.mxu0
    %v2238 = vadd.f32 0.0, %v2237
    %v2239 = vpop.f32.mrf.mxu0
    %2240 = vdwg.mxu0
    %2241 = vrot.lane.b32.xlu0 %v2067, 120
    %v2242 = vpop.permute.xlu0 %2241
    %2243 = vrot.lane.b32.xlu0 %v2067, 88
    %v2244 = vpop.permute.xlu0 %2243
    %v2245 = vsel %vm270, %v2242, 0
    %v2247 = vsel %vm270, %v2244, 0
    %2249 = vmatprep.subr.mxu0 0.0
    %2250 = vmatpush1.xpose.msra.mxu0 0.0
    %2251 = vmatprep.subr.mxu0 0.0
    %2252 = vmatpush1.xpose.msra.mxu0 0.0
    %2253 = vmatprep.subr.mxu0 0.0
    %2254 = vmatpush1.xpose.msra.mxu0 0.0
    %2255 = vmatprep.subr.mxu0 0.0
    %2256 = vmatpush1.xpose.msra.mxu0 0.0
    %2257 = vmatprep.subr.mxu0 0.0
    %2258 = vmatpush1.xpose.msra.mxu0 0.0
    %2259 = vmatprep.subr.mxu0 0.0
    %2260 = vmatpush1.xpose.msra.mxu0 0.0
    %2261 = vmatprep.subr.mxu0 0.0
    %2262 = vmatpush1.xpose.msra.mxu0 0.0
    %2263 = vmatprep.subr.mxu0 0.0
    %2264 = vmatpush1.xpose.msra.mxu0 0.0
    %2265 = vmatprep.subr.mxu0 0.0
    %2266 = vmatpush1.xpose.msra.mxu0 0.0
    %2267 = vmatprep.subr.mxu0 0.0
    %2268 = vmatpush1.xpose.msra.mxu0 0.0
    %2269 = vmatprep.subr.mxu0 0.0
    %2270 = vmatpush1.xpose.msra.mxu0 0.0
    %2271 = vmatprep.subr.mxu0 0.0
    %2272 = vmatpush1.xpose.msra.mxu0 0.0
    %2273 = vmatprep.subr.mxu0 0.0
    %2274 = vmatpush1.xpose.msra.mxu0 0.0
    %2275 = vmatprep.subr.mxu0 0.0
    %2276 = vmatpush1.xpose.msra.mxu0 0.0
    %2277 = vmatprep.subr.mxu0 0.0
    %2278 = vmatpush1.xpose.msra.mxu0 0.0
    %2279 = vmatprep.subr.mxu0 0.0
    %2280 = vmatpush1.xpose.msra.mxu0 %v2247
    %2281 = vmatprep.subr.mxu0 0.0
    %2282 = vmatpush2.xpose.msra.mxu0 0.0
    %2283 = vmatprep.subr.mxu0 0.0
    %2284 = vmatpush2.xpose.msra.mxu0 0.0
    %2285 = vmatprep.subr.mxu0 0.0
    %2286 = vmatpush2.xpose.msra.mxu0 0.0
    %2287 = vmatprep.subr.mxu0 0.0
    %2288 = vmatpush2.xpose.msra.mxu0 0.0
    %2289 = vmatprep.subr.mxu0 0.0
    %2290 = vmatpush2.xpose.msra.mxu0 0.0
    %2291 = vmatprep.subr.mxu0 0.0
    %2292 = vmatpush2.xpose.msra.mxu0 0.0
    %2293 = vmatprep.subr.mxu0 0.0
    %2294 = vmatpush2.xpose.msra.mxu0 0.0
    %2295 = vmatprep.subr.mxu0 0.0
    %2296 = vmatpush2.xpose.msra.mxu0 0.0
    %2297 = vmatprep.subr.mxu0 0.0
    %2298 = vmatpush2.xpose.msra.mxu0 0.0
    %2299 = vmatprep.subr.mxu0 0.0
    %2300 = vmatpush2.xpose.msra.mxu0 0.0
    %2301 = vmatprep.subr.mxu0 0.0
    %2302 = vmatpush2.xpose.msra.mxu0 0.0
    %2303 = vmatprep.subr.mxu0 0.0
    %2304 = vmatpush2.xpose.msra.mxu0 0.0
    %2305 = vmatprep.subr.mxu0 0.0
    %2306 = vmatpush2.xpose.msra.mxu0 0.0
    %2307 = vmatprep.subr.mxu0 0.0
    %2308 = vmatpush2.xpose.msra.mxu0 0.0
    %2309 = vmatprep.subr.mxu0 0.0
    %2310 = vmatpush2.xpose.msra.mxu0 0.0
    %2311 = vmatprep.subr.mxu0 0.0
    %2312 = vmatpush2.xpose.msra.mxu0 0.0
    %2313 = vmatprep.mubr.f32.mxu0 0.0
    %2314 = vmatmul.mubr.f32.gmra.mxu0 %v2245
    %v2315 = vpop.f32.mrf.mxu0
    %v2316 = vadd.f32 0.0, %v2315
    %v2317 = vpop.f32.mrf.mxu0
    %2318 = vdwg.mxu0
    %v2319 = vmul.f32 %v2316, 0.35355338
    %v2320 = vadd.f32 %v2319, %v36
    %v2321 = vsel %vm270, %v2320, -inf
    %2322 = vmax.xlane.f32.xlu0 %v2321
    %v2323 = vpop.xlane.xlu0 %2322
    %v2324 = vsub.f32 %v2320, %v2323
    %v2325 = vmul.f32 %v2324, 1.442695
    %v2326 = vpow.pop %v2325
    %v2327 = vsel %vm270, %v2326, 0.0
    %2328 = vadd.xlane.f32.xlu0 %v2327
    %v2329 = vpop.xlane.xlu0 %2328
    %v2330 = vrcp.pop %v2329
    %v2331 = vmul.f32 %v2326, %v2330
    %2332 = vrot.lane.b32.xlu0 %v2067, 56
    %v2333 = vpop.permute.xlu0 %2332
    %v2336 = vsel %vm270, %v2331, 0
    %2338 = vmatprep.subr.mxu0 0.0
    %2339 = vmatpush1.msra.mxu0 0.0
    %2340 = vmatprep.subr.mxu0 0.0
    %2341 = vmatpush1.msra.mxu0 0.0
    %2342 = vmatprep.subr.mxu0 0.0
    %2343 = vmatpush1.msra.mxu0 0.0
    %2344 = vmatprep.subr.mxu0 0.0
    %2345 = vmatpush1.msra.mxu0 0.0
    %2346 = vmatprep.subr.mxu0 0.0
    %2347 = vmatpush1.msra.mxu0 0.0
    %2348 = vmatprep.subr.mxu0 0.0
    %2349 = vmatpush1.msra.mxu0 0.0
    %2350 = vmatprep.subr.mxu0 0.0
    %2351 = vmatpush1.msra.mxu0 0.0
    %2352 = vmatprep.subr.mxu0 0.0
    %2353 = vmatpush1.msra.mxu0 0.0
    %2354 = vmatprep.subr.mxu0 0.0
    %2355 = vmatpush1.msra.mxu0 0.0
    %2356 = vmatprep.subr.mxu0 0.0
    %2357 = vmatpush1.msra.mxu0 0.0
    %2358 = vmatprep.subr.mxu0 0.0
    %2359 = vmatpush1.msra.mxu0 0.0
    %2360 = vmatprep.subr.mxu0 0.0
    %2361 = vmatpush1.msra.mxu0 0.0
    %2362 = vmatprep.subr.mxu0 0.0
    %2363 = vmatpush1.msra.mxu0 0.0
    %2364 = vmatprep.subr.mxu0 0.0
    %2365 = vmatpush1.msra.mxu0 0.0
    %2366 = vmatprep.subr.mxu0 0.0
    %2367 = vmatpush1.msra.mxu0 0.0
    %2368 = vmatprep.subr.mxu0 0.0
    %2369 = vmatpush1.msra.mxu0 %v2333
    %2370 = vmatprep.subr.mxu0 0.0
    %2371 = vmatpush2.msra.mxu0 0.0
    %2372 = vmatprep.subr.mxu0 0.0
    %2373 = vmatpush2.msra.mxu0 0.0
    %2374 = vmatprep.subr.mxu0 0.0
    %2375 = vmatpush2.msra.mxu0 0.0
    %2376 = vmatprep.subr.mxu0 0.0
    %2377 = vmatpush2.msra.mxu0 0.0
    %2378 = vmatprep.subr.mxu0 0.0
    %2379 = vmatpush2.msra.mxu0 0.0
    %2380 = vmatprep.subr.mxu0 0.0
    %2381 = vmatpush2.msra.mxu0 0.0
    %2382 = vmatprep.subr.mxu0 0.0
    %2383 = vmatpush2.msra.mxu0 0.0
    %2384 = vmatprep.subr.mxu0 0.0
    %2385 = vmatpush2.msra.mxu0 0.0
    %2386 = vmatprep.subr.mxu0 0.0
    %2387 = vmatpush2.msra.mxu0 0.0
    %2388 = vmatprep.subr.mxu0 0.0
    %2389 = vmatpush2.msra.mxu0 0.0
    %2390 = vmatprep.subr.mxu0 0.0
    %2391 = vmatpush2.msra.mxu0 0.0
    %2392 = vmatprep.subr.mxu0 0.0
    %2393 = vmatpush2.msra.mxu0 0.0
    %2394 = vmatprep.subr.mxu0 0.0
    %2395 = vmatpush2.msra.mxu0 0.0
    %2396 = vmatprep.subr.mxu0 0.0
    %2397 = vmatpush2.msra.mxu0 0.0
    %2398 = vmatprep.subr.mxu0 0.0
    %2399 = vmatpush2.msra.mxu0 0.0
    %2400 = vmatprep.subr.mxu0 0.0
    %2401 = vmatpush2.msra.mxu0 0.0
    %2402 = vmatprep.mubr.f32.mxu0 0.0
    %2403 = vmatmul.mubr.f32.gmra.mxu0 %v2336
    %v2404 = vpop.f32.mrf.mxu0
    %v2405 = vadd.f32 0.0, %v2404
    %v2406 = vpop.f32.mrf.mxu0
    %2407 = vdwg.mxu0
    %2408 = vrot.lane.b32.xlu0 %v2067, 112
    %v2409 = vpop.permute.xlu0 %2408
    %2410 = vrot.lane.b32.xlu0 %v2067, 80
    %v2411 = vpop.permute.xlu0 %2410
    %v2412 = vsel %vm270, %v2409, 0
    %v2414 = vsel %vm270, %v2411, 0
    %2416 = vmatprep.subr.mxu0 0.0
    %2417 = vmatpush1.xpose.msra.mxu0 0.0
    %2418 = vmatprep.subr.mxu0 0.0
    %2419 = vmatpush1.xpose.msra.mxu0 0.0
    %2420 = vmatprep.subr.mxu0 0.0
    %2421 = vmatpush1.xpose.msra.mxu0 0.0
    %2422 = vmatprep.subr.mxu0 0.0
    %2423 = vmatpush1.xpose.msra.mxu0 0.0
    %2424 = vmatprep.subr.mxu0 0.0
    %2425 = vmatpush1.xpose.msra.mxu0 0.0
    %2426 = vmatprep.subr.mxu0 0.0
    %2427 = vmatpush1.xpose.msra.mxu0 0.0
    %2428 = vmatprep.subr.mxu0 0.0
    %2429 = vmatpush1.xpose.msra.mxu0 0.0
    %2430 = vmatprep.subr.mxu0 0.0
    %2431 = vmatpush1.xpose.msra.mxu0 0.0
    %2432 = vmatprep.subr.mxu0 0.0
    %2433 = vmatpush1.xpose.msra.mxu0 0.0
    %2434 = vmatprep.subr.mxu0 0.0
    %2435 = vmatpush1.xpose.msra.mxu0 0.0
    %2436 = vmatprep.subr.mxu0 0.0
    %2437 = vmatpush1.xpose.msra.mxu0 0.0
    %2438 = vmatprep.subr.mxu0 0.0
    %2439 = vmatpush1.xpose.msra.mxu0 0.0
    %2440 = vmatprep.subr.mxu0 0.0
    %2441 = vmatpush1.xpose.msra.mxu0 0.0
    %2442 = vmatprep.subr.mxu0 0.0
    %2443 = vmatpush1.xpose.msra.mxu0 0.0
    %2444 = vmatprep.subr.mxu0 0.0
    %2445 = vmatpush1.xpose.msra.mxu0 0.0
    %2446 = vmatprep.subr.mxu0 0.0
    %2447 = vmatpush1.xpose.msra.mxu0 %v2414
    %2448 = vmatprep.subr.mxu0 0.0
    %2449 = vmatpush2.xpose.msra.mxu0 0.0
    %2450 = vmatprep.subr.mxu0 0.0
    %2451 = vmatpush2.xpose.msra.mxu0 0.0
    %2452 = vmatprep.subr.mxu0 0.0
    %2453 = vmatpush2.xpose.msra.mxu0 0.0
    %2454 = vmatprep.subr.mxu0 0.0
    %2455 = vmatpush2.xpose.msra.mxu0 0.0
    %2456 = vmatprep.subr.mxu0 0.0
    %2457 = vmatpush2.xpose.msra.mxu0 0.0
    %2458 = vmatprep.subr.mxu0 0.0
    %2459 = vmatpush2.xpose.msra.mxu0 0.0
    %2460 = vmatprep.subr.mxu0 0.0
    %2461 = vmatpush2.xpose.msra.mxu0 0.0
    %2462 = vmatprep.subr.mxu0 0.0
    %2463 = vmatpush2.xpose.msra.mxu0 0.0
    %2464 = vmatprep.subr.mxu0 0.0
    %2465 = vmatpush2.xpose.msra.mxu0 0.0
    %2466 = vmatprep.subr.mxu0 0.0
    %2467 = vmatpush2.xpose.msra.mxu0 0.0
    %2468 = vmatprep.subr.mxu0 0.0
    %2469 = vmatpush2.xpose.msra.mxu0 0.0
    %2470 = vmatprep.subr.mxu0 0.0
    %2471 = vmatpush2.xpose.msra.mxu0 0.0
    %2472 = vmatprep.subr.mxu0 0.0
    %2473 = vmatpush2.xpose.msra.mxu0 0.0
    %2474 = vmatprep.subr.mxu0 0.0
    %2475 = vmatpush2.xpose.msra.mxu0 0.0
    %2476 = vmatprep.subr.mxu0 0.0
    %2477 = vmatpush2.xpose.msra.mxu0 0.0
    %2478 = vmatprep.subr.mxu0 0.0
    %2479 = vmatpush2.xpose.msra.mxu0 0.0
    %2480 = vmatprep.mubr.f32.mxu0 0.0
    %2481 = vmatmul.mubr.f32.gmra.mxu0 %v2412
    %v2482 = vpop.f32.mrf.mxu0
    %v2483 = vadd.f32 0.0, %v2482
    %v2484 = vpop.f32.mrf.mxu0
    %2485 = vdwg.mxu0
    %v2486 = vmul.f32 %v2483, 0.35355338
    %v2487 = vadd.f32 %v2486, %v36
    %v2488 = vsel %vm270, %v2487, -inf
    %2489 = vmax.xlane.f32.xlu0 %v2488
    %v2490 = vpop.xlane.xlu0 %2489
    %v2491 = vsub.f32 %v2487, %v2490
    %v2492 = vmul.f32 %v2491, 1.442695
    %v2493 = vpow.pop %v2492
    %v2494 = vsel %vm270, %v2493, 0.0
    %2495 = vadd.xlane.f32.xlu0 %v2494
    %v2496 = vpop.xlane.xlu0 %2495
    %v2497 = vrcp.pop %v2496
    %v2498 = vmul.f32 %v2493, %v2497
    %2499 = vrot.lane.b32.xlu0 %v2067, 48
    %v2500 = vpop.permute.xlu0 %2499
    %v2503 = vsel %vm270, %v2498, 0
    %2505 = vmatprep.subr.mxu0 0.0
    %2506 = vmatpush1.msra.mxu0 0.0
    %2507 = vmatprep.subr.mxu0 0.0
    %2508 = vmatpush1.msra.mxu0 0.0
    %2509 = vmatprep.subr.mxu0 0.0
    %2510 = vmatpush1.msra.mxu0 0.0
    %2511 = vmatprep.subr.mxu0 0.0
    %2512 = vmatpush1.msra.mxu0 0.0
    %2513 = vmatprep.subr.mxu0 0.0
    %2514 = vmatpush1.msra.mxu0 0.0
    %2515 = vmatprep.subr.mxu0 0.0
    %2516 = vmatpush1.msra.mxu0 0.0
    %2517 = vmatprep.subr.mxu0 0.0
    %2518 = vmatpush1.msra.mxu0 0.0
    %2519 = vmatprep.subr.mxu0 0.0
    %2520 = vmatpush1.msra.mxu0 0.0
    %2521 = vmatprep.subr.mxu0 0.0
    %2522 = vmatpush1.msra.mxu0 0.0
    %2523 = vmatprep.subr.mxu0 0.0
    %2524 = vmatpush1.msra.mxu0 0.0
    %2525 = vmatprep.subr.mxu0 0.0
    %2526 = vmatpush1.msra.mxu0 0.0
    %2527 = vmatprep.subr.mxu0 0.0
    %2528 = vmatpush1.msra.mxu0 0.0
    %2529 = vmatprep.subr.mxu0 0.0
    %2530 = vmatpush1.msra.mxu0 0.0
    %2531 = vmatprep.subr.mxu0 0.0
    %2532 = vmatpush1.msra.mxu0 0.0
    %2533 = vmatprep.subr.mxu0 0.0
    %2534 = vmatpush1.msra.mxu0 0.0
    %2535 = vmatprep.subr.mxu0 0.0
    %2536 = vmatpush1.msra.mxu0 %v2500
    %2537 = vmatprep.subr.mxu0 0.0
    %2538 = vmatpush2.msra.mxu0 0.0
    %2539 = vmatprep.subr.mxu0 0.0
    %2540 = vmatpush2.msra.mxu0 0.0
    %2541 = vmatprep.subr.mxu0 0.0
    %2542 = vmatpush2.msra.mxu0 0.0
    %2543 = vmatprep.subr.mxu0 0.0
    %2544 = vmatpush2.msra.mxu0 0.0
    %2545 = vmatprep.subr.mxu0 0.0
    %2546 = vmatpush2.msra.mxu0 0.0
    %2547 = vmatprep.subr.mxu0 0.0
    %2548 = vmatpush2.msra.mxu0 0.0
    %2549 = vmatprep.subr.mxu0 0.0
    %2550 = vmatpush2.msra.mxu0 0.0
    %2551 = vmatprep.subr.mxu0 0.0
    %2552 = vmatpush2.msra.mxu0 0.0
    %2553 = vmatprep.subr.mxu0 0.0
    %2554 = vmatpush2.msra.mxu0 0.0
    %2555 = vmatprep.subr.mxu0 0.0
    %2556 = vmatpush2.msra.mxu0 0.0
    %2557 = vmatprep.subr.mxu0 0.0
    %2558 = vmatpush2.msra.mxu0 0.0
    %2559 = vmatprep.subr.mxu0 0.0
    %2560 = vmatpush2.msra.mxu0 0.0
    %2561 = vmatprep.subr.mxu0 0.0
    %2562 = vmatpush2.msra.mxu0 0.0
    %2563 = vmatprep.subr.mxu0 0.0
    %2564 = vmatpush2.msra.mxu0 0.0
    %2565 = vmatprep.subr.mxu0 0.0
    %2566 = vmatpush2.msra.mxu0 0.0
    %2567 = vmatprep.subr.mxu0 0.0
    %2568 = vmatpush2.msra.mxu0 0.0
    %2569 = vmatprep.mubr.f32.mxu0 0.0
    %2570 = vmatmul.mubr.f32.gmra.mxu0 %v2503
    %v2571 = vpop.f32.mrf.mxu0
    %v2572 = vadd.f32 0.0, %v2571
    %v2573 = vpop.f32.mrf.mxu0
    %2574 = vdwg.mxu0
    %2575 = vrot.lane.b32.xlu0 %v2067, 104
    %v2576 = vpop.permute.xlu0 %2575
    %2577 = vrot.lane.b32.xlu0 %v2067, 72
    %v2578 = vpop.permute.xlu0 %2577
    %v2579 = vsel %vm270, %v2576, 0
    %v2581 = vsel %vm270, %v2578, 0
    %2583 = vmatprep.subr.mxu0 0.0
    %2584 = vmatpush1.xpose.msra.mxu0 0.0
    %2585 = vmatprep.subr.mxu0 0.0
    %2586 = vmatpush1.xpose.msra.mxu0 0.0
    %2587 = vmatprep.subr.mxu0 0.0
    %2588 = vmatpush1.xpose.msra.mxu0 0.0
    %2589 = vmatprep.subr.mxu0 0.0
    %2590 = vmatpush1.xpose.msra.mxu0 0.0
    %2591 = vmatprep.subr.mxu0 0.0
    %2592 = vmatpush1.xpose.msra.mxu0 0.0
    %2593 = vmatprep.subr.mxu0 0.0
    %2594 = vmatpush1.xpose.msra.mxu0 0.0
    %2595 = vmatprep.subr.mxu0 0.0
    %2596 = vmatpush1.xpose.msra.mxu0 0.0
    %2597 = vmatprep.subr.mxu0 0.0
    %2598 = vmatpush1.xpose.msra.mxu0 0.0
    %2599 = vmatprep.subr.mxu0 0.0
    %2600 = vmatpush1.xpose.msra.mxu0 0.0
    %2601 = vmatprep.subr.mxu0 0.0
    %2602 = vmatpush1.xpose.msra.mxu0 0.0
    %2603 = vmatprep.subr.mxu0 0.0
    %2604 = vmatpush1.xpose.msra.mxu0 0.0
    %2605 = vmatprep.subr.mxu0 0.0
    %2606 = vmatpush1.xpose.msra.mxu0 0.0
    %2607 = vmatprep.subr.mxu0 0.0
    %2608 = vmatpush1.xpose.msra.mxu0 0.0
    %2609 = vmatprep.subr.mxu0 0.0
    %2610 = vmatpush1.xpose.msra.mxu0 0.0
    %2611 = vmatprep.subr.mxu0 0.0
    %2612 = vmatpush1.xpose.msra.mxu0 0.0
    %2613 = vmatprep.subr.mxu0 0.0
    %2614 = vmatpush1.xpose.msra.mxu0 %v2581
    %2615 = vmatprep.subr.mxu0 0.0
    %2616 = vmatpush2.xpose.msra.mxu0 0.0
    %2617 = vmatprep.subr.mxu0 0.0
    %2618 = vmatpush2.xpose.msra.mxu0 0.0
    %2619 = vmatprep.subr.mxu0 0.0
    %2620 = vmatpush2.xpose.msra.mxu0 0.0
    %2621 = vmatprep.subr.mxu0 0.0
    %2622 = vmatpush2.xpose.msra.mxu0 0.0
    %2623 = vmatprep.subr.mxu0 0.0
    %2624 = vmatpush2.xpose.msra.mxu0 0.0
    %2625 = vmatprep.subr.mxu0 0.0
    %2626 = vmatpush2.xpose.msra.mxu0 0.0
    %2627 = vmatprep.subr.mxu0 0.0
    %2628 = vmatpush2.xpose.msra.mxu0 0.0
    %2629 = vmatprep.subr.mxu0 0.0
    %2630 = vmatpush2.xpose.msra.mxu0 0.0
    %2631 = vmatprep.subr.mxu0 0.0
    %2632 = vmatpush2.xpose.msra.mxu0 0.0
    %2633 = vmatprep.subr.mxu0 0.0
    %2634 = vmatpush2.xpose.msra.mxu0 0.0
    %2635 = vmatprep.subr.mxu0 0.0
    %2636 = vmatpush2.xpose.msra.mxu0 0.0
    %2637 = vmatprep.subr.mxu0 0.0
    %2638 = vmatpush2.xpose.msra.mxu0 0.0
    %2639 = vmatprep.subr.mxu0 0.0
    %2640 = vmatpush2.xpose.msra.mxu0 0.0
    %2641 = vmatprep.subr.mxu0 0.0
    %2642 = vmatpush2.xpose.msra.mxu0 0.0
    %2643 = vmatprep.subr.mxu0 0.0
    %2644 = vmatpush2.xpose.msra.mxu0 0.0
    %2645 = vmatprep.subr.mxu0 0.0
    %2646 = vmatpush2.xpose.msra.mxu0 0.0
    %2647 = vmatprep.mubr.f32.mxu0 0.0
    %2648 = vmatmul.mubr.f32.gmra.mxu0 %v2579
    %v2649 = vpop.f32.mrf.mxu0
    %v2650 = vadd.f32 0.0, %v2649
    %v2651 = vpop.f32.mrf.mxu0
    %2652 = vdwg.mxu0
    %v2653 = vmul.f32 %v2650, 0.35355338
    %v2654 = vadd.f32 %v2653, %v36
    %v2655 = vsel %vm270, %v2654, -inf
    %2656 = vmax.xlane.f32.xlu0 %v2655
    %v2657 = vpop.xlane.xlu0 %2656
    %v2658 = vsub.f32 %v2654, %v2657
    %v2659 = vmul.f32 %v2658, 1.442695
    %v2660 = vpow.pop %v2659
    %v2661 = vsel %vm270, %v2660, 0.0
    %2662 = vadd.xlane.f32.xlu0 %v2661
    %v2663 = vpop.xlane.xlu0 %2662
    %v2664 = vrcp.pop %v2663
    %v2665 = vmul.f32 %v2660, %v2664
    %2666 = vrot.lane.b32.xlu0 %v2067, 40
    %v2667 = vpop.permute.xlu0 %2666
    %v2670 = vsel %vm270, %v2665, 0
    %2672 = vmatprep.subr.mxu0 0.0
    %2673 = vmatpush1.msra.mxu0 0.0
    %2674 = vmatprep.subr.mxu0 0.0
    %2675 = vmatpush1.msra.mxu0 0.0
    %2676 = vmatprep.subr.mxu0 0.0
    %2677 = vmatpush1.msra.mxu0 0.0
    %2678 = vmatprep.subr.mxu0 0.0
    %2679 = vmatpush1.msra.mxu0 0.0
    %2680 = vmatprep.subr.mxu0 0.0
    %2681 = vmatpush1.msra.mxu0 0.0
    %2682 = vmatprep.subr.mxu0 0.0
    %2683 = vmatpush1.msra.mxu0 0.0
    %2684 = vmatprep.subr.mxu0 0.0
    %2685 = vmatpush1.msra.mxu0 0.0
    %2686 = vmatprep.subr.mxu0 0.0
    %2687 = vmatpush1.msra.mxu0 0.0
    %2688 = vmatprep.subr.mxu0 0.0
    %2689 = vmatpush1.msra.mxu0 0.0
    %2690 = vmatprep.subr.mxu0 0.0
    %2691 = vmatpush1.msra.mxu0 0.0
    %2692 = vmatprep.subr.mxu0 0.0
    %2693 = vmatpush1.msra.mxu0 0.0
    %2694 = vmatprep.subr.mxu0 0.0
    %2695 = vmatpush1.msra.mxu0 0.0
    %2696 = vmatprep.subr.mxu0 0.0
    %2697 = vmatpush1.msra.mxu0 0.0
    %2698 = vmatprep.subr.mxu0 0.0
    %2699 = vmatpush1.msra.mxu0 0.0
    %2700 = vmatprep.subr.mxu0 0.0
    %2701 = vmatpush1.msra.mxu0 0.0
    %2702 = vmatprep.subr.mxu0 0.0
    %2703 = vmatpush1.msra.mxu0 %v2667
    %2704 = vmatprep.subr.mxu0 0.0
    %2705 = vmatpush2.msra.mxu0 0.0
    %2706 = vmatprep.subr.mxu0 0.0
    %2707 = vmatpush2.msra.mxu0 0.0
    %2708 = vmatprep.subr.mxu0 0.0
    %2709 = vmatpush2.msra.mxu0 0.0
    %2710 = vmatprep.subr.mxu0 0.0
    %2711 = vmatpush2.msra.mxu0 0.0
    %2712 = vmatprep.subr.mxu0 0.0
    %2713 = vmatpush2.msra.mxu0 0.0
    %2714 = vmatprep.subr.mxu0 0.0
    %2715 = vmatpush2.msra.mxu0 0.0
    %2716 = vmatprep.subr.mxu0 0.0
    %2717 = vmatpush2.msra.mxu0 0.0
    %2718 = vmatprep.subr.mxu0 0.0
    %2719 = vmatpush2.msra.mxu0 0.0
    %2720 = vmatprep.subr.mxu0 0.0
    %2721 = vmatpush2.msra.mxu0 0.0
    %2722 = vmatprep.subr.mxu0 0.0
    %2723 = vmatpush2.msra.mxu0 0.0
    %2724 = vmatprep.subr.mxu0 0.0
    %2725 = vmatpush2.msra.mxu0 0.0
    %2726 = vmatprep.subr.mxu0 0.0
    %2727 = vmatpush2.msra.mxu0 0.0
    %2728 = vmatprep.subr.mxu0 0.0
    %2729 = vmatpush2.msra.mxu0 0.0
    %2730 = vmatprep.subr.mxu0 0.0
    %2731 = vmatpush2.msra.mxu0 0.0
    %2732 = vmatprep.subr.mxu0 0.0
    %2733 = vmatpush2.msra.mxu0 0.0
    %2734 = vmatprep.subr.mxu0 0.0
    %2735 = vmatpush2.msra.mxu0 0.0
    %2736 = vmatprep.mubr.f32.mxu0 0.0
    %2737 = vmatmul.mubr.f32.gmra.mxu0 %v2670
    %v2738 = vpop.f32.mrf.mxu0
    %v2739 = vadd.f32 0.0, %v2738
    %v2740 = vpop.f32.mrf.mxu0
    %2741 = vdwg.mxu0
    %2743 = vrot.lane.b32.xlu0 %v2405, 8
    %v2744 = vpop.permute.xlu0 %2743
    %2747 = vrot.lane.b32.xlu0 %v2572, 16
    %v2748 = vpop.permute.xlu0 %2747
    %2751 = vrot.lane.b32.xlu0 %v2739, 24
    %v2752 = vpop.permute.xlu0 %2751
    %v2754 = vsel %vm270, %v2238, %v2744
    %v2755 = vsel %vm948, %v2754, %v2748
    %v2756 = vsel %vm950, %v2755, %v2752
    %2758 = vrot.lane.b32.xlu0 %v2072, 96
    %v2759 = vpop.permute.xlu0 %2758
    %v2760 = vsel %vm270, %v2072, 0
    %v2762 = vsel %vm270, %v2759, 0
    %2764 = vmatprep.subr.mxu0 0.0
    %2765 = vmatpush1.xpose.msra.mxu0 0.0
    %2766 = vmatprep.subr.mxu0 0.0
    %2767 = vmatpush1.xpose.msra.mxu0 0.0
    %2768 = vmatprep.subr.mxu0 0.0
    %2769 = vmatpush1.xpose.msra.mxu0 0.0
    %2770 = vmatprep.subr.mxu0 0.0
    %2771 = vmatpush1.xpose.msra.mxu0 0.0
    %2772 = vmatprep.subr.mxu0 0.0
    %2773 = vmatpush1.xpose.msra.mxu0 0.0
    %2774 = vmatprep.subr.mxu0 0.0
    %2775 = vmatpush1.xpose.msra.mxu0 0.0
    %2776 = vmatprep.subr.mxu0 0.0
    %2777 = vmatpush1.xpose.msra.mxu0 0.0
    %2778 = vmatprep.subr.mxu0 0.0
    %2779 = vmatpush1.xpose.msra.mxu0 0.0
    %2780 = vmatprep.subr.mxu0 0.0
    %2781 = vmatpush1.xpose.msra.mxu0 0.0
    %2782 = vmatprep.subr.mxu0 0.0
    %2783 = vmatpush1.xpose.msra.mxu0 0.0
    %2784 = vmatprep.subr.mxu0 0.0
    %2785 = vmatpush1.xpose.msra.mxu0 0.0
    %2786 = vmatprep.subr.mxu0 0.0
    %2787 = vmatpush1.xpose.msra.mxu0 0.0
    %2788 = vmatprep.subr.mxu0 0.0
    %2789 = vmatpush1.xpose.msra.mxu0 0.0
    %2790 = vmatprep.subr.mxu0 0.0
    %2791 = vmatpush1.xpose.msra.mxu0 0.0
    %2792 = vmatprep.subr.mxu0 0.0
    %2793 = vmatpush1.xpose.msra.mxu0 0.0
    %2794 = vmatprep.subr.mxu0 0.0
    %2795 = vmatpush1.xpose.msra.mxu0 %v2762
    %2796 = vmatprep.subr.mxu0 0.0
    %2797 = vmatpush2.xpose.msra.mxu0 0.0
    %2798 = vmatprep.subr.mxu0 0.0
    %2799 = vmatpush2.xpose.msra.mxu0 0.0
    %2800 = vmatprep.subr.mxu0 0.0
    %2801 = vmatpush2.xpose.msra.mxu0 0.0
    %2802 = vmatprep.subr.mxu0 0.0
    %2803 = vmatpush2.xpose.msra.mxu0 0.0
    %2804 = vmatprep.subr.mxu0 0.0
    %2805 = vmatpush2.xpose.msra.mxu0 0.0
    %2806 = vmatprep.subr.mxu0 0.0
    %2807 = vmatpush2.xpose.msra.mxu0 0.0
    %2808 = vmatprep.subr.mxu0 0.0
    %2809 = vmatpush2.xpose.msra.mxu0 0.0
    %2810 = vmatprep.subr.mxu0 0.0
    %2811 = vmatpush2.xpose.msra.mxu0 0.0
    %2812 = vmatprep.subr.mxu0 0.0
    %2813 = vmatpush2.xpose.msra.mxu0 0.0
    %2814 = vmatprep.subr.mxu0 0.0
    %2815 = vmatpush2.xpose.msra.mxu0 0.0
    %2816 = vmatprep.subr.mxu0 0.0
    %2817 = vmatpush2.xpose.msra.mxu0 0.0
    %2818 = vmatprep.subr.mxu0 0.0
    %2819 = vmatpush2.xpose.msra.mxu0 0.0
    %2820 = vmatprep.subr.mxu0 0.0
    %2821 = vmatpush2.xpose.msra.mxu0 0.0
    %2822 = vmatprep.subr.mxu0 0.0
    %2823 = vmatpush2.xpose.msra.mxu0 0.0
    %2824 = vmatprep.subr.mxu0 0.0
    %2825 = vmatpush2.xpose.msra.mxu0 0.0
    %2826 = vmatprep.subr.mxu0 0.0
    %2827 = vmatpush2.xpose.msra.mxu0 0.0
    %2828 = vmatprep.mubr.f32.mxu0 0.0
    %2829 = vmatmul.mubr.f32.gmra.mxu0 %v2760
    %v2830 = vpop.f32.mrf.mxu0
    %v2831 = vadd.f32 0.0, %v2830
    %v2832 = vpop.f32.mrf.mxu0
    %2833 = vdwg.mxu0
    %v2834 = vmul.f32 %v2831, 0.35355338
    %v2835 = vadd.f32 %v2834, %v36
    %v2836 = vsel %vm270, %v2835, -inf
    %2837 = vmax.xlane.f32.xlu0 %v2836
    %v2838 = vpop.xlane.xlu0 %2837
    %v2839 = vsub.f32 %v2835, %v2838
    %v2840 = vmul.f32 %v2839, 1.442695
    %v2841 = vpow.pop %v2840
    %v2842 = vsel %vm270, %v2841, 0.0
    %2843 = vadd.xlane.f32.xlu0 %v2842
    %v2844 = vpop.xlane.xlu0 %2843
    %v2845 = vrcp.pop %v2844
    %v2846 = vmul.f32 %v2841, %v2845
    %2847 = vrot.lane.b32.xlu0 %v2072, 64
    %v2848 = vpop.permute.xlu0 %2847
    %v2851 = vsel %vm270, %v2846, 0
    %2853 = vmatprep.subr.mxu0 0.0
    %2854 = vmatpush1.msra.mxu0 0.0
    %2855 = vmatprep.subr.mxu0 0.0
    %2856 = vmatpush1.msra.mxu0 0.0
    %2857 = vmatprep.subr.mxu0 0.0
    %2858 = vmatpush1.msra.mxu0 0.0
    %2859 = vmatprep.subr.mxu0 0.0
    %2860 = vmatpush1.msra.mxu0 0.0
    %2861 = vmatprep.subr.mxu0 0.0
    %2862 = vmatpush1.msra.mxu0 0.0
    %2863 = vmatprep.subr.mxu0 0.0
    %2864 = vmatpush1.msra.mxu0 0.0
    %2865 = vmatprep.subr.mxu0 0.0
    %2866 = vmatpush1.msra.mxu0 0.0
    %2867 = vmatprep.subr.mxu0 0.0
    %2868 = vmatpush1.msra.mxu0 0.0
    %2869 = vmatprep.subr.mxu0 0.0
    %2870 = vmatpush1.msra.mxu0 0.0
    %2871 = vmatprep.subr.mxu0 0.0
    %2872 = vmatpush1.msra.mxu0 0.0
    %2873 = vmatprep.subr.mxu0 0.0
    %2874 = vmatpush1.msra.mxu0 0.0
    %2875 = vmatprep.subr.mxu0 0.0
    %2876 = vmatpush1.msra.mxu0 0.0
    %2877 = vmatprep.subr.mxu0 0.0
    %2878 = vmatpush1.msra.mxu0 0.0
    %2879 = vmatprep.subr.mxu0 0.0
    %2880 = vmatpush1.msra.mxu0 0.0
    %2881 = vmatprep.subr.mxu0 0.0
    %2882 = vmatpush1.msra.mxu0 0.0
    %2883 = vmatprep.subr.mxu0 0.0
    %2884 = vmatpush1.msra.mxu0 %v2848
    %2885 = vmatprep.subr.mxu0 0.0
    %2886 = vmatpush2.msra.mxu0 0.0
    %2887 = vmatprep.subr.mxu0 0.0
    %2888 = vmatpush2.msra.mxu0 0.0
    %2889 = vmatprep.subr.mxu0 0.0
    %2890 = vmatpush2.msra.mxu0 0.0
    %2891 = vmatprep.subr.mxu0 0.0
    %2892 = vmatpush2.msra.mxu0 0.0
    %2893 = vmatprep.subr.mxu0 0.0
    %2894 = vmatpush2.msra.mxu0 0.0
    %2895 = vmatprep.subr.mxu0 0.0
    %2896 = vmatpush2.msra.mxu0 0.0
    %2897 = vmatprep.subr.mxu0 0.0
    %2898 = vmatpush2.msra.mxu0 0.0
    %2899 = vmatprep.subr.mxu0 0.0
    %2900 = vmatpush2.msra.mxu0 0.0
    %2901 = vmatprep.subr.mxu0 0.0
    %2902 = vmatpush2.msra.mxu0 0.0
    %2903 = vmatprep.subr.mxu0 0.0
    %2904 = vmatpush2.msra.mxu0 0.0
    %2905 = vmatprep.subr.mxu0 0.0
    %2906 = vmatpush2.msra.mxu0 0.0
    %2907 = vmatprep.subr.mxu0 0.0
    %2908 = vmatpush2.msra.mxu0 0.0
    %2909 = vmatprep.subr.mxu0 0.0
    %2910 = vmatpush2.msra.mxu0 0.0
    %2911 = vmatprep.subr.mxu0 0.0
    %2912 = vmatpush2.msra.mxu0 0.0
    %2913 = vmatprep.subr.mxu0 0.0
    %2914 = vmatpush2.msra.mxu0 0.0
    %2915 = vmatprep.subr.mxu0 0.0
    %2916 = vmatpush2.msra.mxu0 0.0
    %2917 = vmatprep.mubr.f32.mxu0 0.0
    %2918 = vmatmul.mubr.f32.gmra.mxu0 %v2851
    %v2919 = vpop.f32.mrf.mxu0
    %v2920 = vadd.f32 0.0, %v2919
    %v2921 = vpop.f32.mrf.mxu0
    %2922 = vdwg.mxu0
    %2923 = vrot.lane.b32.xlu0 %v2072, 120
    %v2924 = vpop.permute.xlu0 %2923
    %2925 = vrot.lane.b32.xlu0 %v2072, 88
    %v2926 = vpop.permute.xlu0 %2925
    %v2927 = vsel %vm270, %v2924, 0
    %v2929 = vsel %vm270, %v2926, 0
    %2931 = vmatprep.subr.mxu0 0.0
    %2932 = vmatpush1.xpose.msra.mxu0 0.0
    %2933 = vmatprep.subr.mxu0 0.0
    %2934 = vmatpush1.xpose.msra.mxu0 0.0
    %2935 = vmatprep.subr.mxu0 0.0
    %2936 = vmatpush1.xpose.msra.mxu0 0.0
    %2937 = vmatprep.subr.mxu0 0.0
    %2938 = vmatpush1.xpose.msra.mxu0 0.0
    %2939 = vmatprep.subr.mxu0 0.0
    %2940 = vmatpush1.xpose.msra.mxu0 0.0
    %2941 = vmatprep.subr.mxu0 0.0
    %2942 = vmatpush1.xpose.msra.mxu0 0.0
    %2943 = vmatprep.subr.mxu0 0.0
    %2944 = vmatpush1.xpose.msra.mxu0 0.0
    %2945 = vmatprep.subr.mxu0 0.0
    %2946 = vmatpush1.xpose.msra.mxu0 0.0
    %2947 = vmatprep.subr.mxu0 0.0
    %2948 = vmatpush1.xpose.msra.mxu0 0.0
    %2949 = vmatprep.subr.mxu0 0.0
    %2950 = vmatpush1.xpose.msra.mxu0 0.0
    %2951 = vmatprep.subr.mxu0 0.0
    %2952 = vmatpush1.xpose.msra.mxu0 0.0
    %2953 = vmatprep.subr.mxu0 0.0
    %2954 = vmatpush1.xpose.msra.mxu0 0.0
    %2955 = vmatprep.subr.mxu0 0.0
    %2956 = vmatpush1.xpose.msra.mxu0 0.0
    %2957 = vmatprep.subr.mxu0 0.0
    %2958 = vmatpush1.xpose.msra.mxu0 0.0
    %2959 = vmatprep.subr.mxu0 0.0
    %2960 = vmatpush1.xpose.msra.mxu0 0.0
    %2961 = vmatprep.subr.mxu0 0.0
    %2962 = vmatpush1.xpose.msra.mxu0 %v2929
    %2963 = vmatprep.subr.mxu0 0.0
    %2964 = vmatpush2.xpose.msra.mxu0 0.0
    %2965 = vmatprep.subr.mxu0 0.0
    %2966 = vmatpush2.xpose.msra.mxu0 0.0
    %2967 = vmatprep.subr.mxu0 0.0
    %2968 = vmatpush2.xpose.msra.mxu0 0.0
    %2969 = vmatprep.subr.mxu0 0.0
    %2970 = vmatpush2.xpose.msra.mxu0 0.0
    %2971 = vmatprep.subr.mxu0 0.0
    %2972 = vmatpush2.xpose.msra.mxu0 0.0
    %2973 = vmatprep.subr.mxu0 0.0
    %2974 = vmatpush2.xpose.msra.mxu0 0.0
    %2975 = vmatprep.subr.mxu0 0.0
    %2976 = vmatpush2.xpose.msra.mxu0 0.0
    %2977 = vmatprep.subr.mxu0 0.0
    %2978 = vmatpush2.xpose.msra.mxu0 0.0
    %2979 = vmatprep.subr.mxu0 0.0
    %2980 = vmatpush2.xpose.msra.mxu0 0.0
    %2981 = vmatprep.subr.mxu0 0.0
    %2982 = vmatpush2.xpose.msra.mxu0 0.0
    %2983 = vmatprep.subr.mxu0 0.0
    %2984 = vmatpush2.xpose.msra.mxu0 0.0
    %2985 = vmatprep.subr.mxu0 0.0
    %2986 = vmatpush2.xpose.msra.mxu0 0.0
    %2987 = vmatprep.subr.mxu0 0.0
    %2988 = vmatpush2.xpose.msra.mxu0 0.0
    %2989 = vmatprep.subr.mxu0 0.0
    %2990 = vmatpush2.xpose.msra.mxu0 0.0
    %2991 = vmatprep.subr.mxu0 0.0
    %2992 = vmatpush2.xpose.msra.mxu0 0.0
    %2993 = vmatprep.subr.mxu0 0.0
    %2994 = vmatpush2.xpose.msra.mxu0 0.0
    %2995 = vmatprep.mubr.f32.mxu0 0.0
    %2996 = vmatmul.mubr.f32.gmra.mxu0 %v2927
    %v2997 = vpop.f32.mrf.mxu0
    %v2998 = vadd.f32 0.0, %v2997
    %v2999 = vpop.f32.mrf.mxu0
    %3000 = vdwg.mxu0
    %v3001 = vmul.f32 %v2998, 0.35355338
    %v3002 = vadd.f32 %v3001, %v36
    %v3003 = vsel %vm270, %v3002, -inf
    %3004 = vmax.xlane.f32.xlu0 %v3003
    %v3005 = vpop.xlane.xlu0 %3004
    %v3006 = vsub.f32 %v3002, %v3005
    %v3007 = vmul.f32 %v3006, 1.442695
    %v3008 = vpow.pop %v3007
    %v3009 = vsel %vm270, %v3008, 0.0
    %3010 = vadd.xlane.f32.xlu0 %v3009
    %v3011 = vpop.xlane.xlu0 %3010
    %v3012 = vrcp.pop %v3011
    %v3013 = vmul.f32 %v3008, %v3012
    %3014 = vrot.lane.b32.xlu0 %v2072, 56
    %v3015 = vpop.permute.xlu0 %3014
    %v3018 = vsel %vm270, %v3013, 0
    %3020 = vmatprep.subr.mxu0 0.0
    %3021 = vmatpush1.msra.mxu0 0.0
    %3022 = vmatprep.subr.mxu0 0.0
    %3023 = vmatpush1.msra.mxu0 0.0
    %3024 = vmatprep.subr.mxu0 0.0
    %3025 = vmatpush1.msra.mxu0 0.0
    %3026 = vmatprep.subr.mxu0 0.0
    %3027 = vmatpush1.msra.mxu0 0.0
    %3028 = vmatprep.subr.mxu0 0.0
    %3029 = vmatpush1.msra.mxu0 0.0
    %3030 = vmatprep.subr.mxu0 0.0
    %3031 = vmatpush1.msra.mxu0 0.0
    %3032 = vmatprep.subr.mxu0 0.0
    %3033 = vmatpush1.msra.mxu0 0.0
    %3034 = vmatprep.subr.mxu0 0.0
    %3035 = vmatpush1.msra.mxu0 0.0
    %3036 = vmatprep.subr.mxu0 0.0
    %3037 = vmatpush1.msra.mxu0 0.0
    %3038 = vmatprep.subr.mxu0 0.0
    %3039 = vmatpush1.msra.mxu0 0.0
    %3040 = vmatprep.subr.mxu0 0.0
    %3041 = vmatpush1.msra.mxu0 0.0
    %3042 = vmatprep.subr.mxu0 0.0
    %3043 = vmatpush1.msra.mxu0 0.0
    %3044 = vmatprep.subr.mxu0 0.0
    %3045 = vmatpush1.msra.mxu0 0.0
    %3046 = vmatprep.subr.mxu0 0.0
    %3047 = vmatpush1.msra.mxu0 0.0
    %3048 = vmatprep.subr.mxu0 0.0
    %3049 = vmatpush1.msra.mxu0 0.0
    %3050 = vmatprep.subr.mxu0 0.0
    %3051 = vmatpush1.msra.mxu0 %v3015
    %3052 = vmatprep.subr.mxu0 0.0
    %3053 = vmatpush2.msra.mxu0 0.0
    %3054 = vmatprep.subr.mxu0 0.0
    %3055 = vmatpush2.msra.mxu0 0.0
    %3056 = vmatprep.subr.mxu0 0.0
    %3057 = vmatpush2.msra.mxu0 0.0
    %3058 = vmatprep.subr.mxu0 0.0
    %3059 = vmatpush2.msra.mxu0 0.0
    %3060 = vmatprep.subr.mxu0 0.0
    %3061 = vmatpush2.msra.mxu0 0.0
    %3062 = vmatprep.subr.mxu0 0.0
    %3063 = vmatpush2.msra.mxu0 0.0
    %3064 = vmatprep.subr.mxu0 0.0
    %3065 = vmatpush2.msra.mxu0 0.0
    %3066 = vmatprep.subr.mxu0 0.0
    %3067 = vmatpush2.msra.mxu0 0.0
    %3068 = vmatprep.subr.mxu0 0.0
    %3069 = vmatpush2.msra.mxu0 0.0
    %3070 = vmatprep.subr.mxu0 0.0
    %3071 = vmatpush2.msra.mxu0 0.0
    %3072 = vmatprep.subr.mxu0 0.0
    %3073 = vmatpush2.msra.mxu0 0.0
    %3074 = vmatprep.subr.mxu0 0.0
    %3075 = vmatpush2.msra.mxu0 0.0
    %3076 = vmatprep.subr.mxu0 0.0
    %3077 = vmatpush2.msra.mxu0 0.0
    %3078 = vmatprep.subr.mxu0 0.0
    %3079 = vmatpush2.msra.mxu0 0.0
    %3080 = vmatprep.subr.mxu0 0.0
    %3081 = vmatpush2.msra.mxu0 0.0
    %3082 = vmatprep.subr.mxu0 0.0
    %3083 = vmatpush2.msra.mxu0 0.0
    %3084 = vmatprep.mubr.f32.mxu0 0.0
    %3085 = vmatmul.mubr.f32.gmra.mxu0 %v3018
    %v3086 = vpop.f32.mrf.mxu0
    %v3087 = vadd.f32 0.0, %v3086
    %v3088 = vpop.f32.mrf.mxu0
    %3089 = vdwg.mxu0
    %3090 = vrot.lane.b32.xlu0 %v2072, 112
    %v3091 = vpop.permute.xlu0 %3090
    %3092 = vrot.lane.b32.xlu0 %v2072, 80
    %v3093 = vpop.permute.xlu0 %3092
    %v3094 = vsel %vm270, %v3091, 0
    %v3096 = vsel %vm270, %v3093, 0
    %3098 = vmatprep.subr.mxu0 0.0
    %3099 = vmatpush1.xpose.msra.mxu0 0.0
    %3100 = vmatprep.subr.mxu0 0.0
    %3101 = vmatpush1.xpose.msra.mxu0 0.0
    %3102 = vmatprep.subr.mxu0 0.0
    %3103 = vmatpush1.xpose.msra.mxu0 0.0
    %3104 = vmatprep.subr.mxu0 0.0
    %3105 = vmatpush1.xpose.msra.mxu0 0.0
    %3106 = vmatprep.subr.mxu0 0.0
    %3107 = vmatpush1.xpose.msra.mxu0 0.0
    %3108 = vmatprep.subr.mxu0 0.0
    %3109 = vmatpush1.xpose.msra.mxu0 0.0
    %3110 = vmatprep.subr.mxu0 0.0
    %3111 = vmatpush1.xpose.msra.mxu0 0.0
    %3112 = vmatprep.subr.mxu0 0.0
    %3113 = vmatpush1.xpose.msra.mxu0 0.0
    %3114 = vmatprep.subr.mxu0 0.0
    %3115 = vmatpush1.xpose.msra.mxu0 0.0
    %3116 = vmatprep.subr.mxu0 0.0
    %3117 = vmatpush1.xpose.msra.mxu0 0.0
    %3118 = vmatprep.subr.mxu0 0.0
    %3119 = vmatpush1.xpose.msra.mxu0 0.0
    %3120 = vmatprep.subr.mxu0 0.0
    %3121 = vmatpush1.xpose.msra.mxu0 0.0
    %3122 = vmatprep.subr.mxu0 0.0
    %3123 = vmatpush1.xpose.msra.mxu0 0.0
    %3124 = vmatprep.subr.mxu0 0.0
    %3125 = vmatpush1.xpose.msra.mxu0 0.0
    %3126 = vmatprep.subr.mxu0 0.0
    %3127 = vmatpush1.xpose.msra.mxu0 0.0
    %3128 = vmatprep.subr.mxu0 0.0
    %3129 = vmatpush1.xpose.msra.mxu0 %v3096
    %3130 = vmatprep.subr.mxu0 0.0
    %3131 = vmatpush2.xpose.msra.mxu0 0.0
    %3132 = vmatprep.subr.mxu0 0.0
    %3133 = vmatpush2.xpose.msra.mxu0 0.0
    %3134 = vmatprep.subr.mxu0 0.0
    %3135 = vmatpush2.xpose.msra.mxu0 0.0
    %3136 = vmatprep.subr.mxu0 0.0
    %3137 = vmatpush2.xpose.msra.mxu0 0.0
    %3138 = vmatprep.subr.mxu0 0.0
    %3139 = vmatpush2.xpose.msra.mxu0 0.0
    %3140 = vmatprep.subr.mxu0 0.0
    %3141 = vmatpush2.xpose.msra.mxu0 0.0
    %3142 = vmatprep.subr.mxu0 0.0
    %3143 = vmatpush2.xpose.msra.mxu0 0.0
    %3144 = vmatprep.subr.mxu0 0.0
    %3145 = vmatpush2.xpose.msra.mxu0 0.0
    %3146 = vmatprep.subr.mxu0 0.0
    %3147 = vmatpush2.xpose.msra.mxu0 0.0
    %3148 = vmatprep.subr.mxu0 0.0
    %3149 = vmatpush2.xpose.msra.mxu0 0.0
    %3150 = vmatprep.subr.mxu0 0.0
    %3151 = vmatpush2.xpose.msra.mxu0 0.0
    %3152 = vmatprep.subr.mxu0 0.0
    %3153 = vmatpush2.xpose.msra.mxu0 0.0
    %3154 = vmatprep.subr.mxu0 0.0
    %3155 = vmatpush2.xpose.msra.mxu0 0.0
    %3156 = vmatprep.subr.mxu0 0.0
    %3157 = vmatpush2.xpose.msra.mxu0 0.0
    %3158 = vmatprep.subr.mxu0 0.0
    %3159 = vmatpush2.xpose.msra.mxu0 0.0
    %3160 = vmatprep.subr.mxu0 0.0
    %3161 = vmatpush2.xpose.msra.mxu0 0.0
    %3162 = vmatprep.mubr.f32.mxu0 0.0
    %3163 = vmatmul.mubr.f32.gmra.mxu0 %v3094
    %v3164 = vpop.f32.mrf.mxu0
    %v3165 = vadd.f32 0.0, %v3164
    %v3166 = vpop.f32.mrf.mxu0
    %3167 = vdwg.mxu0
    %v3168 = vmul.f32 %v3165, 0.35355338
    %v3169 = vadd.f32 %v3168, %v36
    %v3170 = vsel %vm270, %v3169, -inf
    %3171 = vmax.xlane.f32.xlu0 %v3170
    %v3172 = vpop.xlane.xlu0 %3171
    %v3173 = vsub.f32 %v3169, %v3172
    %v3174 = vmul.f32 %v3173, 1.442695
    %v3175 = vpow.pop %v3174
    %v3176 = vsel %vm270, %v3175, 0.0
    %3177 = vadd.xlane.f32.xlu0 %v3176
    %v3178 = vpop.xlane.xlu0 %3177
    %v3179 = vrcp.pop %v3178
    %v3180 = vmul.f32 %v3175, %v3179
    %3181 = vrot.lane.b32.xlu0 %v2072, 48
    %v3182 = vpop.permute.xlu0 %3181
    %v3185 = vsel %vm270, %v3180, 0
    %3187 = vmatprep.subr.mxu0 0.0
    %3188 = vmatpush1.msra.mxu0 0.0
    %3189 = vmatprep.subr.mxu0 0.0
    %3190 = vmatpush1.msra.mxu0 0.0
    %3191 = vmatprep.subr.mxu0 0.0
    %3192 = vmatpush1.msra.mxu0 0.0
    %3193 = vmatprep.subr.mxu0 0.0
    %3194 = vmatpush1.msra.mxu0 0.0
    %3195 = vmatprep.subr.mxu0 0.0
    %3196 = vmatpush1.msra.mxu0 0.0
    %3197 = vmatprep.subr.mxu0 0.0
    %3198 = vmatpush1.msra.mxu0 0.0
    %3199 = vmatprep.subr.mxu0 0.0
    %3200 = vmatpush1.msra.mxu0 0.0
    %3201 = vmatprep.subr.mxu0 0.0
    %3202 = vmatpush1.msra.mxu0 0.0
    %3203 = vmatprep.subr.mxu0 0.0
    %3204 = vmatpush1.msra.mxu0 0.0
    %3205 = vmatprep.subr.mxu0 0.0
    %3206 = vmatpush1.msra.mxu0 0.0
    %3207 = vmatprep.subr.mxu0 0.0
    %3208 = vmatpush1.msra.mxu0 0.0
    %3209 = vmatprep.subr.mxu0 0.0
    %3210 = vmatpush1.msra.mxu0 0.0
    %3211 = vmatprep.subr.mxu0 0.0
    %3212 = vmatpush1.msra.mxu0 0.0
    %3213 = vmatprep.subr.mxu0 0.0
    %3214 = vmatpush1.msra.mxu0 0.0
    %3215 = vmatprep.subr.mxu0 0.0
    %3216 = vmatpush1.msra.mxu0 0.0
    %3217 = vmatprep.subr.mxu0 0.0
    %3218 = vmatpush1.msra.mxu0 %v3182
    %3219 = vmatprep.subr.mxu0 0.0
    %3220 = vmatpush2.msra.mxu0 0.0
    %3221 = vmatprep.subr.mxu0 0.0
    %3222 = vmatpush2.msra.mxu0 0.0
    %3223 = vmatprep.subr.mxu0 0.0
    %3224 = vmatpush2.msra.mxu0 0.0
    %3225 = vmatprep.subr.mxu0 0.0
    %3226 = vmatpush2.msra.mxu0 0.0
    %3227 = vmatprep.subr.mxu0 0.0
    %3228 = vmatpush2.msra.mxu0 0.0
    %3229 = vmatprep.subr.mxu0 0.0
    %3230 = vmatpush2.msra.mxu0 0.0
    %3231 = vmatprep.subr.mxu0 0.0
    %3232 = vmatpush2.msra.mxu0 0.0
    %3233 = vmatprep.subr.mxu0 0.0
    %3234 = vmatpush2.msra.mxu0 0.0
    %3235 = vmatprep.subr.mxu0 0.0
    %3236 = vmatpush2.msra.mxu0 0.0
    %3237 = vmatprep.subr.mxu0 0.0
    %3238 = vmatpush2.msra.mxu0 0.0
    %3239 = vmatprep.subr.mxu0 0.0
    %3240 = vmatpush2.msra.mxu0 0.0
    %3241 = vmatprep.subr.mxu0 0.0
    %3242 = vmatpush2.msra.mxu0 0.0
    %3243 = vmatprep.subr.mxu0 0.0
    %3244 = vmatpush2.msra.mxu0 0.0
    %3245 = vmatprep.subr.mxu0 0.0
    %3246 = vmatpush2.msra.mxu0 0.0
    %3247 = vmatprep.subr.mxu0 0.0
    %3248 = vmatpush2.msra.mxu0 0.0
    %3249 = vmatprep.subr.mxu0 0.0
    %3250 = vmatpush2.msra.mxu0 0.0
    %3251 = vmatprep.mubr.f32.mxu0 0.0
    %3252 = vmatmul.mubr.f32.gmra.mxu0 %v3185
    %v3253 = vpop.f32.mrf.mxu0
    %v3254 = vadd.f32 0.0, %v3253
    %v3255 = vpop.f32.mrf.mxu0
    %3256 = vdwg.mxu0
    %3257 = vrot.lane.b32.xlu0 %v2072, 104
    %v3258 = vpop.permute.xlu0 %3257
    %3259 = vrot.lane.b32.xlu0 %v2072, 72
    %v3260 = vpop.permute.xlu0 %3259
    %v3261 = vsel %vm270, %v3258, 0
    %v3263 = vsel %vm270, %v3260, 0
    %3265 = vmatprep.subr.mxu0 0.0
    %3266 = vmatpush1.xpose.msra.mxu0 0.0
    %3267 = vmatprep.subr.mxu0 0.0
    %3268 = vmatpush1.xpose.msra.mxu0 0.0
    %3269 = vmatprep.subr.mxu0 0.0
    %3270 = vmatpush1.xpose.msra.mxu0 0.0
    %3271 = vmatprep.subr.mxu0 0.0
    %3272 = vmatpush1.xpose.msra.mxu0 0.0
    %3273 = vmatprep.subr.mxu0 0.0
    %3274 = vmatpush1.xpose.msra.mxu0 0.0
    %3275 = vmatprep.subr.mxu0 0.0
    %3276 = vmatpush1.xpose.msra.mxu0 0.0
    %3277 = vmatprep.subr.mxu0 0.0
    %3278 = vmatpush1.xpose.msra.mxu0 0.0
    %3279 = vmatprep.subr.mxu0 0.0
    %3280 = vmatpush1.xpose.msra.mxu0 0.0
    %3281 = vmatprep.subr.mxu0 0.0
    %3282 = vmatpush1.xpose.msra.mxu0 0.0
    %3283 = vmatprep.subr.mxu0 0.0
    %3284 = vmatpush1.xpose.msra.mxu0 0.0
    %3285 = vmatprep.subr.mxu0 0.0
    %3286 = vmatpush1.xpose.msra.mxu0 0.0
    %3287 = vmatprep.subr.mxu0 0.0
    %3288 = vmatpush1.xpose.msra.mxu0 0.0
    %3289 = vmatprep.subr.mxu0 0.0
    %3290 = vmatpush1.xpose.msra.mxu0 0.0
    %3291 = vmatprep.subr.mxu0 0.0
    %3292 = vmatpush1.xpose.msra.mxu0 0.0
    %3293 = vmatprep.subr.mxu0 0.0
    %3294 = vmatpush1.xpose.msra.mxu0 0.0
    %3295 = vmatprep.subr.mxu0 0.0
    %3296 = vmatpush1.xpose.msra.mxu0 %v3263
    %3297 = vmatprep.subr.mxu0 0.0
    %3298 = vmatpush2.xpose.msra.mxu0 0.0
    %3299 = vmatprep.subr.mxu0 0.0
    %3300 = vmatpush2.xpose.msra.mxu0 0.0
    %3301 = vmatprep.subr.mxu0 0.0
    %3302 = vmatpush2.xpose.msra.mxu0 0.0
    %3303 = vmatprep.subr.mxu0 0.0
    %3304 = vmatpush2.xpose.msra.mxu0 0.0
    %3305 = vmatprep.subr.mxu0 0.0
    %3306 = vmatpush2.xpose.msra.mxu0 0.0
    %3307 = vmatprep.subr.mxu0 0.0
    %3308 = vmatpush2.xpose.msra.mxu0 0.0
    %3309 = vmatprep.subr.mxu0 0.0
    %3310 = vmatpush2.xpose.msra.mxu0 0.0
    %3311 = vmatprep.subr.mxu0 0.0
    %3312 = vmatpush2.xpose.msra.mxu0 0.0
    %3313 = vmatprep.subr.mxu0 0.0
    %3314 = vmatpush2.xpose.msra.mxu0 0.0
    %3315 = vmatprep.subr.mxu0 0.0
    %3316 = vmatpush2.xpose.msra.mxu0 0.0
    %3317 = vmatprep.subr.mxu0 0.0
    %3318 = vmatpush2.xpose.msra.mxu0 0.0
    %3319 = vmatprep.subr.mxu0 0.0
    %3320 = vmatpush2.xpose.msra.mxu0 0.0
    %3321 = vmatprep.subr.mxu0 0.0
    %3322 = vmatpush2.xpose.msra.mxu0 0.0
    %3323 = vmatprep.subr.mxu0 0.0
    %3324 = vmatpush2.xpose.msra.mxu0 0.0
    %3325 = vmatprep.subr.mxu0 0.0
    %3326 = vmatpush2.xpose.msra.mxu0 0.0
    %3327 = vmatprep.subr.mxu0 0.0
    %3328 = vmatpush2.xpose.msra.mxu0 0.0
    %3329 = vmatprep.mubr.f32.mxu0 0.0
    %3330 = vmatmul.mubr.f32.gmra.mxu0 %v3261
    %v3331 = vpop.f32.mrf.mxu0
    %v3332 = vadd.f32 0.0, %v3331
    %v3333 = vpop.f32.mrf.mxu0
    %3334 = vdwg.mxu0
    %v3335 = vmul.f32 %v3332, 0.35355338
    %v3336 = vadd.f32 %v3335, %v36
    %v3337 = vsel %vm270, %v3336, -inf
    %3338 = vmax.xlane.f32.xlu0 %v3337
    %v3339 = vpop.xlane.xlu0 %3338
    %v3340 = vsub.f32 %v3336, %v3339
    %v3341 = vmul.f32 %v3340, 1.442695
    %v3342 = vpow.pop %v3341
    %v3343 = vsel %vm270, %v3342, 0.0
    %3344 = vadd.xlane.f32.xlu0 %v3343
    %v3345 = vpop.xlane.xlu0 %3344
    %v3346 = vrcp.pop %v3345
    %v3347 = vmul.f32 %v3342, %v3346
    %3348 = vrot.lane.b32.xlu0 %v2072, 40
    %v3349 = vpop.permute.xlu0 %3348
    %v3352 = vsel %vm270, %v3347, 0
    %3354 = vmatprep.subr.mxu0 0.0
    %3355 = vmatpush1.msra.mxu0 0.0
    %3356 = vmatprep.subr.mxu0 0.0
    %3357 = vmatpush1.msra.mxu0 0.0
    %3358 = vmatprep.subr.mxu0 0.0
    %3359 = vmatpush1.msra.mxu0 0.0
    %3360 = vmatprep.subr.mxu0 0.0
    %3361 = vmatpush1.msra.mxu0 0.0
    %3362 = vmatprep.subr.mxu0 0.0
    %3363 = vmatpush1.msra.mxu0 0.0
    %3364 = vmatprep.subr.mxu0 0.0
    %3365 = vmatpush1.msra.mxu0 0.0
    %3366 = vmatprep.subr.mxu0 0.0
    %3367 = vmatpush1.msra.mxu0 0.0
    %3368 = vmatprep.subr.mxu0 0.0
    %3369 = vmatpush1.msra.mxu0 0.0
    %3370 = vmatprep.subr.mxu0 0.0
    %3371 = vmatpush1.msra.mxu0 0.0
    %3372 = vmatprep.subr.mxu0 0.0
    %3373 = vmatpush1.msra.mxu0 0.0
    %3374 = vmatprep.subr.mxu0 0.0
    %3375 = vmatpush1.msra.mxu0 0.0
    %3376 = vmatprep.subr.mxu0 0.0
    %3377 = vmatpush1.msra.mxu0 0.0
    %3378 = vmatprep.subr.mxu0 0.0
    %3379 = vmatpush1.msra.mxu0 0.0
    %3380 = vmatprep.subr.mxu0 0.0
    %3381 = vmatpush1.msra.mxu0 0.0
    %3382 = vmatprep.subr.mxu0 0.0
    %3383 = vmatpush1.msra.mxu0 0.0
    %3384 = vmatprep.subr.mxu0 0.0
    %3385 = vmatpush1.msra.mxu0 %v3349
    %3386 = vmatprep.subr.mxu0 0.0
    %3387 = vmatpush2.msra.mxu0 0.0
    %3388 = vmatprep.subr.mxu0 0.0
    %3389 = vmatpush2.msra.mxu0 0.0
    %3390 = vmatprep.subr.mxu0 0.0
    %3391 = vmatpush2.msra.mxu0 0.0
    %3392 = vmatprep.subr.mxu0 0.0
    %3393 = vmatpush2.msra.mxu0 0.0
    %3394 = vmatprep.subr.mxu0 0.0
    %3395 = vmatpush2.msra.mxu0 0.0
    %3396 = vmatprep.subr.mxu0 0.0
    %3397 = vmatpush2.msra.mxu0 0.0
    %3398 = vmatprep.subr.mxu0 0.0
    %3399 = vmatpush2.msra.mxu0 0.0
    %3400 = vmatprep.subr.mxu0 0.0
    %3401 = vmatpush2.msra.mxu0 0.0
    %3402 = vmatprep.subr.mxu0 0.0
    %3403 = vmatpush2.msra.mxu0 0.0
    %3404 = vmatprep.subr.mxu0 0.0
    %3405 = vmatpush2.msra.mxu0 0.0
    %3406 = vmatprep.subr.mxu0 0.0
    %3407 = vmatpush2.msra.mxu0 0.0
    %3408 = vmatprep.subr.mxu0 0.0
    %3409 = vmatpush2.msra.mxu0 0.0
    %3410 = vmatprep.subr.mxu0 0.0
    %3411 = vmatpush2.msra.mxu0 0.0
    %3412 = vmatprep.subr.mxu0 0.0
    %3413 = vmatpush2.msra.mxu0 0.0
    %3414 = vmatprep.subr.mxu0 0.0
    %3415 = vmatpush2.msra.mxu0 0.0
    %3416 = vmatprep.subr.mxu0 0.0
    %3417 = vmatpush2.msra.mxu0 0.0
    %3418 = vmatprep.mubr.f32.mxu0 0.0
    %3419 = vmatmul.mubr.f32.gmra.mxu0 %v3352
    %v3420 = vpop.f32.mrf.mxu0
    %v3421 = vadd.f32 0.0, %v3420
    %v3422 = vpop.f32.mrf.mxu0
    %3423 = vdwg.mxu0
    %3425 = vrot.lane.b32.xlu0 %v3087, 8
    %v3426 = vpop.permute.xlu0 %3425
    %3429 = vrot.lane.b32.xlu0 %v3254, 16
    %v3430 = vpop.permute.xlu0 %3429
    %3433 = vrot.lane.b32.xlu0 %v3421, 24
    %v3434 = vpop.permute.xlu0 %3433
    %v3436 = vsel %vm270, %v2920, %v3426
    %v3437 = vsel %vm948, %v3436, %v3430
    %v3438 = vsel %vm950, %v3437, %v3434
    %s3439 = scalar_lea.vmem %s4, 40
    %v3440 = vld [vmem:[%s3439] sm:$0xff]
    %v3441 = vld [vmem:[%s3439 + $0x8] sm:$0xff]
    %v3442 = vld [vmem:[%s3439 + $0x10] sm:$0xff]
    %v3443 = vld [vmem:[%s3439 + $0x18] sm:$0xff]
    %v3444 = vld [vmem:[%s3439 + $0x20] sm:$0x1]
    %v3445 = vlaneseq
    %v3446 = vshrl.u32 %v3445, 7
    %v3447 = vsub.s32 0, %v3446
    %v3448 = vrot.slane %v3444, %v3447
    %v3450 = vsel %vm149, %v2756, 0
    %v3453 = vsel %vm149, %v3438, 0
    %3455 = vmatprep.subr.mxu0 0.0
    %3456 = vmatpush1.msra.mxu0 0.0
    %3457 = vmatprep.subr.mxu0 0.0
    %3458 = vmatpush1.msra.mxu0 0.0
    %3459 = vmatprep.subr.mxu0 0.0
    %3460 = vmatpush1.msra.mxu0 0.0
    %3461 = vmatprep.subr.mxu0 0.0
    %3462 = vmatpush1.msra.mxu0 0.0
    %3463 = vmatprep.subr.mxu0 0.0
    %3464 = vmatpush1.msra.mxu0 0.0
    %3465 = vmatprep.subr.mxu0 0.0
    %3466 = vmatpush1.msra.mxu0 0.0
    %3467 = vmatprep.subr.mxu0 0.0
    %3468 = vmatpush1.msra.mxu0 0.0
    %3469 = vmatprep.subr.mxu0 0.0
    %3470 = vmatpush1.msra.mxu0 0.0
    %3471 = vmatprep.subr.mxu0 0.0
    %3472 = vmatpush1.msra.mxu0 0.0
    %3473 = vmatprep.subr.mxu0 0.0
    %3474 = vmatpush1.msra.mxu0 0.0
    %3475 = vmatprep.subr.mxu0 0.0
    %3476 = vmatpush1.msra.mxu0 0.0
    %3477 = vmatprep.subr.mxu0 0.0
    %3478 = vmatpush1.msra.mxu0 0.0
    %3479 = vmatprep.subr.mxu0 0.0
    %3480 = vmatpush1.msra.mxu0 %v3443
    %3481 = vmatprep.subr.mxu0 0.0
    %3482 = vmatpush1.msra.mxu0 %v3442
    %3483 = vmatprep.subr.mxu0 0.0
    %3484 = vmatpush1.msra.mxu0 %v3441
    %3485 = vmatprep.subr.mxu0 0.0
    %3486 = vmatpush1.msra.mxu0 %v3440
    %3487 = vmatprep.subr.mxu0 0.0
    %3488 = vmatpush2.msra.mxu0 0.0
    %3489 = vmatprep.subr.mxu0 0.0
    %3490 = vmatpush2.msra.mxu0 0.0
    %3491 = vmatprep.subr.mxu0 0.0
    %3492 = vmatpush2.msra.mxu0 0.0
    %3493 = vmatprep.subr.mxu0 0.0
    %3494 = vmatpush2.msra.mxu0 0.0
    %3495 = vmatprep.subr.mxu0 0.0
    %3496 = vmatpush2.msra.mxu0 0.0
    %3497 = vmatprep.subr.mxu0 0.0
    %3498 = vmatpush2.msra.mxu0 0.0
    %3499 = vmatprep.subr.mxu0 0.0
    %3500 = vmatpush2.msra.mxu0 0.0
    %3501 = vmatprep.subr.mxu0 0.0
    %3502 = vmatpush2.msra.mxu0 0.0
    %3503 = vmatprep.subr.mxu0 0.0
    %3504 = vmatpush2.msra.mxu0 0.0
    %3505 = vmatprep.subr.mxu0 0.0
    %3506 = vmatpush2.msra.mxu0 0.0
    %3507 = vmatprep.subr.mxu0 0.0
    %3508 = vmatpush2.msra.mxu0 0.0
    %3509 = vmatprep.subr.mxu0 0.0
    %3510 = vmatpush2.msra.mxu0 0.0
    %3511 = vmatprep.subr.mxu0 0.0
    %3512 = vmatpush2.msra.mxu0 0.0
    %3513 = vmatprep.subr.mxu0 0.0
    %3514 = vmatpush2.msra.mxu0 0.0
    %3515 = vmatprep.subr.mxu0 0.0
    %3516 = vmatpush2.msra.mxu0 0.0
    %3517 = vmatprep.subr.mxu0 0.0
    %3518 = vmatpush2.msra.mxu0 0.0
    %3519 = vmatprep.mubr.f32.mxu0 0.0
    %3520 = vmatmul.mubr.f32.gmra.mxu0 %v3450
    %v3521 = vpop.f32.mrf.mxu0
    %v3522 = vadd.f32 %v3448, %v3521
    %v3523 = vpop.f32.mrf.mxu0
    %3524 = vmatprep.mubr.f32.mxu0 0.0
    %3525 = vmatmul.mubr.f32.gmra.mxu0 %v3453
    %v3526 = vpop.f32.mrf.mxu0
    %v3527 = vadd.f32 %v3448, %v3526
    %v3528 = vpop.f32.mrf.mxu0
    %3529 = vdwg.mxu0
    %v3530 = vadd.f32 %v1956, %v3522
    %v3531 = vadd.f32 %v1957, %v3527
    %v3532 = vsel %vm149, %v3530, 0.0
    %3533 = vadd.xlane.f32.xlu0 %v3532
    %v3534 = vpop.xlane.xlu0 %3533
    %v3535 = vsel %vm149, %v3531, 0.0
    %3536 = vadd.xlane.f32.xlu0 %v3535
    %v3537 = vpop.xlane.xlu0 %3536
    %v3538 = vmul.f32 %v3534, %v156
    %v3539 = vmul.f32 %v3537, %v156
    %v3540 = vsub.f32 %v3530, %v3538
    %v3541 = vsub.f32 %v3531, %v3539
    %v3542 = vmul.f32 %v3540, %v3540
    %v3543 = vmul.f32 %v3541, %v3541
    %v3544 = vsel %vm149, %v3542, 0.0
    %3545 = vadd.xlane.f32.xlu0 %v3544
    %v3546 = vpop.xlane.xlu0 %3545
    %v3547 = vsel %vm149, %v3543, 0.0
    %3548 = vadd.xlane.f32.xlu0 %v3547
    %v3549 = vpop.xlane.xlu0 %3548
    %v3550 = vmul.f32 %v3546, %v156
    %v3551 = vmul.f32 %v3549, %v156
    %v3552 = vadd.f32 %v3550, 1e-05
    %v3553 = vadd.f32 %v3551, 1e-05
    %v3554 = vrsqrt.pop %v3552
    %v3555 = vrsqrt.pop %v3553
    %v3556 = vmul.f32 %v3540, %v3554
    %v3557 = vmul.f32 %v3541, %v3555
    %s3558 = scalar_lea.vmem %s5, 40
    %v3559 = vld [vmem:[%s3558] sm:$0xff]
    %v3560 = vld [vmem:[%s3558 + $0x8] sm:$0xff]
    %v3561 = vld [vmem:[%s3558 + $0x10] sm:$0xff]
    %v3562 = vld [vmem:[%s3558 + $0x18] sm:$0xff]
    %v3563 = vld [vmem:[%s3558 + $0x20] sm:$0x1]
    %v3564 = vlaneseq
    %v3565 = vshrl.u32 %v3564, 7
    %v3566 = vsub.s32 0, %v3565
    %v3567 = vrot.slane %v3563, %v3566
    %v3569 = vsel %vm149, %v3556, 0
    %v3572 = vsel %vm149, %v3557, 0
    %3574 = vmatprep.subr.mxu0 0.0
    %3575 = vmatpush1.msra.mxu0 0.0
    %3576 = vmatprep.subr.mxu0 0.0
    %3577 = vmatpush1.msra.mxu0 0.0
    %3578 = vmatprep.subr.mxu0 0.0
    %3579 = vmatpush1.msra.mxu0 0.0
    %3580 = vmatprep.subr.mxu0 0.0
    %3581 = vmatpush1.msra.mxu0 0.0
    %3582 = vmatprep.subr.mxu0 0.0
    %3583 = vmatpush1.msra.mxu0 0.0
    %3584 = vmatprep.subr.mxu0 0.0
    %3585 = vmatpush1.msra.mxu0 0.0
    %3586 = vmatprep.subr.mxu0 0.0
    %3587 = vmatpush1.msra.mxu0 0.0
    %3588 = vmatprep.subr.mxu0 0.0
    %3589 = vmatpush1.msra.mxu0 0.0
    %3590 = vmatprep.subr.mxu0 0.0
    %3591 = vmatpush1.msra.mxu0 0.0
    %3592 = vmatprep.subr.mxu0 0.0
    %3593 = vmatpush1.msra.mxu0 0.0
    %3594 = vmatprep.subr.mxu0 0.0
    %3595 = vmatpush1.msra.mxu0 0.0
    %3596 = vmatprep.subr.mxu0 0.0
    %3597 = vmatpush1.msra.mxu0 0.0
    %3598 = vmatprep.subr.mxu0 0.0
    %3599 = vmatpush1.msra.mxu0 %v3562
    %3600 = vmatprep.subr.mxu0 0.0
    %3601 = vmatpush1.msra.mxu0 %v3561
    %3602 = vmatprep.subr.mxu0 0.0
    %3603 = vmatpush1.msra.mxu0 %v3560
    %3604 = vmatprep.subr.mxu0 0.0
    %3605 = vmatpush1.msra.mxu0 %v3559
    %3606 = vmatprep.subr.mxu0 0.0
    %3607 = vmatpush2.msra.mxu0 0.0
    %3608 = vmatprep.subr.mxu0 0.0
    %3609 = vmatpush2.msra.mxu0 0.0
    %3610 = vmatprep.subr.mxu0 0.0
    %3611 = vmatpush2.msra.mxu0 0.0
    %3612 = vmatprep.subr.mxu0 0.0
    %3613 = vmatpush2.msra.mxu0 0.0
    %3614 = vmatprep.subr.mxu0 0.0
    %3615 = vmatpush2.msra.mxu0 0.0
    %3616 = vmatprep.subr.mxu0 0.0
    %3617 = vmatpush2.msra.mxu0 0.0
    %3618 = vmatprep.subr.mxu0 0.0
    %3619 = vmatpush2.msra.mxu0 0.0
    %3620 = vmatprep.subr.mxu0 0.0
    %3621 = vmatpush2.msra.mxu0 0.0
    %3622 = vmatprep.subr.mxu0 0.0
    %3623 = vmatpush2.msra.mxu0 0.0
    %3624 = vmatprep.subr.mxu0 0.0
    %3625 = vmatpush2.msra.mxu0 0.0
    %3626 = vmatprep.subr.mxu0 0.0
    %3627 = vmatpush2.msra.mxu0 0.0
    %3628 = vmatprep.subr.mxu0 0.0
    %3629 = vmatpush2.msra.mxu0 0.0
    %3630 = vmatprep.subr.mxu0 0.0
    %3631 = vmatpush2.msra.mxu0 0.0
    %3632 = vmatprep.subr.mxu0 0.0
    %3633 = vmatpush2.msra.mxu0 0.0
    %3634 = vmatprep.subr.mxu0 0.0
    %3635 = vmatpush2.msra.mxu0 0.0
    %3636 = vmatprep.subr.mxu0 0.0
    %3637 = vmatpush2.msra.mxu0 0.0
    %3638 = vmatprep.mubr.f32.mxu0 0.0
    %3639 = vmatmul.mubr.f32.gmra.mxu0 %v3569
    %v3640 = vpop.f32.mrf.mxu0
    %v3641 = vadd.f32 %v3567, %v3640
    %v3642 = vpop.f32.mrf.mxu0
    %3643 = vmatprep.mubr.f32.mxu0 0.0
    %3644 = vmatmul.mubr.f32.gmra.mxu0 %v3572
    %v3645 = vpop.f32.mrf.mxu0
    %v3646 = vadd.f32 %v3567, %v3645
    %v3647 = vpop.f32.mrf.mxu0
    %3648 = vdwg.mxu0
    %v3649 = vmul.f32 %v3641, %v3641
    %v3650 = vmul.f32 %v3646, %v3646
    %v3651 = vmul.f32 %v3641, %v3649
    %v3652 = vmul.f32 %v3646, %v3650
    %v3653 = vmul.f32 %v3651, 0.044715
    %v3654 = vmul.f32 %v3652, 0.044715
    %v3655 = vadd.f32 %v3641, %v3653
    %v3656 = vadd.f32 %v3646, %v3654
    %v3657 = vmul.f32 %v3655, 0.7978846
    %v3658 = vmul.f32 %v3656, 0.7978846
    %v3659 = vtanh.pop %v3657
    %v3660 = vtanh.pop %v3658
    %v3661 = vadd.f32 %v3659, 1.0
    %v3662 = vadd.f32 %v3660, 1.0
    %v3663 = vmul.f32 %v3661, 0.5
    %v3664 = vmul.f32 %v3662, 0.5
    %v3665 = vmul.f32 %v3641, %v3663
    %v3666 = vmul.f32 %v3646, %v3664
    %s3667 = scalar_lea.vmem %s6, 136
    %v3668 = vld [vmem:[%s3667] sm:$0xff]
    %v3669 = vld [vmem:[%s3667 + $0x8] sm:$0xff]
    %v3670 = vld [vmem:[%s3667 + $0x10] sm:$0xff]
    %v3671 = vld [vmem:[%s3667 + $0x18] sm:$0xff]
    %v3672 = vld [vmem:[%s3667 + $0x20] sm:$0xff]
    %v3673 = vld [vmem:[%s3667 + $0x28] sm:$0xff]
    %v3674 = vld [vmem:[%s3667 + $0x30] sm:$0xff]
    %v3675 = vld [vmem:[%s3667 + $0x38] sm:$0xff]
    %v3676 = vld [vmem:[%s3667 + $0x40] sm:$0xff]
    %v3677 = vld [vmem:[%s3667 + $0x48] sm:$0xff]
    %v3678 = vld [vmem:[%s3667 + $0x50] sm:$0xff]
    %v3679 = vld [vmem:[%s3667 + $0x58] sm:$0xff]
    %v3680 = vld [vmem:[%s3667 + $0x60] sm:$0xff]
    %v3681 = vld [vmem:[%s3667 + $0x68] sm:$0xff]
    %v3682 = vld [vmem:[%s3667 + $0x70] sm:$0xff]
    %v3683 = vld [vmem:[%s3667 + $0x78] sm:$0xff]
    %v3684 = vld [vmem:[%s3667 + $0x80] sm:$0x1]
    %v3685 = vlaneseq
    %v3686 = vshrl.u32 %v3685, 7
    %v3687 = vsub.s32 0, %v3686
    %v3688 = vrot.slane %v3684, %v3687
    %3689 = vmatprep.subr.mxu0 0.0
    %3690 = vmatpush1.msra.mxu0 %v3683
    %3691 = vmatprep.subr.mxu0 0.0
    %3692 = vmatpush1.msra.mxu0 %v3682
    %3693 = vmatprep.subr.mxu0 0.0
    %3694 = vmatpush1.msra.mxu0 %v3681
    %3695 = vmatprep.subr.mxu0 0.0
    %3696 = vmatpush1.msra.mxu0 %v3680
    %3697 = vmatprep.subr.mxu0 0.0
    %3698 = vmatpush1.msra.mxu0 %v3679
    %3699 = vmatprep.subr.mxu0 0.0
    %3700 = vmatpush1.msra.mxu0 %v3678
    %3701 = vmatprep.subr.mxu0 0.0
    %3702 = vmatpush1.msra.mxu0 %v3677
    %3703 = vmatprep.subr.mxu0 0.0
    %3704 = vmatpush1.msra.mxu0 %v3676
    %3705 = vmatprep.subr.mxu0 0.0
    %3706 = vmatpush1.msra.mxu0 %v3675
    %3707 = vmatprep.subr.mxu0 0.0
    %3708 = vmatpush1.msra.mxu0 %v3674
    %3709 = vmatprep.subr.mxu0 0.0
    %3710 = vmatpush1.msra.mxu0 %v3673
    %3711 = vmatprep.subr.mxu0 0.0
    %3712 = vmatpush1.msra.mxu0 %v3672
    %3713 = vmatprep.subr.mxu0 0.0
    %3714 = vmatpush1.msra.mxu0 %v3671
    %3715 = vmatprep.subr.mxu0 0.0
    %3716 = vmatpush1.msra.mxu0 %v3670
    %3717 = vmatprep.subr.mxu0 0.0
    %3718 = vmatpush1.msra.mxu0 %v3669
    %3719 = vmatprep.subr.mxu0 0.0
    %3720 = vmatpush1.msra.mxu0 %v3668
    %3721 = vmatprep.subr.mxu0 0.0
    %3722 = vmatpush2.msra.mxu0 0.0
    %3723 = vmatprep.subr.mxu0 0.0
    %3724 = vmatpush2.msra.mxu0 0.0
    %3725 = vmatprep.subr.mxu0 0.0
    %3726 = vmatpush2.msra.mxu0 0.0
    %3727 = vmatprep.subr.mxu0 0.0
    %3728 = vmatpush2.msra.mxu0 0.0
    %3729 = vmatprep.subr.mxu0 0.0
    %3730 = vmatpush2.msra.mxu0 0.0
    %3731 = vmatprep.subr.mxu0 0.0
    %3732 = vmatpush2.msra.mxu0 0.0
    %3733 = vmatprep.subr.mxu0 0.0
    %3734 = vmatpush2.msra.mxu0 0.0
    %3735 = vmatprep.subr.mxu0 0.0
    %3736 = vmatpush2.msra.mxu0 0.0
    %3737 = vmatprep.subr.mxu0 0.0
    %3738 = vmatpush2.msra.mxu0 0.0
    %3739 = vmatprep.subr.mxu0 0.0
    %3740 = vmatpush2.msra.mxu0 0.0
    %3741 = vmatprep.subr.mxu0 0.0
    %3742 = vmatpush2.msra.mxu0 0.0
    %3743 = vmatprep.subr.mxu0 0.0
    %3744 = vmatpush2.msra.mxu0 0.0
    %3745 = vmatprep.subr.mxu0 0.0
    %3746 = vmatpush2.msra.mxu0 0.0
    %3747 = vmatprep.subr.mxu0 0.0
    %3748 = vmatpush2.msra.mxu0 0.0
    %3749 = vmatprep.subr.mxu0 0.0
    %3750 = vmatpush2.msra.mxu0 0.0
    %3751 = vmatprep.subr.mxu0 0.0
    %3752 = vmatpush2.msra.mxu0 0.0
    %3753 = vmatprep.mubr.f32.mxu0 0.0
    %3754 = vmatmul.mubr.f32.gmra.mxu0 %v3665
    %v3755 = vpop.f32.mrf.mxu0
    %v3756 = vadd.f32 %v3688, %v3755
    %v3757 = vpop.f32.mrf.mxu0
    %3758 = vmatprep.mubr.f32.mxu0 0.0
    %3759 = vmatmul.mubr.f32.gmra.mxu0 %v3666
    %v3760 = vpop.f32.mrf.mxu0
    %v3761 = vadd.f32 %v3688, %v3760
    %v3762 = vpop.f32.mrf.mxu0
    %3763 = vdwg.mxu0
    %v3764 = vadd.f32 %v3530, %v3756
    %v3765 = vadd.f32 %v3531, %v3761
    %v3766 = vsel %vm149, %v3764, 0.0
    %3767 = vadd.xlane.f32.xlu0 %v3766
    %v3768 = vpop.xlane.xlu0 %3767
    %v3769 = vsel %vm149, %v3765, 0.0
    %3770 = vadd.xlane.f32.xlu0 %v3769
    %v3771 = vpop.xlane.xlu0 %3770
    %v3772 = vmul.f32 %v3768, %v156
    %v3773 = vmul.f32 %v3771, %v156
    %v3774 = vsub.f32 %v3764, %v3772
    %v3775 = vsub.f32 %v3765, %v3773
    %v3776 = vmul.f32 %v3774, %v3774
    %v3777 = vmul.f32 %v3775, %v3775
    %v3778 = vsel %vm149, %v3776, 0.0
    %3779 = vadd.xlane.f32.xlu0 %v3778
    %v3780 = vpop.xlane.xlu0 %3779
    %v3781 = vsel %vm149, %v3777, 0.0
    %3782 = vadd.xlane.f32.xlu0 %v3781
    %v3783 = vpop.xlane.xlu0 %3782
    %v3784 = vmul.f32 %v3780, %v156
    %v3785 = vmul.f32 %v3783, %v156
    %v3786 = vadd.f32 %v3784, 1e-05
    %v3787 = vadd.f32 %v3785, 1e-05
    %v3788 = vrsqrt.pop %v3786
    %v3789 = vrsqrt.pop %v3787
    %v3790 = vmul.f32 %v3774, %v3788
    %v3791 = vmul.f32 %v3775, %v3789
    %v3792 = vld [vmem:[%s7] sm:$0xff]
    %v3793 = vld [vmem:[%s7 + $0x8] sm:$0xff]
    %v3794 = vld [vmem:[%s7 + $0x10] sm:$0xff]
    %v3795 = vld [vmem:[%s7 + $0x18] sm:$0xff]
    %v3796 = vld [vmem:[%s7 + $0x20] sm:$0x1]
    %v3797 = vlaneseq
    %v3798 = vshrl.u32 %v3797, 7
    %v3799 = vsub.s32 0, %v3798
    %v3800 = vrot.slane %v3796, %v3799
    %v3802 = vsel %vm149, %v3790, 0
    %v3805 = vsel %vm149, %v3791, 0
    %3807 = vmatprep.subr.mxu0 0.0
    %3808 = vmatpush1.msra.mxu0 0.0
    %3809 = vmatprep.subr.mxu0 0.0
    %3810 = vmatpush1.msra.mxu0 0.0
    %3811 = vmatprep.subr.mxu0 0.0
    %3812 = vmatpush1.msra.mxu0 0.0
    %3813 = vmatprep.subr.mxu0 0.0
    %3814 = vmatpush1.msra.mxu0 0.0
    %3815 = vmatprep.subr.mxu0 0.0
    %3816 = vmatpush1.msra.mxu0 0.0
    %3817 = vmatprep.subr.mxu0 0.0
    %3818 = vmatpush1.msra.mxu0 0.0
    %3819 = vmatprep.subr.mxu0 0.0
    %3820 = vmatpush1.msra.mxu0 0.0
    %3821 = vmatprep.subr.mxu0 0.0
    %3822 = vmatpush1.msra.mxu0 0.0
    %3823 = vmatprep.subr.mxu0 0.0
    %3824 = vmatpush1.msra.mxu0 0.0
    %3825 = vmatprep.subr.mxu0 0.0
    %3826 = vmatpush1.msra.mxu0 0.0
    %3827 = vmatprep.subr.mxu0 0.0
    %3828 = vmatpush1.msra.mxu0 0.0
    %3829 = vmatprep.subr.mxu0 0.0
    %3830 = vmatpush1.msra.mxu0 0.0
    %3831 = vmatprep.subr.mxu0 0.0
    %3832 = vmatpush1.msra.mxu0 %v3795
    %3833 = vmatprep.subr.mxu0 0.0
    %3834 = vmatpush1.msra.mxu0 %v3794
    %3835 = vmatprep.subr.mxu0 0.0
    %3836 = vmatpush1.msra.mxu0 %v3793
    %3837 = vmatprep.subr.mxu0 0.0
    %3838 = vmatpush1.msra.mxu0 %v3792
    %3839 = vmatprep.subr.mxu0 0.0
    %3840 = vmatpush2.msra.mxu0 0.0
    %3841 = vmatprep.subr.mxu0 0.0
    %3842 = vmatpush2.msra.mxu0 0.0
    %3843 = vmatprep.subr.mxu0 0.0
    %3844 = vmatpush2.msra.mxu0 0.0
    %3845 = vmatprep.subr.mxu0 0.0
    %3846 = vmatpush2.msra.mxu0 0.0
    %3847 = vmatprep.subr.mxu0 0.0
    %3848 = vmatpush2.msra.mxu0 0.0
    %3849 = vmatprep.subr.mxu0 0.0
    %3850 = vmatpush2.msra.mxu0 0.0
    %3851 = vmatprep.subr.mxu0 0.0
    %3852 = vmatpush2.msra.mxu0 0.0
    %3853 = vmatprep.subr.mxu0 0.0
    %3854 = vmatpush2.msra.mxu0 0.0
    %3855 = vmatprep.subr.mxu0 0.0
    %3856 = vmatpush2.msra.mxu0 0.0
    %3857 = vmatprep.subr.mxu0 0.0
    %3858 = vmatpush2.msra.mxu0 0.0
    %3859 = vmatprep.subr.mxu0 0.0
    %3860 = vmatpush2.msra.mxu0 0.0
    %3861 = vmatprep.subr.mxu0 0.0
    %3862 = vmatpush2.msra.mxu0 0.0
    %3863 = vmatprep.subr.mxu0 0.0
    %3864 = vmatpush2.msra.mxu0 0.0
    %3865 = vmatprep.subr.mxu0 0.0
    %3866 = vmatpush2.msra.mxu0 0.0
    %3867 = vmatprep.subr.mxu0 0.0
    %3868 = vmatpush2.msra.mxu0 0.0
    %3869 = vmatprep.subr.mxu0 0.0
    %3870 = vmatpush2.msra.mxu0 0.0
    %3871 = vmatprep.mubr.f32.mxu0 0.0
    %3872 = vmatmul.mubr.f32.gmra.mxu0 %v3802
    %v3873 = vpop.f32.mrf.mxu0
    %v3874 = vadd.f32 %v3800, %v3873
    %v3875 = vpop.f32.mrf.mxu0
    %3876 = vmatprep.mubr.f32.mxu0 0.0
    %3877 = vmatmul.mubr.f32.gmra.mxu0 %v3805
    %v3878 = vpop.f32.mrf.mxu0
    %v3879 = vadd.f32 %v3800, %v3878
    %v3880 = vpop.f32.mrf.mxu0
    %3881 = vdwg.mxu0
    %v3882 = vld [vmem:[%s8] sm:$0xff]
    %v3883 = vld [vmem:[%s8 + $0x8] sm:$0xff]
    %v3884 = vld [vmem:[%s8 + $0x10] sm:$0xff]
    %v3885 = vld [vmem:[%s8 + $0x18] sm:$0xff]
    %v3886 = vld [vmem:[%s8 + $0x20] sm:$0x1]
    %v3887 = vlaneseq
    %v3888 = vshrl.u32 %v3887, 7
    %v3889 = vsub.s32 0, %v3888
    %v3890 = vrot.slane %v3886, %v3889
    %v3892 = vsel %vm149, %v3874, 0
    %v3895 = vsel %vm149, %v3879, 0
    %3897 = vmatprep.subr.mxu0 0.0
    %3898 = vmatpush1.msra.mxu0 0.0
    %3899 = vmatprep.subr.mxu0 0.0
    %3900 = vmatpush1.msra.mxu0 0.0
    %3901 = vmatprep.subr.mxu0 0.0
    %3902 = vmatpush1.msra.mxu0 0.0
    %3903 = vmatprep.subr.mxu0 0.0
    %3904 = vmatpush1.msra.mxu0 0.0
    %3905 = vmatprep.subr.mxu0 0.0
    %3906 = vmatpush1.msra.mxu0 0.0
    %3907 = vmatprep.subr.mxu0 0.0
    %3908 = vmatpush1.msra.mxu0 0.0
    %3909 = vmatprep.subr.mxu0 0.0
    %3910 = vmatpush1.msra.mxu0 0.0
    %3911 = vmatprep.subr.mxu0 0.0
    %3912 = vmatpush1.msra.mxu0 0.0
    %3913 = vmatprep.subr.mxu0 0.0
    %3914 = vmatpush1.msra.mxu0 0.0
    %3915 = vmatprep.subr.mxu0 0.0
    %3916 = vmatpush1.msra.mxu0 0.0
    %3917 = vmatprep.subr.mxu0 0.0
    %3918 = vmatpush1.msra.mxu0 0.0
    %3919 = vmatprep.subr.mxu0 0.0
    %3920 = vmatpush1.msra.mxu0 0.0
    %3921 = vmatprep.subr.mxu0 0.0
    %3922 = vmatpush1.msra.mxu0 %v3885
    %3923 = vmatprep.subr.mxu0 0.0
    %3924 = vmatpush1.msra.mxu0 %v3884
    %3925 = vmatprep.subr.mxu0 0.0
    %3926 = vmatpush1.msra.mxu0 %v3883
    %3927 = vmatprep.subr.mxu0 0.0
    %3928 = vmatpush1.msra.mxu0 %v3882
    %3929 = vmatprep.subr.mxu0 0.0
    %3930 = vmatpush2.msra.mxu0 0.0
    %3931 = vmatprep.subr.mxu0 0.0
    %3932 = vmatpush2.msra.mxu0 0.0
    %3933 = vmatprep.subr.mxu0 0.0
    %3934 = vmatpush2.msra.mxu0 0.0
    %3935 = vmatprep.subr.mxu0 0.0
    %3936 = vmatpush2.msra.mxu0 0.0
    %3937 = vmatprep.subr.mxu0 0.0
    %3938 = vmatpush2.msra.mxu0 0.0
    %3939 = vmatprep.subr.mxu0 0.0
    %3940 = vmatpush2.msra.mxu0 0.0
    %3941 = vmatprep.subr.mxu0 0.0
    %3942 = vmatpush2.msra.mxu0 0.0
    %3943 = vmatprep.subr.mxu0 0.0
    %3944 = vmatpush2.msra.mxu0 0.0
    %3945 = vmatprep.subr.mxu0 0.0
    %3946 = vmatpush2.msra.mxu0 0.0
    %3947 = vmatprep.subr.mxu0 0.0
    %3948 = vmatpush2.msra.mxu0 0.0
    %3949 = vmatprep.subr.mxu0 0.0
    %3950 = vmatpush2.msra.mxu0 0.0
    %3951 = vmatprep.subr.mxu0 0.0
    %3952 = vmatpush2.msra.mxu0 0.0
    %3953 = vmatprep.subr.mxu0 0.0
    %3954 = vmatpush2.msra.mxu0 0.0
    %3955 = vmatprep.subr.mxu0 0.0
    %3956 = vmatpush2.msra.mxu0 0.0
    %3957 = vmatprep.subr.mxu0 0.0
    %3958 = vmatpush2.msra.mxu0 0.0
    %3959 = vmatprep.subr.mxu0 0.0
    %3960 = vmatpush2.msra.mxu0 0.0
    %3961 = vmatprep.mubr.f32.mxu0 0.0
    %3962 = vmatmul.mubr.f32.gmra.mxu0 %v3892
    %v3963 = vpop.f32.mrf.mxu0
    %v3964 = vadd.f32 %v3890, %v3963
    %v3965 = vpop.f32.mrf.mxu0
    %3966 = vmatprep.mubr.f32.mxu0 0.0
    %3967 = vmatmul.mubr.f32.gmra.mxu0 %v3895
    %v3968 = vpop.f32.mrf.mxu0
    %v3969 = vadd.f32 %v3890, %v3968
    %v3970 = vpop.f32.mrf.mxu0
    %3971 = vdwg.mxu0
    %3972 = vst [vmem:[#allocation2] sm:$0xff] %v3964
    %3973 = vst [vmem:[#allocation2 + $0x8] sm:$0xff] %v3969
    // Predicated region
    $region38: #{tpu_custom_call.1} parent=1 // pred_check
      _
    $region39: #{tpu_custom_call.1} parent=1 // pred_check_branch
      %3975 = sbr.rel (0) target = $region41
    $region40: #{tpu_custom_call.1} parent=1 // pred_region
      %s3977 = ssub.s32 256, 256
      %3978 = vsyncadd [#allocation3], %s3977
      %s3979 = sshll.u32 [#allocation2], 4
      %s3980 = int_to_ptr.vmem [resolvable:$true] %s3979
      %3985 = dma.vmem_to_hbm [thread:$0]  %s3980, 256, %s9, [#allocation3], 128, 128, 8
    $region41: #{tpu_custom_call.1} parent=1 // pred_fallthru
      _
    // Predicated region
    $region42: #{tpu_custom_call.1} parent=1 // pred_check
      _
    $region43: #{tpu_custom_call.1} parent=1 // pred_check_branch
      %3987 = sbr.rel (0) target = $region45
    $region44: #{tpu_custom_call.1} parent=1 // pred_region
      %3988 = dma.done [#allocation3], 256
    $region45: #{tpu_custom_call.1} parent=1 // pred_fallthru
      _
    %3989 = vsyncpa [#allocation3], 1

</llo_original>
